<compile_context>
chip_gen: v7x
topology: tpu7x:2x2x1
jax: 0.10.0
libtpu: 0.0.40
codegen_flags: <defaults>
</compile_context>

<pallas_src>
import jax
import jax.numpy as jnp
from jax.experimental import pallas as pl
from jax.experimental.pallas import tpu as pltpu


def ssl_head_kernel(x_ref, w_ref, b_ref, out_ref):
    # x_ref  : (TB, C, N)       stage-4 features, native (B, C, N) layout
    # w_ref  : (2C, OUT_PAD)    block-diagonal fused head weight (lane padded)
    # b_ref  : (1, OUT_PAD)     fused bias (lane padded)
    # out_ref: (TB, 1, OUT_PAD) fused head output
    tb, c, n = x_ref.shape
    n0_end = (n + 1) // 2          # AdaptiveAvgPool1d(2): bin0 = [0, ceil(N/2))
    n1_start = n // 2              #                       bin1 = [floor(N/2), N)

    x = x_ref[...].astype(jnp.float32)                 # single VMEM load

    # Pooling with offset-0 static slices only (no iota masks, no divides).
    s_total = jnp.sum(x, axis=2)                       # (TB, C)
    s0 = jnp.sum(x[:, :, :n0_end], axis=2)             # (TB, C)
    if n1_start == n0_end:                             # even N: reuse prefix
        s_pre = s0
    elif n1_start > 0:                                 # odd N: shorter prefix
        s_pre = jnp.sum(x[:, :, :n1_start], axis=2)
    else:                                              # N == 1 degenerate case
        s_pre = jnp.zeros_like(s_total)

    p0 = s0 * (1.0 / n0_end)                           # pooled bin 0 (rotation)
    p1 = (s_total - s_pre) * (1.0 / (n - n1_start))    # pooled bin 1 (contrastive)

    # Fused heads: one lane-dense MXU matmul against the block-diagonal weight.
    p = jnp.concatenate([p0, p1], axis=1)              # (TB, 2C)
    y = jnp.dot(p, w_ref[...], preferred_element_type=jnp.float32) + b_ref[...]
    out_ref[...] = y.reshape(out_ref.shape).astype(out_ref.dtype)


def _pick_batch_tile(B, C, N, dtype_bytes=4, budget_bytes=8 << 20):
    """Pick a batch tile so the double-buffered x block stays well under the
    scoped-VMEM defaults (16 MiB v5e / 32 MiB v6e & v7x)."""
    n_pad = max(128, ((N + 127) // 128) * 128)         # minor dim pads to lanes
    per_row = C * n_pad * dtype_bytes * 2              # x block, double buffered
    tb = max(1, min(B, budget_bytes // per_row))
    while B % tb:                                      # keep the grid exact
        tb -= 1
    return tb


def ssl_head_forward(x_out, w_rot, b_rot, w_con, b_con, *, batch_tile=None):
    """x_out: (B, C, H, W, D) stage-4 SwinViT feature map (PyTorch NCDHW layout).
    w_rot: (C, 4), b_rot: (4,), w_con: (C, Hd), b_con: (Hd,)
    (nn.Linear weights already transposed from PyTorch's (out,in) to (in,out)).
    Returns (x_rot (B,4), x_contrastive (B,Hd), x_rec (B,C,H,W,D))."""
    B, C, H, W, D = x_out.shape
    N = H * W * D
    Hd = w_con.shape[1]
    out_w = 4 + Hd
    out_pad = max(128, ((out_w + 127) // 128) * 128)   # lane-dense output width

    # Free reshape to the native (B, C, N) layout -- NO HBM transpose.
    x_bcn = x_out.reshape(B, C, N)

    # Block-diagonal fused weight: rows [0,C) feed cols [0,4) (rotation head),
    # rows [C,2C) feed cols [4,4+Hd) (contrastive head); zero padded to 128 lanes.
    w_big = jnp.zeros((2 * C, out_pad), jnp.float32)
    w_big = w_big.at[:C, :4].set(w_rot.astype(jnp.float32))
    w_big = w_big.at[C:, 4:4 + Hd].set(w_con.astype(jnp.float32))
    b_big = jnp.zeros((1, out_pad), jnp.float32)
    b_big = b_big.at[0, :4].set(b_rot.astype(jnp.float32))
    b_big = b_big.at[0, 4:4 + Hd].set(b_con.astype(jnp.float32))

    tb = batch_tile if batch_tile is not None else _pick_batch_tile(B, C, N)
    tb = max(1, min(tb, B))
    while B % tb:
        tb -= 1
    grid = (B // tb,)

    out = pl.pallas_call(
        ssl_head_kernel,
        out_shape=jax.ShapeDtypeStruct((B, 1, out_pad), jnp.float32),
        grid_spec=pltpu.PrefetchScalarGridSpec(
            num_scalar_prefetch=0,
            grid=grid,
            in_specs=[
                pl.BlockSpec((tb, C, N), lambda b: (b, 0, 0)),          # x
                pl.BlockSpec((2 * C, out_pad), lambda b: (0, 0)),       # fused W
                pl.BlockSpec((1, out_pad), lambda b: (0, 0)),           # fused b
            ],
            out_specs=pl.BlockSpec((tb, 1, out_pad), lambda b: (b, 0, 0)),
        ),
        compiler_params=pltpu.CompilerParams(
            dimension_semantics=("parallel",),
        ),
    )(x_bcn, w_big, b_big)

    out2d = out.reshape(B, out_pad)
    x_rot = out2d[:, :4]
    x_contrastive = out2d[:, 4:4 + Hd]

    # x_rec: flatten(2,4) followed by view(-1, c, h, w, d) is an identity reshape.
    # TODO(synk): self.conv is undefined in the provided SSLHead.__init__; no op applied.
    x_rec = x_out.reshape(B, C, N).reshape(B, C, H, W, D)
    return x_rot, x_contrastive, x_rec


def _reference(x_out, w_rot, b_rot, w_con, b_con):
    B, C, H, W, D = x_out.shape
    N = H * W * D
    xf = x_out.reshape(B, C, N)                       # (B, C, N)
    n0_end, n1_start = (N + 1) // 2, N // 2
    p0 = xf[:, :, :n0_end].mean(axis=2)               # (B, C)
    p1 = xf[:, :, n1_start:].mean(axis=2)             # (B, C)
    rot = p0 @ w_rot + b_rot[None, :]
    con = p1 @ w_con + b_con[None, :]
    return rot, con, x_out


if __name__ == "__main__":
    # Stage-4 SwinViT map for a small volume: dim = 768 channels, 3x3x3 spatial
    # (N = 27 tokens, odd N exercises the overlapping-bin case), batch 4,
    # dim_hidden = 32, batch tile 2 -> grid of 2 pipelined, parallel steps.
    B, dim, dim_hidden = 4, 768, 32
    H = W = D = 3

    key = jax.random.PRNGKey(0)
    k_x, k_wr, k_br, k_wc, k_bc = jax.random.split(key, 5)

    # Synthetic stage-4 SwinViT output (the backbone itself is out of scope).
    x_out = jax.random.normal(k_x, (B, dim, H, W, D), dtype=jnp.float32)

    # Deterministic head parameters; PyTorch nn.Linear stores (out,in), the
    # wrapper takes the transposed (in,out) layout.
    w_rot = 0.02 * jax.random.normal(k_wr, (dim, 4), dtype=jnp.float32)
    b_rot = 0.01 * jax.random.normal(k_br, (4,), dtype=jnp.float32)
    w_con = 0.02 * jax.random.normal(k_wc, (dim, dim_hidden), dtype=jnp.float32)
    b_con = 0.01 * jax.random.normal(k_bc, (dim_hidden,), dtype=jnp.float32)

    fwd = jax.jit(ssl_head_forward, static_argnames=("batch_tile",))
    x_rot, x_contrastive, x_rec = fwd(x_out, w_rot, b_rot, w_con, b_con,
                                      batch_tile=2)
    jax.block_until_ready((x_rot, x_contrastive, x_rec))

    # Sanity check against a plain-JAX reference.
    r_rot, r_con, r_rec = _reference(x_out, w_rot, b_rot, w_con, b_con)
    assert x_rot.shape == (B, 4) and x_contrastive.shape == (B, dim_hidden)
    assert x_rec.shape == (B, dim, H, W, D)
    assert jnp.allclose(x_rot, r_rot, rtol=1e-3, atol=1e-3)
    assert jnp.allclose(x_contrastive, r_con, rtol=1e-3, atol=1e-3)
    assert jnp.allclose(x_rec, r_rec)

    print("KERNEL_OK")
</pallas_src>

<mosaic_0001>
module attributes {stable_mosaic.version = 11 : i64} {
  func.func @ssl_head_kernel(%arg0: i32, %arg1: memref<2x768x27xf32, #tpu.memory_space<vmem>>, %arg2: memref<1536x128xf32, #tpu.memory_space<vmem>>, %arg3: memref<1x128xf32, #tpu.memory_space<vmem>>, %arg4: memref<2x1x128xf32, #tpu.memory_space<vmem>>) attributes {dimension_semantics = [#tpu.dimension_semantics<parallel>], iteration_bounds = array<i64: 2>, scalar_prefetch = 0 : i64, scratch_operands = 0 : i64, tpu.core_type = #tpu.core_type<tc>, window_params = [{transform_indices = @transform_0, window_bounds = array<i64: 2, 768, 27>}, {pipeline_mode = #tpu.pipeline_mode<synchronous>, transform_indices = @transform_1, window_bounds = array<i64: 1536, 128>}, {pipeline_mode = #tpu.pipeline_mode<synchronous>, transform_indices = @transform_2, window_bounds = array<i64: 1, 128>}, {transform_indices = @transform_3, window_bounds = array<i64: 2, 1, 128>}]} {
    %c0 = arith.constant 0 : index
    %c0_0 = arith.constant 0 : index
    %c0_1 = arith.constant 0 : index
    %0 = vector.load %arg1[%c0, %c0_0, %c0_1] : memref<2x768x27xf32, #tpu.memory_space<vmem>>, vector<2x768x27xf32>
    %cst = arith.constant dense<0.000000e+00> : vector<2x768xf32>
    %1 = vector.multi_reduction <add>, %0, %cst [2] : vector<2x768x27xf32> to vector<2x768xf32>
    %2 = vector.extract_strided_slice %0 {offsets = [0, 0, 0], sizes = [2, 768, 14], strides = [1, 1, 1]} : vector<2x768x27xf32> to vector<2x768x14xf32>
    %cst_2 = arith.constant dense<0.000000e+00> : vector<2x768xf32>
    %3 = vector.multi_reduction <add>, %2, %cst_2 [2] : vector<2x768x14xf32> to vector<2x768xf32>
    %4 = vector.extract_strided_slice %0 {offsets = [0, 0, 0], sizes = [2, 768, 13], strides = [1, 1, 1]} : vector<2x768x27xf32> to vector<2x768x13xf32>
    %cst_3 = arith.constant dense<0.000000e+00> : vector<2x768xf32>
    %5 = vector.multi_reduction <add>, %4, %cst_3 [2] : vector<2x768x13xf32> to vector<2x768xf32>
    %cst_4 = arith.constant 0.0714285746 : f32
    %6 = vector.broadcast %cst_4 : f32 to vector<2x768xf32>
    %7 = arith.mulf %3, %6 : vector<2x768xf32>
    %8 = arith.subf %1, %5 : vector<2x768xf32>
    %cst_5 = arith.constant 0.0714285746 : f32
    %9 = vector.broadcast %cst_5 : f32 to vector<2x768xf32>
    %10 = arith.mulf %8, %9 : vector<2x768xf32>
    %11 = tpu.concatenate %7, %10 in 1 : vector<2x768xf32>, vector<2x768xf32> -> vector<2x1536xf32>
    %c0_6 = arith.constant 0 : index
    %c0_7 = arith.constant 0 : index
    %12 = vector.load %arg2[%c0_6, %c0_7] : memref<1536x128xf32, #tpu.memory_space<vmem>>, vector<1536x128xf32>
    %cst_8 = arith.constant dense<0.000000e+00> : vector<2x128xf32>
    %13 = tpu.matmul %11, %12, %cst_8 {dimension_numbers = #tpu.dot_dimension_numbers<[1], [0], [0], [1], [0, 0, 1, 1], [], []>} : vector<2x1536xf32>, vector<1536x128xf32>, vector<2x128xf32> -> vector<2x128xf32>
    %c0_9 = arith.constant 0 : index
    %c0_10 = arith.constant 0 : index
    %14 = vector.load %arg3[%c0_9, %c0_10] : memref<1x128xf32, #tpu.memory_space<vmem>>, vector<1x128xf32>
    %15 = vector.broadcast %14 : vector<1x128xf32> to vector<2x128xf32>
    %16 = arith.addf %13, %15 : vector<2x128xf32>
    %17 = vector.shape_cast %16 : vector<2x128xf32> to vector<2x1x128xf32>
    %c0_11 = arith.constant 0 : index
    %c0_12 = arith.constant 0 : index
    %c0_13 = arith.constant 0 : index
    %18 = vector.load %arg4[%c0_11, %c0_12, %c0_13] : memref<2x1x128xf32, #tpu.memory_space<vmem>>, vector<2x1x128xf32>
    tpu.vector_store %arg4[%c0_11, %c0_12, %c0_13], %17 {strides = array<i32>} : memref<2x1x128xf32, #tpu.memory_space<vmem>>, vector<2x1x128xf32>,
    return
  }
  func.func @transform_0(%arg0: i32) -> (i32, i32, i32) {
    %c0_i32 = arith.constant 0 : i32
    %c0_i32_0 = arith.constant 0 : i32
    %c0_i32_1 = arith.constant 0 : i32
    return %arg0, %c0_i32, %c0_i32_0 : i32, i32, i32
  }
  func.func @transform_1(%arg0: i32) -> (i32, i32) {
    %c0_i32 = arith.constant 0 : i32
    %c0_i32_0 = arith.constant 0 : i32
    %c0_i32_1 = arith.constant 0 : i32
    return %c0_i32, %c0_i32_0 : i32, i32
  }
  func.func @transform_2(%arg0: i32) -> (i32, i32) {
    %c0_i32 = arith.constant 0 : i32
    %c0_i32_0 = arith.constant 0 : i32
    %c0_i32_1 = arith.constant 0 : i32
    return %c0_i32, %c0_i32_0 : i32, i32
  }
  func.func @transform_3(%arg0: i32) -> (i32, i32, i32) {
    %c0_i32 = arith.constant 0 : i32
    %c0_i32_0 = arith.constant 0 : i32
    %c0_i32_1 = arith.constant 0 : i32
    return %arg0, %c0_i32, %c0_i32_0 : i32, i32, i32
  }
}

</mosaic_0001>

<llo_original>
// kernel: ssl_head_forward.1
$region0: #{ssl_head_forward.1}
  #allocation0 [shape = 'u32[]', space=smem, size = 0x4, offset = 0x4, fixed_abs, tag = 'smem constant byte address 0x4 - core index']
  #allocation1 [shape = 'u32[144,128]{1,0:T(1,128)}', space=vmem, size = 0x12000, scoped, tag = 'internal scratch']
  %s0 = inlined_call_operand.vmem [shape: f32[4,768,27], index: 0, kind: input, shape index: {}]
  %s1 = inlined_call_operand.vmem [shape: f32[1536,128], index: 1, kind: input, shape index: {}]
  %s2 = inlined_call_operand.vmem [shape: f32[1,128], index: 2, kind: input, shape index: {}]
  %s3 = inlined_call_operand.vmem [shape: f32[4,1,128], index: 3, kind: output, shape index: {}]
  %s4 = sld [smem:[#allocation0]]
  $region45: #{ssl_head_forward.1} parent=0
    _
  %s6 = ssub.s32 1, %s4
  %s7 = scalar_select 0, %s6, %s4
  loop: start=0, step=1, limit=4
  $region2: #{ssl_head_forward.1} parent=0 // loop_pre_header
    _
  $region3: #{ssl_head_forward.1} parent=0 // loop_header
    %s9 = sphi 0, %s13
    %p10 = scmp.ge.s32.totalorder %s9, 4
    %s19 = sphi 0, %s21
    %s22 = sphi 0, %s19
    %s23 = sphi 0, %s22
    %s39 = sphi 0, %s23
    %s43 = sphi 0, %s43
    %s45 = sphi 0, %s43
    %s46 = sphi 0, %s45
    %s60 = sphi 0, %s46
    %s64 = sphi 0, %s64
    %s66 = sphi 0, %s64
    %s67 = sphi 0, %s66
    %s81 = sphi 0, %s67
    %s87 = sphi 0, %s89
    %s90 = sphi 0, %s87
    %s91 = sphi 0, %s90
    %s107 = sphi 0, %s91
  $region4: #{ssl_head_forward.1} parent=0 // loop_header_branch
    %12 = sbr.rel (%p10) target = $region8
  $region5: #{ssl_head_forward.1} parent=0 // loop_body
    %s14 = ssub.s32 %s9, 1
    %s15 = ssub.s32 %s9, 2
    %s16 = sadd.s32 %s9, 1
    %s17 = ssub.s32 %s9, %s16
    %p18 = scmp.eq.s32.totalorder %s17, 0
    %s20 = sadd.s32 %s19, 1
    %s21 = scalar_select %p18, %s19, %s20
    %p24 = pneg %p18
    %p25 = scmp.eq.s32.totalorder %s9, 1
    %p26 = por %p24, %p25
    %p27 = scmp.ne.s32.totalorder %s19, %s22
    %p28 = scmp.eq.s32.totalorder %s9, 0
    %p29 = por %p27, %p28
    %p30 = scmp.ne.s32.totalorder %s19, %s22
    %p31 = scmp.eq.s32.totalorder %s14, 1
    %p32 = por %p30, %p31
    %p33 = scmp.ne.s32.totalorder %s22, %s23
    %p34 = scmp.eq.s32.totalorder %s14, 0
    %p35 = por %p33, %p34
    %p36 = scmp.ne.s32.totalorder %s22, %s23
    %p37 = scmp.eq.s32.totalorder %s15, 1
    %p38 = por %p36, %p37
    %p40 = scmp.ne.s32.totalorder %s23, %s39
    %p41 = scmp.eq.s32.totalorder %s15, 0
    %p42 = por %p40, %p41
    %s44 = sadd.s32 %s43, 1
    %p47 = scmp.eq.s32.totalorder %s9, 1
    %p48 = scmp.ne.s32.totalorder %s43, %s45
    %p49 = scmp.eq.s32.totalorder %s9, 0
    %p50 = por %p48, %p49
    %p51 = scmp.ne.s32.totalorder %s43, %s45
    %p52 = scmp.eq.s32.totalorder %s14, 1
    %p53 = por %p51, %p52
    %p54 = scmp.ne.s32.totalorder %s45, %s46
    %p55 = scmp.eq.s32.totalorder %s14, 0
    %p56 = por %p54, %p55
    %p57 = scmp.ne.s32.totalorder %s45, %s46
    %p58 = scmp.eq.s32.totalorder %s15, 1
    %p59 = por %p57, %p58
    %p61 = scmp.ne.s32.totalorder %s46, %s60
    %p62 = scmp.eq.s32.totalorder %s15, 0
    %p63 = por %p61, %p62
    %s65 = sadd.s32 %s64, 1
    %p68 = scmp.eq.s32.totalorder %s9, 1
    %p69 = scmp.ne.s32.totalorder %s64, %s66
    %p70 = scmp.eq.s32.totalorder %s9, 0
    %p71 = por %p69, %p70
    %p72 = scmp.ne.s32.totalorder %s64, %s66
    %p73 = scmp.eq.s32.totalorder %s14, 1
    %p74 = por %p72, %p73
    %p75 = scmp.ne.s32.totalorder %s66, %s67
    %p76 = scmp.eq.s32.totalorder %s14, 0
    %p77 = por %p75, %p76
    %p78 = scmp.ne.s32.totalorder %s66, %s67
    %p79 = scmp.eq.s32.totalorder %s15, 1
    %p80 = por %p78, %p79
    %p82 = scmp.ne.s32.totalorder %s67, %s81
    %p83 = scmp.eq.s32.totalorder %s15, 0
    %p84 = por %p82, %p83
    %s85 = ssub.s32 %s9, %s16
    %p86 = scmp.eq.s32.totalorder %s85, 0
    %s88 = sadd.s32 %s87, 1
    %s89 = scalar_select %p86, %s87, %s88
    %p92 = pneg %p86
    %p93 = scmp.eq.s32.totalorder %s9, 1
    %p94 = por %p92, %p93
    %p95 = scmp.ne.s32.totalorder %s87, %s90
    %p96 = scmp.eq.s32.totalorder %s9, 0
    %p97 = por %p95, %p96
    %p98 = scmp.ne.s32.totalorder %s87, %s90
    %p99 = scmp.eq.s32.totalorder %s14, 1
    %p100 = por %p98, %p99
    %p101 = scmp.ne.s32.totalorder %s90, %s91
    %p102 = scmp.eq.s32.totalorder %s14, 0
    %p103 = por %p101, %p102
    %p104 = scmp.ne.s32.totalorder %s90, %s91
    %p105 = scmp.eq.s32.totalorder %s15, 1
    %p106 = por %p104, %p105
    %p108 = scmp.ne.s32.totalorder %s91, %s107
    %p109 = scmp.eq.s32.totalorder %s15, 0
    %p110 = por %p108, %p109
    %p111 = scmp.le.s32.totalorder 1, %s9
    %p112 = scmp.lt.s32.totalorder %s9, 3
    %p113 = pnand %p111, %p112
    %p114 = pneg %p113
    // Predicated region
    $region9: #{ssl_head_forward.1} parent=5 // pred_check
      _
    $region10: #{ssl_head_forward.1} parent=5 // pred_check_branch
      %116 = sbr.rel (%p113) target = $region12
    $region11: #{ssl_head_forward.1} parent=5 // pred_region
      %s117 = ssub.s32 %s9, 1
      // Predicated region
      $region13: #{ssl_head_forward.1} parent=11 // pred_check
        %p118 = pneg %p56
      $region14: #{ssl_head_forward.1} parent=11 // pred_check_branch
        %120 = sbr.rel (%p118) target = $region16
      $region15: #{ssl_head_forward.1} parent=11 // pred_region
        _
      $region16: #{ssl_head_forward.1} parent=11 // pred_fallthru
        _
      // Predicated region
      $region17: #{ssl_head_forward.1} parent=11 // pred_check
        %p121 = pneg %p77
      $region18: #{ssl_head_forward.1} parent=11 // pred_check_branch
        %123 = sbr.rel (%p121) target = $region20
      $region19: #{ssl_head_forward.1} parent=11 // pred_region
        _
      $region20: #{ssl_head_forward.1} parent=11 // pred_fallthru
        _
    $region12: #{ssl_head_forward.1} parent=5 // pred_fallthru
      _
    %p124 = scmp.lt.s32.totalorder %s9, 2
    // Predicated region
    $region21: #{ssl_head_forward.1} parent=5 // pred_check
      %p125 = pneg %p124
    $region22: #{ssl_head_forward.1} parent=5 // pred_check_branch
      %127 = sbr.rel (%p125) target = $region24
    $region23: #{ssl_head_forward.1} parent=5 // pred_region
      // Predicated region
      $region25: #{ssl_head_forward.1} parent=23 // pred_check
        %p128 = pneg %p29
      $region26: #{ssl_head_forward.1} parent=23 // pred_check_branch
        %130 = sbr.rel (%p128) target = $region28
      $region27: #{ssl_head_forward.1} parent=23 // pred_region
        %s131 = smul.u32 2, %s9
        %p132 = scmp.lt.s32.totalorder %s131, 3
        %s133 = scalar_select %p132, %s131, 3
        %s134 = smul.addr %s133, 96
        %s135 = smul.addr %s134, 8
        %s136 = scalar_lea.vmem %s0, %s135
        %s137 = smul.u32 2, %s9
      $region28: #{ssl_head_forward.1} parent=23 // pred_fallthru
        _
    $region24: #{ssl_head_forward.1} parent=5 // pred_fallthru
      _
    %p138 = scmp.le.s32.totalorder 1, %s9
    %p139 = scmp.lt.s32.totalorder %s9, 3
    %p140 = pnand %p138, %p139
    %p141 = pneg %p140
    // Predicated region
    $region29: #{ssl_head_forward.1} parent=5 // pred_check
      _
    $region30: #{ssl_head_forward.1} parent=5 // pred_check_branch
      %143 = sbr.rel (%p140) target = $region32
    $region31: #{ssl_head_forward.1} parent=5 // pred_region
      %s144 = ssub.s32 %s9, 1
      %s145 = smul.u32 2, %s14
      %p146 = scmp.lt.s32.totalorder %s145, 3
      %s147 = scalar_select %p146, %s145, 3
      %s148 = smul.addr %s147, 96
      %s149 = smul.addr %s148, 8
      %s150 = scalar_lea.vmem %s0, %s149
      %p151 = pneg %p35
      %p152 = pneg %p32
      %p153 = pneg %p56
      %p154 = pneg %p53
      %p155 = pneg %p77
      %p156 = pneg %p74
      %p157 = pneg %p103
      %p158 = pneg %p100
      %s159 = smul.u32 2, %s14
      %p160 = scmp.lt.s32.totalorder %s159, 3
      %s161 = scalar_select %p160, %s159, 3
      %s162 = scalar_lea.vmem %s3, %s161
      %s163 = smul.u32 2, %s14
      %p164 = scmp.lt.s32.totalorder %s163, 3
      %s165 = scalar_select %p164, %s163, 3
      %s166 = smul.addr %s165, 96
      %s167 = smul.addr %s166, 8
      %s168 = scalar_lea.vmem %s0, %s167
      %s169 = smul.u32 2, %s14
      %s170 = smul.u32 2, %s14
      %p171 = scmp.lt.s32.totalorder %s170, 3
      %s172 = scalar_select %p171, %s170, 3
      %s173 = scalar_lea.vmem %s3, %s172
      %s174 = smul.u32 2, %s14
      %v175 = vld [vmem:[%s168] sm:$0xff]
      %v176 = vld [vmem:[%s168 + $0x8] sm:$0xff]
      %v177 = vld [vmem:[%s168 + $0x10] sm:$0xff]
      %v178 = vld [vmem:[%s168 + $0x18] sm:$0xff]
      %v179 = vld [vmem:[%s168 + $0x20] sm:$0xff]
      %v180 = vld [vmem:[%s168 + $0x28] sm:$0xff]
      %v181 = vld [vmem:[%s168 + $0x30] sm:$0xff]
      %v182 = vld [vmem:[%s168 + $0x38] sm:$0xff]
      %v183 = vld [vmem:[%s168 + $0x40] sm:$0xff]
      %v184 = vld [vmem:[%s168 + $0x48] sm:$0xff]
      %v185 = vld [vmem:[%s168 + $0x50] sm:$0xff]
      %v186 = vld [vmem:[%s168 + $0x58] sm:$0xff]
      %v187 = vld [vmem:[%s168 + $0x60] sm:$0xff]
      %v188 = vld [vmem:[%s168 + $0x68] sm:$0xff]
      %v189 = vld [vmem:[%s168 + $0x70] sm:$0xff]
      %v190 = vld [vmem:[%s168 + $0x78] sm:$0xff]
      %v191 = vld [vmem:[%s168 + $0x80] sm:$0xff]
      %v192 = vld [vmem:[%s168 + $0x88] sm:$0xff]
      %v193 = vld [vmem:[%s168 + $0x90] sm:$0xff]
      %v194 = vld [vmem:[%s168 + $0x98] sm:$0xff]
      %v195 = vld [vmem:[%s168 + $0xa0] sm:$0xff]
      %v196 = vld [vmem:[%s168 + $0xa8] sm:$0xff]
      %v197 = vld [vmem:[%s168 + $0xb0] sm:$0xff]
      %v198 = vld [vmem:[%s168 + $0xb8] sm:$0xff]
      %v199 = vld [vmem:[%s168 + $0xc0] sm:$0xff]
      %v200 = vld [vmem:[%s168 + $0xc8] sm:$0xff]
      %v201 = vld [vmem:[%s168 + $0xd0] sm:$0xff]
      %v202 = vld [vmem:[%s168 + $0xd8] sm:$0xff]
      %v203 = vld [vmem:[%s168 + $0xe0] sm:$0xff]
      %v204 = vld [vmem:[%s168 + $0xe8] sm:$0xff]
      %v205 = vld [vmem:[%s168 + $0xf0] sm:$0xff]
      %v206 = vld [vmem:[%s168 + $0xf8] sm:$0xff]
      %v207 = vld [vmem:[%s168 + $0x100] sm:$0xff]
      %v208 = vld [vmem:[%s168 + $0x108] sm:$0xff]
      %v209 = vld [vmem:[%s168 + $0x110] sm:$0xff]
      %v210 = vld [vmem:[%s168 + $0x118] sm:$0xff]
      %v211 = vld [vmem:[%s168 + $0x120] sm:$0xff]
      %v212 = vld [vmem:[%s168 + $0x128] sm:$0xff]
      %v213 = vld [vmem:[%s168 + $0x130] sm:$0xff]
      %v214 = vld [vmem:[%s168 + $0x138] sm:$0xff]
      %v215 = vld [vmem:[%s168 + $0x140] sm:$0xff]
      %v216 = vld [vmem:[%s168 + $0x148] sm:$0xff]
      %v217 = vld [vmem:[%s168 + $0x150] sm:$0xff]
      %v218 = vld [vmem:[%s168 + $0x158] sm:$0xff]
      %v219 = vld [vmem:[%s168 + $0x160] sm:$0xff]
      %v220 = vld [vmem:[%s168 + $0x168] sm:$0xff]
      %v221 = vld [vmem:[%s168 + $0x170] sm:$0xff]
      %v222 = vld [vmem:[%s168 + $0x178] sm:$0xff]
      %v223 = vld [vmem:[%s168 + $0x180] sm:$0xff]
      %v224 = vld [vmem:[%s168 + $0x188] sm:$0xff]
      %v225 = vld [vmem:[%s168 + $0x190] sm:$0xff]
      %v226 = vld [vmem:[%s168 + $0x198] sm:$0xff]
      %v227 = vld [vmem:[%s168 + $0x1a0] sm:$0xff]
      %v228 = vld [vmem:[%s168 + $0x1a8] sm:$0xff]
      %v229 = vld [vmem:[%s168 + $0x1b0] sm:$0xff]
      %v230 = vld [vmem:[%s168 + $0x1b8] sm:$0xff]
      %v231 = vld [vmem:[%s168 + $0x1c0] sm:$0xff]
      %v232 = vld [vmem:[%s168 + $0x1c8] sm:$0xff]
      %v233 = vld [vmem:[%s168 + $0x1d0] sm:$0xff]
      %v234 = vld [vmem:[%s168 + $0x1d8] sm:$0xff]
      %v235 = vld [vmem:[%s168 + $0x1e0] sm:$0xff]
      %v236 = vld [vmem:[%s168 + $0x1e8] sm:$0xff]
      %v237 = vld [vmem:[%s168 + $0x1f0] sm:$0xff]
      %v238 = vld [vmem:[%s168 + $0x1f8] sm:$0xff]
      %v239 = vld [vmem:[%s168 + $0x200] sm:$0xff]
      %v240 = vld [vmem:[%s168 + $0x208] sm:$0xff]
      %v241 = vld [vmem:[%s168 + $0x210] sm:$0xff]
      %v242 = vld [vmem:[%s168 + $0x218] sm:$0xff]
      %v243 = vld [vmem:[%s168 + $0x220] sm:$0xff]
      %v244 = vld [vmem:[%s168 + $0x228] sm:$0xff]
      %v245 = vld [vmem:[%s168 + $0x230] sm:$0xff]
      %v246 = vld [vmem:[%s168 + $0x238] sm:$0xff]
      %v247 = vld [vmem:[%s168 + $0x240] sm:$0xff]
      %v248 = vld [vmem:[%s168 + $0x248] sm:$0xff]
      %v249 = vld [vmem:[%s168 + $0x250] sm:$0xff]
      %v250 = vld [vmem:[%s168 + $0x258] sm:$0xff]
      %v251 = vld [vmem:[%s168 + $0x260] sm:$0xff]
      %v252 = vld [vmem:[%s168 + $0x268] sm:$0xff]
      %v253 = vld [vmem:[%s168 + $0x270] sm:$0xff]
      %v254 = vld [vmem:[%s168 + $0x278] sm:$0xff]
      %v255 = vld [vmem:[%s168 + $0x280] sm:$0xff]
      %v256 = vld [vmem:[%s168 + $0x288] sm:$0xff]
      %v257 = vld [vmem:[%s168 + $0x290] sm:$0xff]
      %v258 = vld [vmem:[%s168 + $0x298] sm:$0xff]
      %v259 = vld [vmem:[%s168 + $0x2a0] sm:$0xff]
      %v260 = vld [vmem:[%s168 + $0x2a8] sm:$0xff]
      %v261 = vld [vmem:[%s168 + $0x2b0] sm:$0xff]
      %v262 = vld [vmem:[%s168 + $0x2b8] sm:$0xff]
      %v263 = vld [vmem:[%s168 + $0x2c0] sm:$0xff]
      %v264 = vld [vmem:[%s168 + $0x2c8] sm:$0xff]
      %v265 = vld [vmem:[%s168 + $0x2d0] sm:$0xff]
      %v266 = vld [vmem:[%s168 + $0x2d8] sm:$0xff]
      %v267 = vld [vmem:[%s168 + $0x2e0] sm:$0xff]
      %v268 = vld [vmem:[%s168 + $0x2e8] sm:$0xff]
      %v269 = vld [vmem:[%s168 + $0x2f0] sm:$0xff]
      %v270 = vld [vmem:[%s168 + $0x2f8] sm:$0xff]
      %v271 = vld [vmem:[%s168 + $0x300] sm:$0xff]
      %v272 = vld [vmem:[%s168 + $0x308] sm:$0xff]
      %v273 = vld [vmem:[%s168 + $0x310] sm:$0xff]
      %v274 = vld [vmem:[%s168 + $0x318] sm:$0xff]
      %v275 = vld [vmem:[%s168 + $0x320] sm:$0xff]
      %v276 = vld [vmem:[%s168 + $0x328] sm:$0xff]
      %v277 = vld [vmem:[%s168 + $0x330] sm:$0xff]
      %v278 = vld [vmem:[%s168 + $0x338] sm:$0xff]
      %v279 = vld [vmem:[%s168 + $0x340] sm:$0xff]
      %v280 = vld [vmem:[%s168 + $0x348] sm:$0xff]
      %v281 = vld [vmem:[%s168 + $0x350] sm:$0xff]
      %v282 = vld [vmem:[%s168 + $0x358] sm:$0xff]
      %v283 = vld [vmem:[%s168 + $0x360] sm:$0xff]
      %v284 = vld [vmem:[%s168 + $0x368] sm:$0xff]
      %v285 = vld [vmem:[%s168 + $0x370] sm:$0xff]
      %v286 = vld [vmem:[%s168 + $0x378] sm:$0xff]
      %v287 = vld [vmem:[%s168 + $0x380] sm:$0xff]
      %v288 = vld [vmem:[%s168 + $0x388] sm:$0xff]
      %v289 = vld [vmem:[%s168 + $0x390] sm:$0xff]
      %v290 = vld [vmem:[%s168 + $0x398] sm:$0xff]
      %v291 = vld [vmem:[%s168 + $0x3a0] sm:$0xff]
      %v292 = vld [vmem:[%s168 + $0x3a8] sm:$0xff]
      %v293 = vld [vmem:[%s168 + $0x3b0] sm:$0xff]
      %v294 = vld [vmem:[%s168 + $0x3b8] sm:$0xff]
      %v295 = vld [vmem:[%s168 + $0x3c0] sm:$0xff]
      %v296 = vld [vmem:[%s168 + $0x3c8] sm:$0xff]
      %v297 = vld [vmem:[%s168 + $0x3d0] sm:$0xff]
      %v298 = vld [vmem:[%s168 + $0x3d8] sm:$0xff]
      %v299 = vld [vmem:[%s168 + $0x3e0] sm:$0xff]
      %v300 = vld [vmem:[%s168 + $0x3e8] sm:$0xff]
      %v301 = vld [vmem:[%s168 + $0x3f0] sm:$0xff]
      %v302 = vld [vmem:[%s168 + $0x3f8] sm:$0xff]
      %v303 = vld [vmem:[%s168 + $0x400] sm:$0xff]
      %v304 = vld [vmem:[%s168 + $0x408] sm:$0xff]
      %v305 = vld [vmem:[%s168 + $0x410] sm:$0xff]
      %v306 = vld [vmem:[%s168 + $0x418] sm:$0xff]
      %v307 = vld [vmem:[%s168 + $0x420] sm:$0xff]
      %v308 = vld [vmem:[%s168 + $0x428] sm:$0xff]
      %v309 = vld [vmem:[%s168 + $0x430] sm:$0xff]
      %v310 = vld [vmem:[%s168 + $0x438] sm:$0xff]
      %v311 = vld [vmem:[%s168 + $0x440] sm:$0xff]
      %v312 = vld [vmem:[%s168 + $0x448] sm:$0xff]
      %v313 = vld [vmem:[%s168 + $0x450] sm:$0xff]
      %v314 = vld [vmem:[%s168 + $0x458] sm:$0xff]
      %v315 = vld [vmem:[%s168 + $0x460] sm:$0xff]
      %v316 = vld [vmem:[%s168 + $0x468] sm:$0xff]
      %v317 = vld [vmem:[%s168 + $0x470] sm:$0xff]
      %v318 = vld [vmem:[%s168 + $0x478] sm:$0xff]
      %v319 = vld [vmem:[%s168 + $0x480] sm:$0xff]
      %v320 = vld [vmem:[%s168 + $0x488] sm:$0xff]
      %v321 = vld [vmem:[%s168 + $0x490] sm:$0xff]
      %v322 = vld [vmem:[%s168 + $0x498] sm:$0xff]
      %v323 = vld [vmem:[%s168 + $0x4a0] sm:$0xff]
      %v324 = vld [vmem:[%s168 + $0x4a8] sm:$0xff]
      %v325 = vld [vmem:[%s168 + $0x4b0] sm:$0xff]
      %v326 = vld [vmem:[%s168 + $0x4b8] sm:$0xff]
      %v327 = vld [vmem:[%s168 + $0x4c0] sm:$0xff]
      %v328 = vld [vmem:[%s168 + $0x4c8] sm:$0xff]
      %v329 = vld [vmem:[%s168 + $0x4d0] sm:$0xff]
      %v330 = vld [vmem:[%s168 + $0x4d8] sm:$0xff]
      %v331 = vld [vmem:[%s168 + $0x4e0] sm:$0xff]
      %v332 = vld [vmem:[%s168 + $0x4e8] sm:$0xff]
      %v333 = vld [vmem:[%s168 + $0x4f0] sm:$0xff]
      %v334 = vld [vmem:[%s168 + $0x4f8] sm:$0xff]
      %v335 = vld [vmem:[%s168 + $0x500] sm:$0xff]
      %v336 = vld [vmem:[%s168 + $0x508] sm:$0xff]
      %v337 = vld [vmem:[%s168 + $0x510] sm:$0xff]
      %v338 = vld [vmem:[%s168 + $0x518] sm:$0xff]
      %v339 = vld [vmem:[%s168 + $0x520] sm:$0xff]
      %v340 = vld [vmem:[%s168 + $0x528] sm:$0xff]
      %v341 = vld [vmem:[%s168 + $0x530] sm:$0xff]
      %v342 = vld [vmem:[%s168 + $0x538] sm:$0xff]
      %v343 = vld [vmem:[%s168 + $0x540] sm:$0xff]
      %v344 = vld [vmem:[%s168 + $0x548] sm:$0xff]
      %v345 = vld [vmem:[%s168 + $0x550] sm:$0xff]
      %v346 = vld [vmem:[%s168 + $0x558] sm:$0xff]
      %v347 = vld [vmem:[%s168 + $0x560] sm:$0xff]
      %v348 = vld [vmem:[%s168 + $0x568] sm:$0xff]
      %v349 = vld [vmem:[%s168 + $0x570] sm:$0xff]
      %v350 = vld [vmem:[%s168 + $0x578] sm:$0xff]
      %v351 = vld [vmem:[%s168 + $0x580] sm:$0xff]
      %v352 = vld [vmem:[%s168 + $0x588] sm:$0xff]
      %v353 = vld [vmem:[%s168 + $0x590] sm:$0xff]
      %v354 = vld [vmem:[%s168 + $0x598] sm:$0xff]
      %v355 = vld [vmem:[%s168 + $0x5a0] sm:$0xff]
      %v356 = vld [vmem:[%s168 + $0x5a8] sm:$0xff]
      %v357 = vld [vmem:[%s168 + $0x5b0] sm:$0xff]
      %v358 = vld [vmem:[%s168 + $0x5b8] sm:$0xff]
      %v359 = vld [vmem:[%s168 + $0x5c0] sm:$0xff]
      %v360 = vld [vmem:[%s168 + $0x5c8] sm:$0xff]
      %v361 = vld [vmem:[%s168 + $0x5d0] sm:$0xff]
      %v362 = vld [vmem:[%s168 + $0x5d8] sm:$0xff]
      %v363 = vld [vmem:[%s168 + $0x5e0] sm:$0xff]
      %v364 = vld [vmem:[%s168 + $0x5e8] sm:$0xff]
      %v365 = vld [vmem:[%s168 + $0x5f0] sm:$0xff]
      %v366 = vld [vmem:[%s168 + $0x5f8] sm:$0xff]
      %vm367 = vcmask 220160
      %v368 = vsel %vm367, %v175, 0.0
      %369 = vadd.xlane.f32.xlu0 %v368
      %v370 = vpop.xlane.xlu0 %369
      %v371 = vsel %vm367, %v176, 0.0
      %372 = vadd.xlane.f32.xlu0 %v371
      %v373 = vpop.xlane.xlu0 %372
      %v374 = vsel %vm367, %v177, 0.0
      %375 = vadd.xlane.f32.xlu0 %v374
      %v376 = vpop.xlane.xlu0 %375
      %v377 = vsel %vm367, %v178, 0.0
      %378 = vadd.xlane.f32.xlu0 %v377
      %v379 = vpop.xlane.xlu0 %378
      %v380 = vsel %vm367, %v179, 0.0
      %381 = vadd.xlane.f32.xlu0 %v380
      %v382 = vpop.xlane.xlu0 %381
      %v383 = vsel %vm367, %v180, 0.0
      %384 = vadd.xlane.f32.xlu0 %v383
      %v385 = vpop.xlane.xlu0 %384
      %v386 = vsel %vm367, %v181, 0.0
      %387 = vadd.xlane.f32.xlu0 %v386
      %v388 = vpop.xlane.xlu0 %387
      %v389 = vsel %vm367, %v182, 0.0
      %390 = vadd.xlane.f32.xlu0 %v389
      %v391 = vpop.xlane.xlu0 %390
      %v392 = vsel %vm367, %v183, 0.0
      %393 = vadd.xlane.f32.xlu0 %v392
      %v394 = vpop.xlane.xlu0 %393
      %v395 = vsel %vm367, %v184, 0.0
      %396 = vadd.xlane.f32.xlu0 %v395
      %v397 = vpop.xlane.xlu0 %396
      %v398 = vsel %vm367, %v185, 0.0
      %399 = vadd.xlane.f32.xlu0 %v398
      %v400 = vpop.xlane.xlu0 %399
      %v401 = vsel %vm367, %v186, 0.0
      %402 = vadd.xlane.f32.xlu0 %v401
      %v403 = vpop.xlane.xlu0 %402
      %v404 = vsel %vm367, %v187, 0.0
      %405 = vadd.xlane.f32.xlu0 %v404
      %v406 = vpop.xlane.xlu0 %405
      %v407 = vsel %vm367, %v188, 0.0
      %408 = vadd.xlane.f32.xlu0 %v407
      %v409 = vpop.xlane.xlu0 %408
      %v410 = vsel %vm367, %v189, 0.0
      %411 = vadd.xlane.f32.xlu0 %v410
      %v412 = vpop.xlane.xlu0 %411
      %v413 = vsel %vm367, %v190, 0.0
      %414 = vadd.xlane.f32.xlu0 %v413
      %v415 = vpop.xlane.xlu0 %414
      %v416 = vsel %vm367, %v191, 0.0
      %417 = vadd.xlane.f32.xlu0 %v416
      %v418 = vpop.xlane.xlu0 %417
      %v419 = vsel %vm367, %v192, 0.0
      %420 = vadd.xlane.f32.xlu0 %v419
      %v421 = vpop.xlane.xlu0 %420
      %v422 = vsel %vm367, %v193, 0.0
      %423 = vadd.xlane.f32.xlu0 %v422
      %v424 = vpop.xlane.xlu0 %423
      %v425 = vsel %vm367, %v194, 0.0
      %426 = vadd.xlane.f32.xlu0 %v425
      %v427 = vpop.xlane.xlu0 %426
      %v428 = vsel %vm367, %v195, 0.0
      %429 = vadd.xlane.f32.xlu0 %v428
      %v430 = vpop.xlane.xlu0 %429
      %v431 = vsel %vm367, %v196, 0.0
      %432 = vadd.xlane.f32.xlu0 %v431
      %v433 = vpop.xlane.xlu0 %432
      %v434 = vsel %vm367, %v197, 0.0
      %435 = vadd.xlane.f32.xlu0 %v434
      %v436 = vpop.xlane.xlu0 %435
      %v437 = vsel %vm367, %v198, 0.0
      %438 = vadd.xlane.f32.xlu0 %v437
      %v439 = vpop.xlane.xlu0 %438
      %v440 = vsel %vm367, %v199, 0.0
      %441 = vadd.xlane.f32.xlu0 %v440
      %v442 = vpop.xlane.xlu0 %441
      %v443 = vsel %vm367, %v200, 0.0
      %444 = vadd.xlane.f32.xlu0 %v443
      %v445 = vpop.xlane.xlu0 %444
      %v446 = vsel %vm367, %v201, 0.0
      %447 = vadd.xlane.f32.xlu0 %v446
      %v448 = vpop.xlane.xlu0 %447
      %v449 = vsel %vm367, %v202, 0.0
      %450 = vadd.xlane.f32.xlu0 %v449
      %v451 = vpop.xlane.xlu0 %450
      %v452 = vsel %vm367, %v203, 0.0
      %453 = vadd.xlane.f32.xlu0 %v452
      %v454 = vpop.xlane.xlu0 %453
      %v455 = vsel %vm367, %v204, 0.0
      %456 = vadd.xlane.f32.xlu0 %v455
      %v457 = vpop.xlane.xlu0 %456
      %v458 = vsel %vm367, %v205, 0.0
      %459 = vadd.xlane.f32.xlu0 %v458
      %v460 = vpop.xlane.xlu0 %459
      %v461 = vsel %vm367, %v206, 0.0
      %462 = vadd.xlane.f32.xlu0 %v461
      %v463 = vpop.xlane.xlu0 %462
      %v464 = vsel %vm367, %v207, 0.0
      %465 = vadd.xlane.f32.xlu0 %v464
      %v466 = vpop.xlane.xlu0 %465
      %v467 = vsel %vm367, %v208, 0.0
      %468 = vadd.xlane.f32.xlu0 %v467
      %v469 = vpop.xlane.xlu0 %468
      %v470 = vsel %vm367, %v209, 0.0
      %471 = vadd.xlane.f32.xlu0 %v470
      %v472 = vpop.xlane.xlu0 %471
      %v473 = vsel %vm367, %v210, 0.0
      %474 = vadd.xlane.f32.xlu0 %v473
      %v475 = vpop.xlane.xlu0 %474
      %v476 = vsel %vm367, %v211, 0.0
      %477 = vadd.xlane.f32.xlu0 %v476
      %v478 = vpop.xlane.xlu0 %477
      %v479 = vsel %vm367, %v212, 0.0
      %480 = vadd.xlane.f32.xlu0 %v479
      %v481 = vpop.xlane.xlu0 %480
      %v482 = vsel %vm367, %v213, 0.0
      %483 = vadd.xlane.f32.xlu0 %v482
      %v484 = vpop.xlane.xlu0 %483
      %v485 = vsel %vm367, %v214, 0.0
      %486 = vadd.xlane.f32.xlu0 %v485
      %v487 = vpop.xlane.xlu0 %486
      %v488 = vsel %vm367, %v215, 0.0
      %489 = vadd.xlane.f32.xlu0 %v488
      %v490 = vpop.xlane.xlu0 %489
      %v491 = vsel %vm367, %v216, 0.0
      %492 = vadd.xlane.f32.xlu0 %v491
      %v493 = vpop.xlane.xlu0 %492
      %v494 = vsel %vm367, %v217, 0.0
      %495 = vadd.xlane.f32.xlu0 %v494
      %v496 = vpop.xlane.xlu0 %495
      %v497 = vsel %vm367, %v218, 0.0
      %498 = vadd.xlane.f32.xlu0 %v497
      %v499 = vpop.xlane.xlu0 %498
      %v500 = vsel %vm367, %v219, 0.0
      %501 = vadd.xlane.f32.xlu0 %v500
      %v502 = vpop.xlane.xlu0 %501
      %v503 = vsel %vm367, %v220, 0.0
      %504 = vadd.xlane.f32.xlu0 %v503
      %v505 = vpop.xlane.xlu0 %504
      %v506 = vsel %vm367, %v221, 0.0
      %507 = vadd.xlane.f32.xlu0 %v506
      %v508 = vpop.xlane.xlu0 %507
      %v509 = vsel %vm367, %v222, 0.0
      %510 = vadd.xlane.f32.xlu0 %v509
      %v511 = vpop.xlane.xlu0 %510
      %v512 = vsel %vm367, %v223, 0.0
      %513 = vadd.xlane.f32.xlu0 %v512
      %v514 = vpop.xlane.xlu0 %513
      %v515 = vsel %vm367, %v224, 0.0
      %516 = vadd.xlane.f32.xlu0 %v515
      %v517 = vpop.xlane.xlu0 %516
      %v518 = vsel %vm367, %v225, 0.0
      %519 = vadd.xlane.f32.xlu0 %v518
      %v520 = vpop.xlane.xlu0 %519
      %v521 = vsel %vm367, %v226, 0.0
      %522 = vadd.xlane.f32.xlu0 %v521
      %v523 = vpop.xlane.xlu0 %522
      %v524 = vsel %vm367, %v227, 0.0
      %525 = vadd.xlane.f32.xlu0 %v524
      %v526 = vpop.xlane.xlu0 %525
      %v527 = vsel %vm367, %v228, 0.0
      %528 = vadd.xlane.f32.xlu0 %v527
      %v529 = vpop.xlane.xlu0 %528
      %v530 = vsel %vm367, %v229, 0.0
      %531 = vadd.xlane.f32.xlu0 %v530
      %v532 = vpop.xlane.xlu0 %531
      %v533 = vsel %vm367, %v230, 0.0
      %534 = vadd.xlane.f32.xlu0 %v533
      %v535 = vpop.xlane.xlu0 %534
      %v536 = vsel %vm367, %v231, 0.0
      %537 = vadd.xlane.f32.xlu0 %v536
      %v538 = vpop.xlane.xlu0 %537
      %v539 = vsel %vm367, %v232, 0.0
      %540 = vadd.xlane.f32.xlu0 %v539
      %v541 = vpop.xlane.xlu0 %540
      %v542 = vsel %vm367, %v233, 0.0
      %543 = vadd.xlane.f32.xlu0 %v542
      %v544 = vpop.xlane.xlu0 %543
      %v545 = vsel %vm367, %v234, 0.0
      %546 = vadd.xlane.f32.xlu0 %v545
      %v547 = vpop.xlane.xlu0 %546
      %v548 = vsel %vm367, %v235, 0.0
      %549 = vadd.xlane.f32.xlu0 %v548
      %v550 = vpop.xlane.xlu0 %549
      %v551 = vsel %vm367, %v236, 0.0
      %552 = vadd.xlane.f32.xlu0 %v551
      %v553 = vpop.xlane.xlu0 %552
      %v554 = vsel %vm367, %v237, 0.0
      %555 = vadd.xlane.f32.xlu0 %v554
      %v556 = vpop.xlane.xlu0 %555
      %v557 = vsel %vm367, %v238, 0.0
      %558 = vadd.xlane.f32.xlu0 %v557
      %v559 = vpop.xlane.xlu0 %558
      %v560 = vsel %vm367, %v239, 0.0
      %561 = vadd.xlane.f32.xlu0 %v560
      %v562 = vpop.xlane.xlu0 %561
      %v563 = vsel %vm367, %v240, 0.0
      %564 = vadd.xlane.f32.xlu0 %v563
      %v565 = vpop.xlane.xlu0 %564
      %v566 = vsel %vm367, %v241, 0.0
      %567 = vadd.xlane.f32.xlu0 %v566
      %v568 = vpop.xlane.xlu0 %567
      %v569 = vsel %vm367, %v242, 0.0
      %570 = vadd.xlane.f32.xlu0 %v569
      %v571 = vpop.xlane.xlu0 %570
      %v572 = vsel %vm367, %v243, 0.0
      %573 = vadd.xlane.f32.xlu0 %v572
      %v574 = vpop.xlane.xlu0 %573
      %v575 = vsel %vm367, %v244, 0.0
      %576 = vadd.xlane.f32.xlu0 %v575
      %v577 = vpop.xlane.xlu0 %576
      %v578 = vsel %vm367, %v245, 0.0
      %579 = vadd.xlane.f32.xlu0 %v578
      %v580 = vpop.xlane.xlu0 %579
      %v581 = vsel %vm367, %v246, 0.0
      %582 = vadd.xlane.f32.xlu0 %v581
      %v583 = vpop.xlane.xlu0 %582
      %v584 = vsel %vm367, %v247, 0.0
      %585 = vadd.xlane.f32.xlu0 %v584
      %v586 = vpop.xlane.xlu0 %585
      %v587 = vsel %vm367, %v248, 0.0
      %588 = vadd.xlane.f32.xlu0 %v587
      %v589 = vpop.xlane.xlu0 %588
      %v590 = vsel %vm367, %v249, 0.0
      %591 = vadd.xlane.f32.xlu0 %v590
      %v592 = vpop.xlane.xlu0 %591
      %v593 = vsel %vm367, %v250, 0.0
      %594 = vadd.xlane.f32.xlu0 %v593
      %v595 = vpop.xlane.xlu0 %594
      %v596 = vsel %vm367, %v251, 0.0
      %597 = vadd.xlane.f32.xlu0 %v596
      %v598 = vpop.xlane.xlu0 %597
      %v599 = vsel %vm367, %v252, 0.0
      %600 = vadd.xlane.f32.xlu0 %v599
      %v601 = vpop.xlane.xlu0 %600
      %v602 = vsel %vm367, %v253, 0.0
      %603 = vadd.xlane.f32.xlu0 %v602
      %v604 = vpop.xlane.xlu0 %603
      %v605 = vsel %vm367, %v254, 0.0
      %606 = vadd.xlane.f32.xlu0 %v605
      %v607 = vpop.xlane.xlu0 %606
      %v608 = vsel %vm367, %v255, 0.0
      %609 = vadd.xlane.f32.xlu0 %v608
      %v610 = vpop.xlane.xlu0 %609
      %v611 = vsel %vm367, %v256, 0.0
      %612 = vadd.xlane.f32.xlu0 %v611
      %v613 = vpop.xlane.xlu0 %612
      %v614 = vsel %vm367, %v257, 0.0
      %615 = vadd.xlane.f32.xlu0 %v614
      %v616 = vpop.xlane.xlu0 %615
      %v617 = vsel %vm367, %v258, 0.0
      %618 = vadd.xlane.f32.xlu0 %v617
      %v619 = vpop.xlane.xlu0 %618
      %v620 = vsel %vm367, %v259, 0.0
      %621 = vadd.xlane.f32.xlu0 %v620
      %v622 = vpop.xlane.xlu0 %621
      %v623 = vsel %vm367, %v260, 0.0
      %624 = vadd.xlane.f32.xlu0 %v623
      %v625 = vpop.xlane.xlu0 %624
      %v626 = vsel %vm367, %v261, 0.0
      %627 = vadd.xlane.f32.xlu0 %v626
      %v628 = vpop.xlane.xlu0 %627
      %v629 = vsel %vm367, %v262, 0.0
      %630 = vadd.xlane.f32.xlu0 %v629
      %v631 = vpop.xlane.xlu0 %630
      %v632 = vsel %vm367, %v263, 0.0
      %633 = vadd.xlane.f32.xlu0 %v632
      %v634 = vpop.xlane.xlu0 %633
      %v635 = vsel %vm367, %v264, 0.0
      %636 = vadd.xlane.f32.xlu0 %v635
      %v637 = vpop.xlane.xlu0 %636
      %v638 = vsel %vm367, %v265, 0.0
      %639 = vadd.xlane.f32.xlu0 %v638
      %v640 = vpop.xlane.xlu0 %639
      %v641 = vsel %vm367, %v266, 0.0
      %642 = vadd.xlane.f32.xlu0 %v641
      %v643 = vpop.xlane.xlu0 %642
      %v644 = vsel %vm367, %v267, 0.0
      %645 = vadd.xlane.f32.xlu0 %v644
      %v646 = vpop.xlane.xlu0 %645
      %v647 = vsel %vm367, %v268, 0.0
      %648 = vadd.xlane.f32.xlu0 %v647
      %v649 = vpop.xlane.xlu0 %648
      %v650 = vsel %vm367, %v269, 0.0
      %651 = vadd.xlane.f32.xlu0 %v650
      %v652 = vpop.xlane.xlu0 %651
      %v653 = vsel %vm367, %v270, 0.0
      %654 = vadd.xlane.f32.xlu0 %v653
      %v655 = vpop.xlane.xlu0 %654
      %v656 = vsel %vm367, %v271, 0.0
      %657 = vadd.xlane.f32.xlu0 %v656
      %v658 = vpop.xlane.xlu0 %657
      %v659 = vsel %vm367, %v272, 0.0
      %660 = vadd.xlane.f32.xlu0 %v659
      %v661 = vpop.xlane.xlu0 %660
      %v662 = vsel %vm367, %v273, 0.0
      %663 = vadd.xlane.f32.xlu0 %v662
      %v664 = vpop.xlane.xlu0 %663
      %v665 = vsel %vm367, %v274, 0.0
      %666 = vadd.xlane.f32.xlu0 %v665
      %v667 = vpop.xlane.xlu0 %666
      %v668 = vsel %vm367, %v275, 0.0
      %669 = vadd.xlane.f32.xlu0 %v668
      %v670 = vpop.xlane.xlu0 %669
      %v671 = vsel %vm367, %v276, 0.0
      %672 = vadd.xlane.f32.xlu0 %v671
      %v673 = vpop.xlane.xlu0 %672
      %v674 = vsel %vm367, %v277, 0.0
      %675 = vadd.xlane.f32.xlu0 %v674
      %v676 = vpop.xlane.xlu0 %675
      %v677 = vsel %vm367, %v278, 0.0
      %678 = vadd.xlane.f32.xlu0 %v677
      %v679 = vpop.xlane.xlu0 %678
      %v680 = vsel %vm367, %v279, 0.0
      %681 = vadd.xlane.f32.xlu0 %v680
      %v682 = vpop.xlane.xlu0 %681
      %v683 = vsel %vm367, %v280, 0.0
      %684 = vadd.xlane.f32.xlu0 %v683
      %v685 = vpop.xlane.xlu0 %684
      %v686 = vsel %vm367, %v281, 0.0
      %687 = vadd.xlane.f32.xlu0 %v686
      %v688 = vpop.xlane.xlu0 %687
      %v689 = vsel %vm367, %v282, 0.0
      %690 = vadd.xlane.f32.xlu0 %v689
      %v691 = vpop.xlane.xlu0 %690
      %v692 = vsel %vm367, %v283, 0.0
      %693 = vadd.xlane.f32.xlu0 %v692
      %v694 = vpop.xlane.xlu0 %693
      %v695 = vsel %vm367, %v284, 0.0
      %696 = vadd.xlane.f32.xlu0 %v695
      %v697 = vpop.xlane.xlu0 %696
      %v698 = vsel %vm367, %v285, 0.0
      %699 = vadd.xlane.f32.xlu0 %v698
      %v700 = vpop.xlane.xlu0 %699
      %v701 = vsel %vm367, %v286, 0.0
      %702 = vadd.xlane.f32.xlu0 %v701
      %v703 = vpop.xlane.xlu0 %702
      %v704 = vsel %vm367, %v287, 0.0
      %705 = vadd.xlane.f32.xlu0 %v704
      %v706 = vpop.xlane.xlu0 %705
      %v707 = vsel %vm367, %v288, 0.0
      %708 = vadd.xlane.f32.xlu0 %v707
      %v709 = vpop.xlane.xlu0 %708
      %v710 = vsel %vm367, %v289, 0.0
      %711 = vadd.xlane.f32.xlu0 %v710
      %v712 = vpop.xlane.xlu0 %711
      %v713 = vsel %vm367, %v290, 0.0
      %714 = vadd.xlane.f32.xlu0 %v713
      %v715 = vpop.xlane.xlu0 %714
      %v716 = vsel %vm367, %v291, 0.0
      %717 = vadd.xlane.f32.xlu0 %v716
      %v718 = vpop.xlane.xlu0 %717
      %v719 = vsel %vm367, %v292, 0.0
      %720 = vadd.xlane.f32.xlu0 %v719
      %v721 = vpop.xlane.xlu0 %720
      %v722 = vsel %vm367, %v293, 0.0
      %723 = vadd.xlane.f32.xlu0 %v722
      %v724 = vpop.xlane.xlu0 %723
      %v725 = vsel %vm367, %v294, 0.0
      %726 = vadd.xlane.f32.xlu0 %v725
      %v727 = vpop.xlane.xlu0 %726
      %v728 = vsel %vm367, %v295, 0.0
      %729 = vadd.xlane.f32.xlu0 %v728
      %v730 = vpop.xlane.xlu0 %729
      %v731 = vsel %vm367, %v296, 0.0
      %732 = vadd.xlane.f32.xlu0 %v731
      %v733 = vpop.xlane.xlu0 %732
      %v734 = vsel %vm367, %v297, 0.0
      %735 = vadd.xlane.f32.xlu0 %v734
      %v736 = vpop.xlane.xlu0 %735
      %v737 = vsel %vm367, %v298, 0.0
      %738 = vadd.xlane.f32.xlu0 %v737
      %v739 = vpop.xlane.xlu0 %738
      %v740 = vsel %vm367, %v299, 0.0
      %741 = vadd.xlane.f32.xlu0 %v740
      %v742 = vpop.xlane.xlu0 %741
      %v743 = vsel %vm367, %v300, 0.0
      %744 = vadd.xlane.f32.xlu0 %v743
      %v745 = vpop.xlane.xlu0 %744
      %v746 = vsel %vm367, %v301, 0.0
      %747 = vadd.xlane.f32.xlu0 %v746
      %v748 = vpop.xlane.xlu0 %747
      %v749 = vsel %vm367, %v302, 0.0
      %750 = vadd.xlane.f32.xlu0 %v749
      %v751 = vpop.xlane.xlu0 %750
      %v752 = vsel %vm367, %v303, 0.0
      %753 = vadd.xlane.f32.xlu0 %v752
      %v754 = vpop.xlane.xlu0 %753
      %v755 = vsel %vm367, %v304, 0.0
      %756 = vadd.xlane.f32.xlu0 %v755
      %v757 = vpop.xlane.xlu0 %756
      %v758 = vsel %vm367, %v305, 0.0
      %759 = vadd.xlane.f32.xlu0 %v758
      %v760 = vpop.xlane.xlu0 %759
      %v761 = vsel %vm367, %v306, 0.0
      %762 = vadd.xlane.f32.xlu0 %v761
      %v763 = vpop.xlane.xlu0 %762
      %v764 = vsel %vm367, %v307, 0.0
      %765 = vadd.xlane.f32.xlu0 %v764
      %v766 = vpop.xlane.xlu0 %765
      %v767 = vsel %vm367, %v308, 0.0
      %768 = vadd.xlane.f32.xlu0 %v767
      %v769 = vpop.xlane.xlu0 %768
      %v770 = vsel %vm367, %v309, 0.0
      %771 = vadd.xlane.f32.xlu0 %v770
      %v772 = vpop.xlane.xlu0 %771
      %v773 = vsel %vm367, %v310, 0.0
      %774 = vadd.xlane.f32.xlu0 %v773
      %v775 = vpop.xlane.xlu0 %774
      %v776 = vsel %vm367, %v311, 0.0
      %777 = vadd.xlane.f32.xlu0 %v776
      %v778 = vpop.xlane.xlu0 %777
      %v779 = vsel %vm367, %v312, 0.0
      %780 = vadd.xlane.f32.xlu0 %v779
      %v781 = vpop.xlane.xlu0 %780
      %v782 = vsel %vm367, %v313, 0.0
      %783 = vadd.xlane.f32.xlu0 %v782
      %v784 = vpop.xlane.xlu0 %783
      %v785 = vsel %vm367, %v314, 0.0
      %786 = vadd.xlane.f32.xlu0 %v785
      %v787 = vpop.xlane.xlu0 %786
      %v788 = vsel %vm367, %v315, 0.0
      %789 = vadd.xlane.f32.xlu0 %v788
      %v790 = vpop.xlane.xlu0 %789
      %v791 = vsel %vm367, %v316, 0.0
      %792 = vadd.xlane.f32.xlu0 %v791
      %v793 = vpop.xlane.xlu0 %792
      %v794 = vsel %vm367, %v317, 0.0
      %795 = vadd.xlane.f32.xlu0 %v794
      %v796 = vpop.xlane.xlu0 %795
      %v797 = vsel %vm367, %v318, 0.0
      %798 = vadd.xlane.f32.xlu0 %v797
      %v799 = vpop.xlane.xlu0 %798
      %v800 = vsel %vm367, %v319, 0.0
      %801 = vadd.xlane.f32.xlu0 %v800
      %v802 = vpop.xlane.xlu0 %801
      %v803 = vsel %vm367, %v320, 0.0
      %804 = vadd.xlane.f32.xlu0 %v803
      %v805 = vpop.xlane.xlu0 %804
      %v806 = vsel %vm367, %v321, 0.0
      %807 = vadd.xlane.f32.xlu0 %v806
      %v808 = vpop.xlane.xlu0 %807
      %v809 = vsel %vm367, %v322, 0.0
      %810 = vadd.xlane.f32.xlu0 %v809
      %v811 = vpop.xlane.xlu0 %810
      %v812 = vsel %vm367, %v323, 0.0
      %813 = vadd.xlane.f32.xlu0 %v812
      %v814 = vpop.xlane.xlu0 %813
      %v815 = vsel %vm367, %v324, 0.0
      %816 = vadd.xlane.f32.xlu0 %v815
      %v817 = vpop.xlane.xlu0 %816
      %v818 = vsel %vm367, %v325, 0.0
      %819 = vadd.xlane.f32.xlu0 %v818
      %v820 = vpop.xlane.xlu0 %819
      %v821 = vsel %vm367, %v326, 0.0
      %822 = vadd.xlane.f32.xlu0 %v821
      %v823 = vpop.xlane.xlu0 %822
      %v824 = vsel %vm367, %v327, 0.0
      %825 = vadd.xlane.f32.xlu0 %v824
      %v826 = vpop.xlane.xlu0 %825
      %v827 = vsel %vm367, %v328, 0.0
      %828 = vadd.xlane.f32.xlu0 %v827
      %v829 = vpop.xlane.xlu0 %828
      %v830 = vsel %vm367, %v329, 0.0
      %831 = vadd.xlane.f32.xlu0 %v830
      %v832 = vpop.xlane.xlu0 %831
      %v833 = vsel %vm367, %v330, 0.0
      %834 = vadd.xlane.f32.xlu0 %v833
      %v835 = vpop.xlane.xlu0 %834
      %v836 = vsel %vm367, %v331, 0.0
      %837 = vadd.xlane.f32.xlu0 %v836
      %v838 = vpop.xlane.xlu0 %837
      %v839 = vsel %vm367, %v332, 0.0
      %840 = vadd.xlane.f32.xlu0 %v839
      %v841 = vpop.xlane.xlu0 %840
      %v842 = vsel %vm367, %v333, 0.0
      %843 = vadd.xlane.f32.xlu0 %v842
      %v844 = vpop.xlane.xlu0 %843
      %v845 = vsel %vm367, %v334, 0.0
      %846 = vadd.xlane.f32.xlu0 %v845
      %v847 = vpop.xlane.xlu0 %846
      %v848 = vsel %vm367, %v335, 0.0
      %849 = vadd.xlane.f32.xlu0 %v848
      %v850 = vpop.xlane.xlu0 %849
      %v851 = vsel %vm367, %v336, 0.0
      %852 = vadd.xlane.f32.xlu0 %v851
      %v853 = vpop.xlane.xlu0 %852
      %v854 = vsel %vm367, %v337, 0.0
      %855 = vadd.xlane.f32.xlu0 %v854
      %v856 = vpop.xlane.xlu0 %855
      %v857 = vsel %vm367, %v338, 0.0
      %858 = vadd.xlane.f32.xlu0 %v857
      %v859 = vpop.xlane.xlu0 %858
      %v860 = vsel %vm367, %v339, 0.0
      %861 = vadd.xlane.f32.xlu0 %v860
      %v862 = vpop.xlane.xlu0 %861
      %v863 = vsel %vm367, %v340, 0.0
      %864 = vadd.xlane.f32.xlu0 %v863
      %v865 = vpop.xlane.xlu0 %864
      %v866 = vsel %vm367, %v341, 0.0
      %867 = vadd.xlane.f32.xlu0 %v866
      %v868 = vpop.xlane.xlu0 %867
      %v869 = vsel %vm367, %v342, 0.0
      %870 = vadd.xlane.f32.xlu0 %v869
      %v871 = vpop.xlane.xlu0 %870
      %v872 = vsel %vm367, %v343, 0.0
      %873 = vadd.xlane.f32.xlu0 %v872
      %v874 = vpop.xlane.xlu0 %873
      %v875 = vsel %vm367, %v344, 0.0
      %876 = vadd.xlane.f32.xlu0 %v875
      %v877 = vpop.xlane.xlu0 %876
      %v878 = vsel %vm367, %v345, 0.0
      %879 = vadd.xlane.f32.xlu0 %v878
      %v880 = vpop.xlane.xlu0 %879
      %v881 = vsel %vm367, %v346, 0.0
      %882 = vadd.xlane.f32.xlu0 %v881
      %v883 = vpop.xlane.xlu0 %882
      %v884 = vsel %vm367, %v347, 0.0
      %885 = vadd.xlane.f32.xlu0 %v884
      %v886 = vpop.xlane.xlu0 %885
      %v887 = vsel %vm367, %v348, 0.0
      %888 = vadd.xlane.f32.xlu0 %v887
      %v889 = vpop.xlane.xlu0 %888
      %v890 = vsel %vm367, %v349, 0.0
      %891 = vadd.xlane.f32.xlu0 %v890
      %v892 = vpop.xlane.xlu0 %891
      %v893 = vsel %vm367, %v350, 0.0
      %894 = vadd.xlane.f32.xlu0 %v893
      %v895 = vpop.xlane.xlu0 %894
      %v896 = vsel %vm367, %v351, 0.0
      %897 = vadd.xlane.f32.xlu0 %v896
      %v898 = vpop.xlane.xlu0 %897
      %v899 = vsel %vm367, %v352, 0.0
      %900 = vadd.xlane.f32.xlu0 %v899
      %v901 = vpop.xlane.xlu0 %900
      %v902 = vsel %vm367, %v353, 0.0
      %903 = vadd.xlane.f32.xlu0 %v902
      %v904 = vpop.xlane.xlu0 %903
      %v905 = vsel %vm367, %v354, 0.0
      %906 = vadd.xlane.f32.xlu0 %v905
      %v907 = vpop.xlane.xlu0 %906
      %v908 = vsel %vm367, %v355, 0.0
      %909 = vadd.xlane.f32.xlu0 %v908
      %v910 = vpop.xlane.xlu0 %909
      %v911 = vsel %vm367, %v356, 0.0
      %912 = vadd.xlane.f32.xlu0 %v911
      %v913 = vpop.xlane.xlu0 %912
      %v914 = vsel %vm367, %v357, 0.0
      %915 = vadd.xlane.f32.xlu0 %v914
      %v916 = vpop.xlane.xlu0 %915
      %v917 = vsel %vm367, %v358, 0.0
      %918 = vadd.xlane.f32.xlu0 %v917
      %v919 = vpop.xlane.xlu0 %918
      %v920 = vsel %vm367, %v359, 0.0
      %921 = vadd.xlane.f32.xlu0 %v920
      %v922 = vpop.xlane.xlu0 %921
      %v923 = vsel %vm367, %v360, 0.0
      %924 = vadd.xlane.f32.xlu0 %v923
      %v925 = vpop.xlane.xlu0 %924
      %v926 = vsel %vm367, %v361, 0.0
      %927 = vadd.xlane.f32.xlu0 %v926
      %v928 = vpop.xlane.xlu0 %927
      %v929 = vsel %vm367, %v362, 0.0
      %930 = vadd.xlane.f32.xlu0 %v929
      %v931 = vpop.xlane.xlu0 %930
      %v932 = vsel %vm367, %v363, 0.0
      %933 = vadd.xlane.f32.xlu0 %v932
      %v934 = vpop.xlane.xlu0 %933
      %v935 = vsel %vm367, %v364, 0.0
      %936 = vadd.xlane.f32.xlu0 %v935
      %v937 = vpop.xlane.xlu0 %936
      %v938 = vsel %vm367, %v365, 0.0
      %939 = vadd.xlane.f32.xlu0 %v938
      %v940 = vpop.xlane.xlu0 %939
      %v941 = vsel %vm367, %v366, 0.0
      %942 = vadd.xlane.f32.xlu0 %v941
      %v943 = vpop.xlane.xlu0 %942
      %vm944 = vcmask 113664
      %v945 = vsel %vm944, %v175, 0.0
      %946 = vadd.xlane.f32.xlu0 %v945
      %v947 = vpop.xlane.xlu0 %946
      %v948 = vsel %vm944, %v176, 0.0
      %949 = vadd.xlane.f32.xlu0 %v948
      %v950 = vpop.xlane.xlu0 %949
      %v951 = vsel %vm944, %v177, 0.0
      %952 = vadd.xlane.f32.xlu0 %v951
      %v953 = vpop.xlane.xlu0 %952
      %v954 = vsel %vm944, %v178, 0.0
      %955 = vadd.xlane.f32.xlu0 %v954
      %v956 = vpop.xlane.xlu0 %955
      %v957 = vsel %vm944, %v179, 0.0
      %958 = vadd.xlane.f32.xlu0 %v957
      %v959 = vpop.xlane.xlu0 %958
      %v960 = vsel %vm944, %v180, 0.0
      %961 = vadd.xlane.f32.xlu0 %v960
      %v962 = vpop.xlane.xlu0 %961
      %v963 = vsel %vm944, %v181, 0.0
      %964 = vadd.xlane.f32.xlu0 %v963
      %v965 = vpop.xlane.xlu0 %964
      %v966 = vsel %vm944, %v182, 0.0
      %967 = vadd.xlane.f32.xlu0 %v966
      %v968 = vpop.xlane.xlu0 %967
      %v969 = vsel %vm944, %v183, 0.0
      %970 = vadd.xlane.f32.xlu0 %v969
      %v971 = vpop.xlane.xlu0 %970
      %v972 = vsel %vm944, %v184, 0.0
      %973 = vadd.xlane.f32.xlu0 %v972
      %v974 = vpop.xlane.xlu0 %973
      %v975 = vsel %vm944, %v185, 0.0
      %976 = vadd.xlane.f32.xlu0 %v975
      %v977 = vpop.xlane.xlu0 %976
      %v978 = vsel %vm944, %v186, 0.0
      %979 = vadd.xlane.f32.xlu0 %v978
      %v980 = vpop.xlane.xlu0 %979
      %v981 = vsel %vm944, %v187, 0.0
      %982 = vadd.xlane.f32.xlu0 %v981
      %v983 = vpop.xlane.xlu0 %982
      %v984 = vsel %vm944, %v188, 0.0
      %985 = vadd.xlane.f32.xlu0 %v984
      %v986 = vpop.xlane.xlu0 %985
      %v987 = vsel %vm944, %v189, 0.0
      %988 = vadd.xlane.f32.xlu0 %v987
      %v989 = vpop.xlane.xlu0 %988
      %v990 = vsel %vm944, %v190, 0.0
      %991 = vadd.xlane.f32.xlu0 %v990
      %v992 = vpop.xlane.xlu0 %991
      %v993 = vsel %vm944, %v191, 0.0
      %994 = vadd.xlane.f32.xlu0 %v993
      %v995 = vpop.xlane.xlu0 %994
      %v996 = vsel %vm944, %v192, 0.0
      %997 = vadd.xlane.f32.xlu0 %v996
      %v998 = vpop.xlane.xlu0 %997
      %v999 = vsel %vm944, %v193, 0.0
      %1000 = vadd.xlane.f32.xlu0 %v999
      %v1001 = vpop.xlane.xlu0 %1000
      %v1002 = vsel %vm944, %v194, 0.0
      %1003 = vadd.xlane.f32.xlu0 %v1002
      %v1004 = vpop.xlane.xlu0 %1003
      %v1005 = vsel %vm944, %v195, 0.0
      %1006 = vadd.xlane.f32.xlu0 %v1005
      %v1007 = vpop.xlane.xlu0 %1006
      %v1008 = vsel %vm944, %v196, 0.0
      %1009 = vadd.xlane.f32.xlu0 %v1008
      %v1010 = vpop.xlane.xlu0 %1009
      %v1011 = vsel %vm944, %v197, 0.0
      %1012 = vadd.xlane.f32.xlu0 %v1011
      %v1013 = vpop.xlane.xlu0 %1012
      %v1014 = vsel %vm944, %v198, 0.0
      %1015 = vadd.xlane.f32.xlu0 %v1014
      %v1016 = vpop.xlane.xlu0 %1015
      %v1017 = vsel %vm944, %v199, 0.0
      %1018 = vadd.xlane.f32.xlu0 %v1017
      %v1019 = vpop.xlane.xlu0 %1018
      %v1020 = vsel %vm944, %v200, 0.0
      %1021 = vadd.xlane.f32.xlu0 %v1020
      %v1022 = vpop.xlane.xlu0 %1021
      %v1023 = vsel %vm944, %v201, 0.0
      %1024 = vadd.xlane.f32.xlu0 %v1023
      %v1025 = vpop.xlane.xlu0 %1024
      %v1026 = vsel %vm944, %v202, 0.0
      %1027 = vadd.xlane.f32.xlu0 %v1026
      %v1028 = vpop.xlane.xlu0 %1027
      %v1029 = vsel %vm944, %v203, 0.0
      %1030 = vadd.xlane.f32.xlu0 %v1029
      %v1031 = vpop.xlane.xlu0 %1030
      %v1032 = vsel %vm944, %v204, 0.0
      %1033 = vadd.xlane.f32.xlu0 %v1032
      %v1034 = vpop.xlane.xlu0 %1033
      %v1035 = vsel %vm944, %v205, 0.0
      %1036 = vadd.xlane.f32.xlu0 %v1035
      %v1037 = vpop.xlane.xlu0 %1036
      %v1038 = vsel %vm944, %v206, 0.0
      %1039 = vadd.xlane.f32.xlu0 %v1038
      %v1040 = vpop.xlane.xlu0 %1039
      %v1041 = vsel %vm944, %v207, 0.0
      %1042 = vadd.xlane.f32.xlu0 %v1041
      %v1043 = vpop.xlane.xlu0 %1042
      %v1044 = vsel %vm944, %v208, 0.0
      %1045 = vadd.xlane.f32.xlu0 %v1044
      %v1046 = vpop.xlane.xlu0 %1045
      %v1047 = vsel %vm944, %v209, 0.0
      %1048 = vadd.xlane.f32.xlu0 %v1047
      %v1049 = vpop.xlane.xlu0 %1048
      %v1050 = vsel %vm944, %v210, 0.0
      %1051 = vadd.xlane.f32.xlu0 %v1050
      %v1052 = vpop.xlane.xlu0 %1051
      %v1053 = vsel %vm944, %v211, 0.0
      %1054 = vadd.xlane.f32.xlu0 %v1053
      %v1055 = vpop.xlane.xlu0 %1054
      %v1056 = vsel %vm944, %v212, 0.0
      %1057 = vadd.xlane.f32.xlu0 %v1056
      %v1058 = vpop.xlane.xlu0 %1057
      %v1059 = vsel %vm944, %v213, 0.0
      %1060 = vadd.xlane.f32.xlu0 %v1059
      %v1061 = vpop.xlane.xlu0 %1060
      %v1062 = vsel %vm944, %v214, 0.0
      %1063 = vadd.xlane.f32.xlu0 %v1062
      %v1064 = vpop.xlane.xlu0 %1063
      %v1065 = vsel %vm944, %v215, 0.0
      %1066 = vadd.xlane.f32.xlu0 %v1065
      %v1067 = vpop.xlane.xlu0 %1066
      %v1068 = vsel %vm944, %v216, 0.0
      %1069 = vadd.xlane.f32.xlu0 %v1068
      %v1070 = vpop.xlane.xlu0 %1069
      %v1071 = vsel %vm944, %v217, 0.0
      %1072 = vadd.xlane.f32.xlu0 %v1071
      %v1073 = vpop.xlane.xlu0 %1072
      %v1074 = vsel %vm944, %v218, 0.0
      %1075 = vadd.xlane.f32.xlu0 %v1074
      %v1076 = vpop.xlane.xlu0 %1075
      %v1077 = vsel %vm944, %v219, 0.0
      %1078 = vadd.xlane.f32.xlu0 %v1077
      %v1079 = vpop.xlane.xlu0 %1078
      %v1080 = vsel %vm944, %v220, 0.0
      %1081 = vadd.xlane.f32.xlu0 %v1080
      %v1082 = vpop.xlane.xlu0 %1081
      %v1083 = vsel %vm944, %v221, 0.0
      %1084 = vadd.xlane.f32.xlu0 %v1083
      %v1085 = vpop.xlane.xlu0 %1084
      %v1086 = vsel %vm944, %v222, 0.0
      %1087 = vadd.xlane.f32.xlu0 %v1086
      %v1088 = vpop.xlane.xlu0 %1087
      %v1089 = vsel %vm944, %v223, 0.0
      %1090 = vadd.xlane.f32.xlu0 %v1089
      %v1091 = vpop.xlane.xlu0 %1090
      %v1092 = vsel %vm944, %v224, 0.0
      %1093 = vadd.xlane.f32.xlu0 %v1092
      %v1094 = vpop.xlane.xlu0 %1093
      %v1095 = vsel %vm944, %v225, 0.0
      %1096 = vadd.xlane.f32.xlu0 %v1095
      %v1097 = vpop.xlane.xlu0 %1096
      %v1098 = vsel %vm944, %v226, 0.0
      %1099 = vadd.xlane.f32.xlu0 %v1098
      %v1100 = vpop.xlane.xlu0 %1099
      %v1101 = vsel %vm944, %v227, 0.0
      %1102 = vadd.xlane.f32.xlu0 %v1101
      %v1103 = vpop.xlane.xlu0 %1102
      %v1104 = vsel %vm944, %v228, 0.0
      %1105 = vadd.xlane.f32.xlu0 %v1104
      %v1106 = vpop.xlane.xlu0 %1105
      %v1107 = vsel %vm944, %v229, 0.0
      %1108 = vadd.xlane.f32.xlu0 %v1107
      %v1109 = vpop.xlane.xlu0 %1108
      %v1110 = vsel %vm944, %v230, 0.0
      %1111 = vadd.xlane.f32.xlu0 %v1110
      %v1112 = vpop.xlane.xlu0 %1111
      %v1113 = vsel %vm944, %v231, 0.0
      %1114 = vadd.xlane.f32.xlu0 %v1113
      %v1115 = vpop.xlane.xlu0 %1114
      %v1116 = vsel %vm944, %v232, 0.0
      %1117 = vadd.xlane.f32.xlu0 %v1116
      %v1118 = vpop.xlane.xlu0 %1117
      %v1119 = vsel %vm944, %v233, 0.0
      %1120 = vadd.xlane.f32.xlu0 %v1119
      %v1121 = vpop.xlane.xlu0 %1120
      %v1122 = vsel %vm944, %v234, 0.0
      %1123 = vadd.xlane.f32.xlu0 %v1122
      %v1124 = vpop.xlane.xlu0 %1123
      %v1125 = vsel %vm944, %v235, 0.0
      %1126 = vadd.xlane.f32.xlu0 %v1125
      %v1127 = vpop.xlane.xlu0 %1126
      %v1128 = vsel %vm944, %v236, 0.0
      %1129 = vadd.xlane.f32.xlu0 %v1128
      %v1130 = vpop.xlane.xlu0 %1129
      %v1131 = vsel %vm944, %v237, 0.0
      %1132 = vadd.xlane.f32.xlu0 %v1131
      %v1133 = vpop.xlane.xlu0 %1132
      %v1134 = vsel %vm944, %v238, 0.0
      %1135 = vadd.xlane.f32.xlu0 %v1134
      %v1136 = vpop.xlane.xlu0 %1135
      %v1137 = vsel %vm944, %v239, 0.0
      %1138 = vadd.xlane.f32.xlu0 %v1137
      %v1139 = vpop.xlane.xlu0 %1138
      %v1140 = vsel %vm944, %v240, 0.0
      %1141 = vadd.xlane.f32.xlu0 %v1140
      %v1142 = vpop.xlane.xlu0 %1141
      %v1143 = vsel %vm944, %v241, 0.0
      %1144 = vadd.xlane.f32.xlu0 %v1143
      %v1145 = vpop.xlane.xlu0 %1144
      %v1146 = vsel %vm944, %v242, 0.0
      %1147 = vadd.xlane.f32.xlu0 %v1146
      %v1148 = vpop.xlane.xlu0 %1147
      %v1149 = vsel %vm944, %v243, 0.0
      %1150 = vadd.xlane.f32.xlu0 %v1149
      %v1151 = vpop.xlane.xlu0 %1150
      %v1152 = vsel %vm944, %v244, 0.0
      %1153 = vadd.xlane.f32.xlu0 %v1152
      %v1154 = vpop.xlane.xlu0 %1153
      %v1155 = vsel %vm944, %v245, 0.0
      %1156 = vadd.xlane.f32.xlu0 %v1155
      %v1157 = vpop.xlane.xlu0 %1156
      %v1158 = vsel %vm944, %v246, 0.0
      %1159 = vadd.xlane.f32.xlu0 %v1158
      %v1160 = vpop.xlane.xlu0 %1159
      %v1161 = vsel %vm944, %v247, 0.0
      %1162 = vadd.xlane.f32.xlu0 %v1161
      %v1163 = vpop.xlane.xlu0 %1162
      %v1164 = vsel %vm944, %v248, 0.0
      %1165 = vadd.xlane.f32.xlu0 %v1164
      %v1166 = vpop.xlane.xlu0 %1165
      %v1167 = vsel %vm944, %v249, 0.0
      %1168 = vadd.xlane.f32.xlu0 %v1167
      %v1169 = vpop.xlane.xlu0 %1168
      %v1170 = vsel %vm944, %v250, 0.0
      %1171 = vadd.xlane.f32.xlu0 %v1170
      %v1172 = vpop.xlane.xlu0 %1171
      %v1173 = vsel %vm944, %v251, 0.0
      %1174 = vadd.xlane.f32.xlu0 %v1173
      %v1175 = vpop.xlane.xlu0 %1174
      %v1176 = vsel %vm944, %v252, 0.0
      %1177 = vadd.xlane.f32.xlu0 %v1176
      %v1178 = vpop.xlane.xlu0 %1177
      %v1179 = vsel %vm944, %v253, 0.0
      %1180 = vadd.xlane.f32.xlu0 %v1179
      %v1181 = vpop.xlane.xlu0 %1180
      %v1182 = vsel %vm944, %v254, 0.0
      %1183 = vadd.xlane.f32.xlu0 %v1182
      %v1184 = vpop.xlane.xlu0 %1183
      %v1185 = vsel %vm944, %v255, 0.0
      %1186 = vadd.xlane.f32.xlu0 %v1185
      %v1187 = vpop.xlane.xlu0 %1186
      %v1188 = vsel %vm944, %v256, 0.0
      %1189 = vadd.xlane.f32.xlu0 %v1188
      %v1190 = vpop.xlane.xlu0 %1189
      %v1191 = vsel %vm944, %v257, 0.0
      %1192 = vadd.xlane.f32.xlu0 %v1191
      %v1193 = vpop.xlane.xlu0 %1192
      %v1194 = vsel %vm944, %v258, 0.0
      %1195 = vadd.xlane.f32.xlu0 %v1194
      %v1196 = vpop.xlane.xlu0 %1195
      %v1197 = vsel %vm944, %v259, 0.0
      %1198 = vadd.xlane.f32.xlu0 %v1197
      %v1199 = vpop.xlane.xlu0 %1198
      %v1200 = vsel %vm944, %v260, 0.0
      %1201 = vadd.xlane.f32.xlu0 %v1200
      %v1202 = vpop.xlane.xlu0 %1201
      %v1203 = vsel %vm944, %v261, 0.0
      %1204 = vadd.xlane.f32.xlu0 %v1203
      %v1205 = vpop.xlane.xlu0 %1204
      %v1206 = vsel %vm944, %v262, 0.0
      %1207 = vadd.xlane.f32.xlu0 %v1206
      %v1208 = vpop.xlane.xlu0 %1207
      %v1209 = vsel %vm944, %v263, 0.0
      %1210 = vadd.xlane.f32.xlu0 %v1209
      %v1211 = vpop.xlane.xlu0 %1210
      %v1212 = vsel %vm944, %v264, 0.0
      %1213 = vadd.xlane.f32.xlu0 %v1212
      %v1214 = vpop.xlane.xlu0 %1213
      %v1215 = vsel %vm944, %v265, 0.0
      %1216 = vadd.xlane.f32.xlu0 %v1215
      %v1217 = vpop.xlane.xlu0 %1216
      %v1218 = vsel %vm944, %v266, 0.0
      %1219 = vadd.xlane.f32.xlu0 %v1218
      %v1220 = vpop.xlane.xlu0 %1219
      %v1221 = vsel %vm944, %v267, 0.0
      %1222 = vadd.xlane.f32.xlu0 %v1221
      %v1223 = vpop.xlane.xlu0 %1222
      %v1224 = vsel %vm944, %v268, 0.0
      %1225 = vadd.xlane.f32.xlu0 %v1224
      %v1226 = vpop.xlane.xlu0 %1225
      %v1227 = vsel %vm944, %v269, 0.0
      %1228 = vadd.xlane.f32.xlu0 %v1227
      %v1229 = vpop.xlane.xlu0 %1228
      %v1230 = vsel %vm944, %v270, 0.0
      %1231 = vadd.xlane.f32.xlu0 %v1230
      %v1232 = vpop.xlane.xlu0 %1231
      %v1233 = vsel %vm944, %v271, 0.0
      %1234 = vadd.xlane.f32.xlu0 %v1233
      %v1235 = vpop.xlane.xlu0 %1234
      %v1236 = vsel %vm944, %v272, 0.0
      %1237 = vadd.xlane.f32.xlu0 %v1236
      %v1238 = vpop.xlane.xlu0 %1237
      %v1239 = vsel %vm944, %v273, 0.0
      %1240 = vadd.xlane.f32.xlu0 %v1239
      %v1241 = vpop.xlane.xlu0 %1240
      %v1242 = vsel %vm944, %v274, 0.0
      %1243 = vadd.xlane.f32.xlu0 %v1242
      %v1244 = vpop.xlane.xlu0 %1243
      %v1245 = vsel %vm944, %v275, 0.0
      %1246 = vadd.xlane.f32.xlu0 %v1245
      %v1247 = vpop.xlane.xlu0 %1246
      %v1248 = vsel %vm944, %v276, 0.0
      %1249 = vadd.xlane.f32.xlu0 %v1248
      %v1250 = vpop.xlane.xlu0 %1249
      %v1251 = vsel %vm944, %v277, 0.0
      %1252 = vadd.xlane.f32.xlu0 %v1251
      %v1253 = vpop.xlane.xlu0 %1252
      %v1254 = vsel %vm944, %v278, 0.0
      %1255 = vadd.xlane.f32.xlu0 %v1254
      %v1256 = vpop.xlane.xlu0 %1255
      %v1257 = vsel %vm944, %v279, 0.0
      %1258 = vadd.xlane.f32.xlu0 %v1257
      %v1259 = vpop.xlane.xlu0 %1258
      %v1260 = vsel %vm944, %v280, 0.0
      %1261 = vadd.xlane.f32.xlu0 %v1260
      %v1262 = vpop.xlane.xlu0 %1261
      %v1263 = vsel %vm944, %v281, 0.0
      %1264 = vadd.xlane.f32.xlu0 %v1263
      %v1265 = vpop.xlane.xlu0 %1264
      %v1266 = vsel %vm944, %v282, 0.0
      %1267 = vadd.xlane.f32.xlu0 %v1266
      %v1268 = vpop.xlane.xlu0 %1267
      %v1269 = vsel %vm944, %v283, 0.0
      %1270 = vadd.xlane.f32.xlu0 %v1269
      %v1271 = vpop.xlane.xlu0 %1270
      %v1272 = vsel %vm944, %v284, 0.0
      %1273 = vadd.xlane.f32.xlu0 %v1272
      %v1274 = vpop.xlane.xlu0 %1273
      %v1275 = vsel %vm944, %v285, 0.0
      %1276 = vadd.xlane.f32.xlu0 %v1275
      %v1277 = vpop.xlane.xlu0 %1276
      %v1278 = vsel %vm944, %v286, 0.0
      %1279 = vadd.xlane.f32.xlu0 %v1278
      %v1280 = vpop.xlane.xlu0 %1279
      %v1281 = vsel %vm944, %v287, 0.0
      %1282 = vadd.xlane.f32.xlu0 %v1281
      %v1283 = vpop.xlane.xlu0 %1282
      %v1284 = vsel %vm944, %v288, 0.0
      %1285 = vadd.xlane.f32.xlu0 %v1284
      %v1286 = vpop.xlane.xlu0 %1285
      %v1287 = vsel %vm944, %v289, 0.0
      %1288 = vadd.xlane.f32.xlu0 %v1287
      %v1289 = vpop.xlane.xlu0 %1288
      %v1290 = vsel %vm944, %v290, 0.0
      %1291 = vadd.xlane.f32.xlu0 %v1290
      %v1292 = vpop.xlane.xlu0 %1291
      %v1293 = vsel %vm944, %v291, 0.0
      %1294 = vadd.xlane.f32.xlu0 %v1293
      %v1295 = vpop.xlane.xlu0 %1294
      %v1296 = vsel %vm944, %v292, 0.0
      %1297 = vadd.xlane.f32.xlu0 %v1296
      %v1298 = vpop.xlane.xlu0 %1297
      %v1299 = vsel %vm944, %v293, 0.0
      %1300 = vadd.xlane.f32.xlu0 %v1299
      %v1301 = vpop.xlane.xlu0 %1300
      %v1302 = vsel %vm944, %v294, 0.0
      %1303 = vadd.xlane.f32.xlu0 %v1302
      %v1304 = vpop.xlane.xlu0 %1303
      %v1305 = vsel %vm944, %v295, 0.0
      %1306 = vadd.xlane.f32.xlu0 %v1305
      %v1307 = vpop.xlane.xlu0 %1306
      %v1308 = vsel %vm944, %v296, 0.0
      %1309 = vadd.xlane.f32.xlu0 %v1308
      %v1310 = vpop.xlane.xlu0 %1309
      %v1311 = vsel %vm944, %v297, 0.0
      %1312 = vadd.xlane.f32.xlu0 %v1311
      %v1313 = vpop.xlane.xlu0 %1312
      %v1314 = vsel %vm944, %v298, 0.0
      %1315 = vadd.xlane.f32.xlu0 %v1314
      %v1316 = vpop.xlane.xlu0 %1315
      %v1317 = vsel %vm944, %v299, 0.0
      %1318 = vadd.xlane.f32.xlu0 %v1317
      %v1319 = vpop.xlane.xlu0 %1318
      %v1320 = vsel %vm944, %v300, 0.0
      %1321 = vadd.xlane.f32.xlu0 %v1320
      %v1322 = vpop.xlane.xlu0 %1321
      %v1323 = vsel %vm944, %v301, 0.0
      %1324 = vadd.xlane.f32.xlu0 %v1323
      %v1325 = vpop.xlane.xlu0 %1324
      %v1326 = vsel %vm944, %v302, 0.0
      %1327 = vadd.xlane.f32.xlu0 %v1326
      %v1328 = vpop.xlane.xlu0 %1327
      %v1329 = vsel %vm944, %v303, 0.0
      %1330 = vadd.xlane.f32.xlu0 %v1329
      %v1331 = vpop.xlane.xlu0 %1330
      %v1332 = vsel %vm944, %v304, 0.0
      %1333 = vadd.xlane.f32.xlu0 %v1332
      %v1334 = vpop.xlane.xlu0 %1333
      %v1335 = vsel %vm944, %v305, 0.0
      %1336 = vadd.xlane.f32.xlu0 %v1335
      %v1337 = vpop.xlane.xlu0 %1336
      %v1338 = vsel %vm944, %v306, 0.0
      %1339 = vadd.xlane.f32.xlu0 %v1338
      %v1340 = vpop.xlane.xlu0 %1339
      %v1341 = vsel %vm944, %v307, 0.0
      %1342 = vadd.xlane.f32.xlu0 %v1341
      %v1343 = vpop.xlane.xlu0 %1342
      %v1344 = vsel %vm944, %v308, 0.0
      %1345 = vadd.xlane.f32.xlu0 %v1344
      %v1346 = vpop.xlane.xlu0 %1345
      %v1347 = vsel %vm944, %v309, 0.0
      %1348 = vadd.xlane.f32.xlu0 %v1347
      %v1349 = vpop.xlane.xlu0 %1348
      %v1350 = vsel %vm944, %v310, 0.0
      %1351 = vadd.xlane.f32.xlu0 %v1350
      %v1352 = vpop.xlane.xlu0 %1351
      %v1353 = vsel %vm944, %v311, 0.0
      %1354 = vadd.xlane.f32.xlu0 %v1353
      %v1355 = vpop.xlane.xlu0 %1354
      %v1356 = vsel %vm944, %v312, 0.0
      %1357 = vadd.xlane.f32.xlu0 %v1356
      %v1358 = vpop.xlane.xlu0 %1357
      %v1359 = vsel %vm944, %v313, 0.0
      %1360 = vadd.xlane.f32.xlu0 %v1359
      %v1361 = vpop.xlane.xlu0 %1360
      %v1362 = vsel %vm944, %v314, 0.0
      %1363 = vadd.xlane.f32.xlu0 %v1362
      %v1364 = vpop.xlane.xlu0 %1363
      %v1365 = vsel %vm944, %v315, 0.0
      %1366 = vadd.xlane.f32.xlu0 %v1365
      %v1367 = vpop.xlane.xlu0 %1366
      %v1368 = vsel %vm944, %v316, 0.0
      %1369 = vadd.xlane.f32.xlu0 %v1368
      %v1370 = vpop.xlane.xlu0 %1369
      %v1371 = vsel %vm944, %v317, 0.0
      %1372 = vadd.xlane.f32.xlu0 %v1371
      %v1373 = vpop.xlane.xlu0 %1372
      %v1374 = vsel %vm944, %v318, 0.0
      %1375 = vadd.xlane.f32.xlu0 %v1374
      %v1376 = vpop.xlane.xlu0 %1375
      %v1377 = vsel %vm944, %v319, 0.0
      %1378 = vadd.xlane.f32.xlu0 %v1377
      %v1379 = vpop.xlane.xlu0 %1378
      %v1380 = vsel %vm944, %v320, 0.0
      %1381 = vadd.xlane.f32.xlu0 %v1380
      %v1382 = vpop.xlane.xlu0 %1381
      %v1383 = vsel %vm944, %v321, 0.0
      %1384 = vadd.xlane.f32.xlu0 %v1383
      %v1385 = vpop.xlane.xlu0 %1384
      %v1386 = vsel %vm944, %v322, 0.0
      %1387 = vadd.xlane.f32.xlu0 %v1386
      %v1388 = vpop.xlane.xlu0 %1387
      %v1389 = vsel %vm944, %v323, 0.0
      %1390 = vadd.xlane.f32.xlu0 %v1389
      %v1391 = vpop.xlane.xlu0 %1390
      %v1392 = vsel %vm944, %v324, 0.0
      %1393 = vadd.xlane.f32.xlu0 %v1392
      %v1394 = vpop.xlane.xlu0 %1393
      %v1395 = vsel %vm944, %v325, 0.0
      %1396 = vadd.xlane.f32.xlu0 %v1395
      %v1397 = vpop.xlane.xlu0 %1396
      %v1398 = vsel %vm944, %v326, 0.0
      %1399 = vadd.xlane.f32.xlu0 %v1398
      %v1400 = vpop.xlane.xlu0 %1399
      %v1401 = vsel %vm944, %v327, 0.0
      %1402 = vadd.xlane.f32.xlu0 %v1401
      %v1403 = vpop.xlane.xlu0 %1402
      %v1404 = vsel %vm944, %v328, 0.0
      %1405 = vadd.xlane.f32.xlu0 %v1404
      %v1406 = vpop.xlane.xlu0 %1405
      %v1407 = vsel %vm944, %v329, 0.0
      %1408 = vadd.xlane.f32.xlu0 %v1407
      %v1409 = vpop.xlane.xlu0 %1408
      %v1410 = vsel %vm944, %v330, 0.0
      %1411 = vadd.xlane.f32.xlu0 %v1410
      %v1412 = vpop.xlane.xlu0 %1411
      %v1413 = vsel %vm944, %v331, 0.0
      %1414 = vadd.xlane.f32.xlu0 %v1413
      %v1415 = vpop.xlane.xlu0 %1414
      %v1416 = vsel %vm944, %v332, 0.0
      %1417 = vadd.xlane.f32.xlu0 %v1416
      %v1418 = vpop.xlane.xlu0 %1417
      %v1419 = vsel %vm944, %v333, 0.0
      %1420 = vadd.xlane.f32.xlu0 %v1419
      %v1421 = vpop.xlane.xlu0 %1420
      %v1422 = vsel %vm944, %v334, 0.0
      %1423 = vadd.xlane.f32.xlu0 %v1422
      %v1424 = vpop.xlane.xlu0 %1423
      %v1425 = vsel %vm944, %v335, 0.0
      %1426 = vadd.xlane.f32.xlu0 %v1425
      %v1427 = vpop.xlane.xlu0 %1426
      %v1428 = vsel %vm944, %v336, 0.0
      %1429 = vadd.xlane.f32.xlu0 %v1428
      %v1430 = vpop.xlane.xlu0 %1429
      %v1431 = vsel %vm944, %v337, 0.0
      %1432 = vadd.xlane.f32.xlu0 %v1431
      %v1433 = vpop.xlane.xlu0 %1432
      %v1434 = vsel %vm944, %v338, 0.0
      %1435 = vadd.xlane.f32.xlu0 %v1434
      %v1436 = vpop.xlane.xlu0 %1435
      %v1437 = vsel %vm944, %v339, 0.0
      %1438 = vadd.xlane.f32.xlu0 %v1437
      %v1439 = vpop.xlane.xlu0 %1438
      %v1440 = vsel %vm944, %v340, 0.0
      %1441 = vadd.xlane.f32.xlu0 %v1440
      %v1442 = vpop.xlane.xlu0 %1441
      %v1443 = vsel %vm944, %v341, 0.0
      %1444 = vadd.xlane.f32.xlu0 %v1443
      %v1445 = vpop.xlane.xlu0 %1444
      %v1446 = vsel %vm944, %v342, 0.0
      %1447 = vadd.xlane.f32.xlu0 %v1446
      %v1448 = vpop.xlane.xlu0 %1447
      %v1449 = vsel %vm944, %v343, 0.0
      %1450 = vadd.xlane.f32.xlu0 %v1449
      %v1451 = vpop.xlane.xlu0 %1450
      %v1452 = vsel %vm944, %v344, 0.0
      %1453 = vadd.xlane.f32.xlu0 %v1452
      %v1454 = vpop.xlane.xlu0 %1453
      %v1455 = vsel %vm944, %v345, 0.0
      %1456 = vadd.xlane.f32.xlu0 %v1455
      %v1457 = vpop.xlane.xlu0 %1456
      %v1458 = vsel %vm944, %v346, 0.0
      %1459 = vadd.xlane.f32.xlu0 %v1458
      %v1460 = vpop.xlane.xlu0 %1459
      %v1461 = vsel %vm944, %v347, 0.0
      %1462 = vadd.xlane.f32.xlu0 %v1461
      %v1463 = vpop.xlane.xlu0 %1462
      %v1464 = vsel %vm944, %v348, 0.0
      %1465 = vadd.xlane.f32.xlu0 %v1464
      %v1466 = vpop.xlane.xlu0 %1465
      %v1467 = vsel %vm944, %v349, 0.0
      %1468 = vadd.xlane.f32.xlu0 %v1467
      %v1469 = vpop.xlane.xlu0 %1468
      %v1470 = vsel %vm944, %v350, 0.0
      %1471 = vadd.xlane.f32.xlu0 %v1470
      %v1472 = vpop.xlane.xlu0 %1471
      %v1473 = vsel %vm944, %v351, 0.0
      %1474 = vadd.xlane.f32.xlu0 %v1473
      %v1475 = vpop.xlane.xlu0 %1474
      %v1476 = vsel %vm944, %v352, 0.0
      %1477 = vadd.xlane.f32.xlu0 %v1476
      %v1478 = vpop.xlane.xlu0 %1477
      %v1479 = vsel %vm944, %v353, 0.0
      %1480 = vadd.xlane.f32.xlu0 %v1479
      %v1481 = vpop.xlane.xlu0 %1480
      %v1482 = vsel %vm944, %v354, 0.0
      %1483 = vadd.xlane.f32.xlu0 %v1482
      %v1484 = vpop.xlane.xlu0 %1483
      %v1485 = vsel %vm944, %v355, 0.0
      %1486 = vadd.xlane.f32.xlu0 %v1485
      %v1487 = vpop.xlane.xlu0 %1486
      %v1488 = vsel %vm944, %v356, 0.0
      %1489 = vadd.xlane.f32.xlu0 %v1488
      %v1490 = vpop.xlane.xlu0 %1489
      %v1491 = vsel %vm944, %v357, 0.0
      %1492 = vadd.xlane.f32.xlu0 %v1491
      %v1493 = vpop.xlane.xlu0 %1492
      %v1494 = vsel %vm944, %v358, 0.0
      %1495 = vadd.xlane.f32.xlu0 %v1494
      %v1496 = vpop.xlane.xlu0 %1495
      %v1497 = vsel %vm944, %v359, 0.0
      %1498 = vadd.xlane.f32.xlu0 %v1497
      %v1499 = vpop.xlane.xlu0 %1498
      %v1500 = vsel %vm944, %v360, 0.0
      %1501 = vadd.xlane.f32.xlu0 %v1500
      %v1502 = vpop.xlane.xlu0 %1501
      %v1503 = vsel %vm944, %v361, 0.0
      %1504 = vadd.xlane.f32.xlu0 %v1503
      %v1505 = vpop.xlane.xlu0 %1504
      %v1506 = vsel %vm944, %v362, 0.0
      %1507 = vadd.xlane.f32.xlu0 %v1506
      %v1508 = vpop.xlane.xlu0 %1507
      %v1509 = vsel %vm944, %v363, 0.0
      %1510 = vadd.xlane.f32.xlu0 %v1509
      %v1511 = vpop.xlane.xlu0 %1510
      %v1512 = vsel %vm944, %v364, 0.0
      %1513 = vadd.xlane.f32.xlu0 %v1512
      %v1514 = vpop.xlane.xlu0 %1513
      %v1515 = vsel %vm944, %v365, 0.0
      %1516 = vadd.xlane.f32.xlu0 %v1515
      %v1517 = vpop.xlane.xlu0 %1516
      %v1518 = vsel %vm944, %v366, 0.0
      %1519 = vadd.xlane.f32.xlu0 %v1518
      %v1520 = vpop.xlane.xlu0 %1519
      %vm1521 = vcmask 105472
      %v1522 = vsel %vm1521, %v175, 0.0
      %1523 = vadd.xlane.f32.xlu0 %v1522
      %v1524 = vpop.xlane.xlu0 %1523
      %v1525 = vsel %vm1521, %v176, 0.0
      %1526 = vadd.xlane.f32.xlu0 %v1525
      %v1527 = vpop.xlane.xlu0 %1526
      %v1528 = vsel %vm1521, %v177, 0.0
      %1529 = vadd.xlane.f32.xlu0 %v1528
      %v1530 = vpop.xlane.xlu0 %1529
      %v1531 = vsel %vm1521, %v178, 0.0
      %1532 = vadd.xlane.f32.xlu0 %v1531
      %v1533 = vpop.xlane.xlu0 %1532
      %v1534 = vsel %vm1521, %v179, 0.0
      %1535 = vadd.xlane.f32.xlu0 %v1534
      %v1536 = vpop.xlane.xlu0 %1535
      %v1537 = vsel %vm1521, %v180, 0.0
      %1538 = vadd.xlane.f32.xlu0 %v1537
      %v1539 = vpop.xlane.xlu0 %1538
      %v1540 = vsel %vm1521, %v181, 0.0
      %1541 = vadd.xlane.f32.xlu0 %v1540
      %v1542 = vpop.xlane.xlu0 %1541
      %v1543 = vsel %vm1521, %v182, 0.0
      %1544 = vadd.xlane.f32.xlu0 %v1543
      %v1545 = vpop.xlane.xlu0 %1544
      %v1546 = vsel %vm1521, %v183, 0.0
      %1547 = vadd.xlane.f32.xlu0 %v1546
      %v1548 = vpop.xlane.xlu0 %1547
      %v1549 = vsel %vm1521, %v184, 0.0
      %1550 = vadd.xlane.f32.xlu0 %v1549
      %v1551 = vpop.xlane.xlu0 %1550
      %v1552 = vsel %vm1521, %v185, 0.0
      %1553 = vadd.xlane.f32.xlu0 %v1552
      %v1554 = vpop.xlane.xlu0 %1553
      %v1555 = vsel %vm1521, %v186, 0.0
      %1556 = vadd.xlane.f32.xlu0 %v1555
      %v1557 = vpop.xlane.xlu0 %1556
      %v1558 = vsel %vm1521, %v187, 0.0
      %1559 = vadd.xlane.f32.xlu0 %v1558
      %v1560 = vpop.xlane.xlu0 %1559
      %v1561 = vsel %vm1521, %v188, 0.0
      %1562 = vadd.xlane.f32.xlu0 %v1561
      %v1563 = vpop.xlane.xlu0 %1562
      %v1564 = vsel %vm1521, %v189, 0.0
      %1565 = vadd.xlane.f32.xlu0 %v1564
      %v1566 = vpop.xlane.xlu0 %1565
      %v1567 = vsel %vm1521, %v190, 0.0
      %1568 = vadd.xlane.f32.xlu0 %v1567
      %v1569 = vpop.xlane.xlu0 %1568
      %v1570 = vsel %vm1521, %v191, 0.0
      %1571 = vadd.xlane.f32.xlu0 %v1570
      %v1572 = vpop.xlane.xlu0 %1571
      %v1573 = vsel %vm1521, %v192, 0.0
      %1574 = vadd.xlane.f32.xlu0 %v1573
      %v1575 = vpop.xlane.xlu0 %1574
      %v1576 = vsel %vm1521, %v193, 0.0
      %1577 = vadd.xlane.f32.xlu0 %v1576
      %v1578 = vpop.xlane.xlu0 %1577
      %v1579 = vsel %vm1521, %v194, 0.0
      %1580 = vadd.xlane.f32.xlu0 %v1579
      %v1581 = vpop.xlane.xlu0 %1580
      %v1582 = vsel %vm1521, %v195, 0.0
      %1583 = vadd.xlane.f32.xlu0 %v1582
      %v1584 = vpop.xlane.xlu0 %1583
      %v1585 = vsel %vm1521, %v196, 0.0
      %1586 = vadd.xlane.f32.xlu0 %v1585
      %v1587 = vpop.xlane.xlu0 %1586
      %v1588 = vsel %vm1521, %v197, 0.0
      %1589 = vadd.xlane.f32.xlu0 %v1588
      %v1590 = vpop.xlane.xlu0 %1589
      %v1591 = vsel %vm1521, %v198, 0.0
      %1592 = vadd.xlane.f32.xlu0 %v1591
      %v1593 = vpop.xlane.xlu0 %1592
      %v1594 = vsel %vm1521, %v199, 0.0
      %1595 = vadd.xlane.f32.xlu0 %v1594
      %v1596 = vpop.xlane.xlu0 %1595
      %v1597 = vsel %vm1521, %v200, 0.0
      %1598 = vadd.xlane.f32.xlu0 %v1597
      %v1599 = vpop.xlane.xlu0 %1598
      %v1600 = vsel %vm1521, %v201, 0.0
      %1601 = vadd.xlane.f32.xlu0 %v1600
      %v1602 = vpop.xlane.xlu0 %1601
      %v1603 = vsel %vm1521, %v202, 0.0
      %1604 = vadd.xlane.f32.xlu0 %v1603
      %v1605 = vpop.xlane.xlu0 %1604
      %v1606 = vsel %vm1521, %v203, 0.0
      %1607 = vadd.xlane.f32.xlu0 %v1606
      %v1608 = vpop.xlane.xlu0 %1607
      %v1609 = vsel %vm1521, %v204, 0.0
      %1610 = vadd.xlane.f32.xlu0 %v1609
      %v1611 = vpop.xlane.xlu0 %1610
      %v1612 = vsel %vm1521, %v205, 0.0
      %1613 = vadd.xlane.f32.xlu0 %v1612
      %v1614 = vpop.xlane.xlu0 %1613
      %v1615 = vsel %vm1521, %v206, 0.0
      %1616 = vadd.xlane.f32.xlu0 %v1615
      %v1617 = vpop.xlane.xlu0 %1616
      %v1618 = vsel %vm1521, %v207, 0.0
      %1619 = vadd.xlane.f32.xlu0 %v1618
      %v1620 = vpop.xlane.xlu0 %1619
      %v1621 = vsel %vm1521, %v208, 0.0
      %1622 = vadd.xlane.f32.xlu0 %v1621
      %v1623 = vpop.xlane.xlu0 %1622
      %v1624 = vsel %vm1521, %v209, 0.0
      %1625 = vadd.xlane.f32.xlu0 %v1624
      %v1626 = vpop.xlane.xlu0 %1625
      %v1627 = vsel %vm1521, %v210, 0.0
      %1628 = vadd.xlane.f32.xlu0 %v1627
      %v1629 = vpop.xlane.xlu0 %1628
      %v1630 = vsel %vm1521, %v211, 0.0
      %1631 = vadd.xlane.f32.xlu0 %v1630
      %v1632 = vpop.xlane.xlu0 %1631
      %v1633 = vsel %vm1521, %v212, 0.0
      %1634 = vadd.xlane.f32.xlu0 %v1633
      %v1635 = vpop.xlane.xlu0 %1634
      %v1636 = vsel %vm1521, %v213, 0.0
      %1637 = vadd.xlane.f32.xlu0 %v1636
      %v1638 = vpop.xlane.xlu0 %1637
      %v1639 = vsel %vm1521, %v214, 0.0
      %1640 = vadd.xlane.f32.xlu0 %v1639
      %v1641 = vpop.xlane.xlu0 %1640
      %v1642 = vsel %vm1521, %v215, 0.0
      %1643 = vadd.xlane.f32.xlu0 %v1642
      %v1644 = vpop.xlane.xlu0 %1643
      %v1645 = vsel %vm1521, %v216, 0.0
      %1646 = vadd.xlane.f32.xlu0 %v1645
      %v1647 = vpop.xlane.xlu0 %1646
      %v1648 = vsel %vm1521, %v217, 0.0
      %1649 = vadd.xlane.f32.xlu0 %v1648
      %v1650 = vpop.xlane.xlu0 %1649
      %v1651 = vsel %vm1521, %v218, 0.0
      %1652 = vadd.xlane.f32.xlu0 %v1651
      %v1653 = vpop.xlane.xlu0 %1652
      %v1654 = vsel %vm1521, %v219, 0.0
      %1655 = vadd.xlane.f32.xlu0 %v1654
      %v1656 = vpop.xlane.xlu0 %1655
      %v1657 = vsel %vm1521, %v220, 0.0
      %1658 = vadd.xlane.f32.xlu0 %v1657
      %v1659 = vpop.xlane.xlu0 %1658
      %v1660 = vsel %vm1521, %v221, 0.0
      %1661 = vadd.xlane.f32.xlu0 %v1660
      %v1662 = vpop.xlane.xlu0 %1661
      %v1663 = vsel %vm1521, %v222, 0.0
      %1664 = vadd.xlane.f32.xlu0 %v1663
      %v1665 = vpop.xlane.xlu0 %1664
      %v1666 = vsel %vm1521, %v223, 0.0
      %1667 = vadd.xlane.f32.xlu0 %v1666
      %v1668 = vpop.xlane.xlu0 %1667
      %v1669 = vsel %vm1521, %v224, 0.0
      %1670 = vadd.xlane.f32.xlu0 %v1669
      %v1671 = vpop.xlane.xlu0 %1670
      %v1672 = vsel %vm1521, %v225, 0.0
      %1673 = vadd.xlane.f32.xlu0 %v1672
      %v1674 = vpop.xlane.xlu0 %1673
      %v1675 = vsel %vm1521, %v226, 0.0
      %1676 = vadd.xlane.f32.xlu0 %v1675
      %v1677 = vpop.xlane.xlu0 %1676
      %v1678 = vsel %vm1521, %v227, 0.0
      %1679 = vadd.xlane.f32.xlu0 %v1678
      %v1680 = vpop.xlane.xlu0 %1679
      %v1681 = vsel %vm1521, %v228, 0.0
      %1682 = vadd.xlane.f32.xlu0 %v1681
      %v1683 = vpop.xlane.xlu0 %1682
      %v1684 = vsel %vm1521, %v229, 0.0
      %1685 = vadd.xlane.f32.xlu0 %v1684
      %v1686 = vpop.xlane.xlu0 %1685
      %v1687 = vsel %vm1521, %v230, 0.0
      %1688 = vadd.xlane.f32.xlu0 %v1687
      %v1689 = vpop.xlane.xlu0 %1688
      %v1690 = vsel %vm1521, %v231, 0.0
      %1691 = vadd.xlane.f32.xlu0 %v1690
      %v1692 = vpop.xlane.xlu0 %1691
      %v1693 = vsel %vm1521, %v232, 0.0
      %1694 = vadd.xlane.f32.xlu0 %v1693
      %v1695 = vpop.xlane.xlu0 %1694
      %v1696 = vsel %vm1521, %v233, 0.0
      %1697 = vadd.xlane.f32.xlu0 %v1696
      %v1698 = vpop.xlane.xlu0 %1697
      %v1699 = vsel %vm1521, %v234, 0.0
      %1700 = vadd.xlane.f32.xlu0 %v1699
      %v1701 = vpop.xlane.xlu0 %1700
      %v1702 = vsel %vm1521, %v235, 0.0
      %1703 = vadd.xlane.f32.xlu0 %v1702
      %v1704 = vpop.xlane.xlu0 %1703
      %v1705 = vsel %vm1521, %v236, 0.0
      %1706 = vadd.xlane.f32.xlu0 %v1705
      %v1707 = vpop.xlane.xlu0 %1706
      %v1708 = vsel %vm1521, %v237, 0.0
      %1709 = vadd.xlane.f32.xlu0 %v1708
      %v1710 = vpop.xlane.xlu0 %1709
      %v1711 = vsel %vm1521, %v238, 0.0
      %1712 = vadd.xlane.f32.xlu0 %v1711
      %v1713 = vpop.xlane.xlu0 %1712
      %v1714 = vsel %vm1521, %v239, 0.0
      %1715 = vadd.xlane.f32.xlu0 %v1714
      %v1716 = vpop.xlane.xlu0 %1715
      %v1717 = vsel %vm1521, %v240, 0.0
      %1718 = vadd.xlane.f32.xlu0 %v1717
      %v1719 = vpop.xlane.xlu0 %1718
      %v1720 = vsel %vm1521, %v241, 0.0
      %1721 = vadd.xlane.f32.xlu0 %v1720
      %v1722 = vpop.xlane.xlu0 %1721
      %v1723 = vsel %vm1521, %v242, 0.0
      %1724 = vadd.xlane.f32.xlu0 %v1723
      %v1725 = vpop.xlane.xlu0 %1724
      %v1726 = vsel %vm1521, %v243, 0.0
      %1727 = vadd.xlane.f32.xlu0 %v1726
      %v1728 = vpop.xlane.xlu0 %1727
      %v1729 = vsel %vm1521, %v244, 0.0
      %1730 = vadd.xlane.f32.xlu0 %v1729
      %v1731 = vpop.xlane.xlu0 %1730
      %v1732 = vsel %vm1521, %v245, 0.0
      %1733 = vadd.xlane.f32.xlu0 %v1732
      %v1734 = vpop.xlane.xlu0 %1733
      %v1735 = vsel %vm1521, %v246, 0.0
      %1736 = vadd.xlane.f32.xlu0 %v1735
      %v1737 = vpop.xlane.xlu0 %1736
      %v1738 = vsel %vm1521, %v247, 0.0
      %1739 = vadd.xlane.f32.xlu0 %v1738
      %v1740 = vpop.xlane.xlu0 %1739
      %v1741 = vsel %vm1521, %v248, 0.0
      %1742 = vadd.xlane.f32.xlu0 %v1741
      %v1743 = vpop.xlane.xlu0 %1742
      %v1744 = vsel %vm1521, %v249, 0.0
      %1745 = vadd.xlane.f32.xlu0 %v1744
      %v1746 = vpop.xlane.xlu0 %1745
      %v1747 = vsel %vm1521, %v250, 0.0
      %1748 = vadd.xlane.f32.xlu0 %v1747
      %v1749 = vpop.xlane.xlu0 %1748
      %v1750 = vsel %vm1521, %v251, 0.0
      %1751 = vadd.xlane.f32.xlu0 %v1750
      %v1752 = vpop.xlane.xlu0 %1751
      %v1753 = vsel %vm1521, %v252, 0.0
      %1754 = vadd.xlane.f32.xlu0 %v1753
      %v1755 = vpop.xlane.xlu0 %1754
      %v1756 = vsel %vm1521, %v253, 0.0
      %1757 = vadd.xlane.f32.xlu0 %v1756
      %v1758 = vpop.xlane.xlu0 %1757
      %v1759 = vsel %vm1521, %v254, 0.0
      %1760 = vadd.xlane.f32.xlu0 %v1759
      %v1761 = vpop.xlane.xlu0 %1760
      %v1762 = vsel %vm1521, %v255, 0.0
      %1763 = vadd.xlane.f32.xlu0 %v1762
      %v1764 = vpop.xlane.xlu0 %1763
      %v1765 = vsel %vm1521, %v256, 0.0
      %1766 = vadd.xlane.f32.xlu0 %v1765
      %v1767 = vpop.xlane.xlu0 %1766
      %v1768 = vsel %vm1521, %v257, 0.0
      %1769 = vadd.xlane.f32.xlu0 %v1768
      %v1770 = vpop.xlane.xlu0 %1769
      %v1771 = vsel %vm1521, %v258, 0.0
      %1772 = vadd.xlane.f32.xlu0 %v1771
      %v1773 = vpop.xlane.xlu0 %1772
      %v1774 = vsel %vm1521, %v259, 0.0
      %1775 = vadd.xlane.f32.xlu0 %v1774
      %v1776 = vpop.xlane.xlu0 %1775
      %v1777 = vsel %vm1521, %v260, 0.0
      %1778 = vadd.xlane.f32.xlu0 %v1777
      %v1779 = vpop.xlane.xlu0 %1778
      %v1780 = vsel %vm1521, %v261, 0.0
      %1781 = vadd.xlane.f32.xlu0 %v1780
      %v1782 = vpop.xlane.xlu0 %1781
      %v1783 = vsel %vm1521, %v262, 0.0
      %1784 = vadd.xlane.f32.xlu0 %v1783
      %v1785 = vpop.xlane.xlu0 %1784
      %v1786 = vsel %vm1521, %v263, 0.0
      %1787 = vadd.xlane.f32.xlu0 %v1786
      %v1788 = vpop.xlane.xlu0 %1787
      %v1789 = vsel %vm1521, %v264, 0.0
      %1790 = vadd.xlane.f32.xlu0 %v1789
      %v1791 = vpop.xlane.xlu0 %1790
      %v1792 = vsel %vm1521, %v265, 0.0
      %1793 = vadd.xlane.f32.xlu0 %v1792
      %v1794 = vpop.xlane.xlu0 %1793
      %v1795 = vsel %vm1521, %v266, 0.0
      %1796 = vadd.xlane.f32.xlu0 %v1795
      %v1797 = vpop.xlane.xlu0 %1796
      %v1798 = vsel %vm1521, %v267, 0.0
      %1799 = vadd.xlane.f32.xlu0 %v1798
      %v1800 = vpop.xlane.xlu0 %1799
      %v1801 = vsel %vm1521, %v268, 0.0
      %1802 = vadd.xlane.f32.xlu0 %v1801
      %v1803 = vpop.xlane.xlu0 %1802
      %v1804 = vsel %vm1521, %v269, 0.0
      %1805 = vadd.xlane.f32.xlu0 %v1804
      %v1806 = vpop.xlane.xlu0 %1805
      %v1807 = vsel %vm1521, %v270, 0.0
      %1808 = vadd.xlane.f32.xlu0 %v1807
      %v1809 = vpop.xlane.xlu0 %1808
      %v1810 = vsel %vm1521, %v271, 0.0
      %1811 = vadd.xlane.f32.xlu0 %v1810
      %v1812 = vpop.xlane.xlu0 %1811
      %v1813 = vsel %vm1521, %v272, 0.0
      %1814 = vadd.xlane.f32.xlu0 %v1813
      %v1815 = vpop.xlane.xlu0 %1814
      %v1816 = vsel %vm1521, %v273, 0.0
      %1817 = vadd.xlane.f32.xlu0 %v1816
      %v1818 = vpop.xlane.xlu0 %1817
      %v1819 = vsel %vm1521, %v274, 0.0
      %1820 = vadd.xlane.f32.xlu0 %v1819
      %v1821 = vpop.xlane.xlu0 %1820
      %v1822 = vsel %vm1521, %v275, 0.0
      %1823 = vadd.xlane.f32.xlu0 %v1822
      %v1824 = vpop.xlane.xlu0 %1823
      %v1825 = vsel %vm1521, %v276, 0.0
      %1826 = vadd.xlane.f32.xlu0 %v1825
      %v1827 = vpop.xlane.xlu0 %1826
      %v1828 = vsel %vm1521, %v277, 0.0
      %1829 = vadd.xlane.f32.xlu0 %v1828
      %v1830 = vpop.xlane.xlu0 %1829
      %v1831 = vsel %vm1521, %v278, 0.0
      %1832 = vadd.xlane.f32.xlu0 %v1831
      %v1833 = vpop.xlane.xlu0 %1832
      %v1834 = vsel %vm1521, %v279, 0.0
      %1835 = vadd.xlane.f32.xlu0 %v1834
      %v1836 = vpop.xlane.xlu0 %1835
      %v1837 = vsel %vm1521, %v280, 0.0
      %1838 = vadd.xlane.f32.xlu0 %v1837
      %v1839 = vpop.xlane.xlu0 %1838
      %v1840 = vsel %vm1521, %v281, 0.0
      %1841 = vadd.xlane.f32.xlu0 %v1840
      %v1842 = vpop.xlane.xlu0 %1841
      %v1843 = vsel %vm1521, %v282, 0.0
      %1844 = vadd.xlane.f32.xlu0 %v1843
      %v1845 = vpop.xlane.xlu0 %1844
      %v1846 = vsel %vm1521, %v283, 0.0
      %1847 = vadd.xlane.f32.xlu0 %v1846
      %v1848 = vpop.xlane.xlu0 %1847
      %v1849 = vsel %vm1521, %v284, 0.0
      %1850 = vadd.xlane.f32.xlu0 %v1849
      %v1851 = vpop.xlane.xlu0 %1850
      %v1852 = vsel %vm1521, %v285, 0.0
      %1853 = vadd.xlane.f32.xlu0 %v1852
      %v1854 = vpop.xlane.xlu0 %1853
      %v1855 = vsel %vm1521, %v286, 0.0
      %1856 = vadd.xlane.f32.xlu0 %v1855
      %v1857 = vpop.xlane.xlu0 %1856
      %v1858 = vsel %vm1521, %v287, 0.0
      %1859 = vadd.xlane.f32.xlu0 %v1858
      %v1860 = vpop.xlane.xlu0 %1859
      %v1861 = vsel %vm1521, %v288, 0.0
      %1862 = vadd.xlane.f32.xlu0 %v1861
      %v1863 = vpop.xlane.xlu0 %1862
      %v1864 = vsel %vm1521, %v289, 0.0
      %1865 = vadd.xlane.f32.xlu0 %v1864
      %v1866 = vpop.xlane.xlu0 %1865
      %v1867 = vsel %vm1521, %v290, 0.0
      %1868 = vadd.xlane.f32.xlu0 %v1867
      %v1869 = vpop.xlane.xlu0 %1868
      %v1870 = vsel %vm1521, %v291, 0.0
      %1871 = vadd.xlane.f32.xlu0 %v1870
      %v1872 = vpop.xlane.xlu0 %1871
      %v1873 = vsel %vm1521, %v292, 0.0
      %1874 = vadd.xlane.f32.xlu0 %v1873
      %v1875 = vpop.xlane.xlu0 %1874
      %v1876 = vsel %vm1521, %v293, 0.0
      %1877 = vadd.xlane.f32.xlu0 %v1876
      %v1878 = vpop.xlane.xlu0 %1877
      %v1879 = vsel %vm1521, %v294, 0.0
      %1880 = vadd.xlane.f32.xlu0 %v1879
      %v1881 = vpop.xlane.xlu0 %1880
      %v1882 = vsel %vm1521, %v295, 0.0
      %1883 = vadd.xlane.f32.xlu0 %v1882
      %v1884 = vpop.xlane.xlu0 %1883
      %v1885 = vsel %vm1521, %v296, 0.0
      %1886 = vadd.xlane.f32.xlu0 %v1885
      %v1887 = vpop.xlane.xlu0 %1886
      %v1888 = vsel %vm1521, %v297, 0.0
      %1889 = vadd.xlane.f32.xlu0 %v1888
      %v1890 = vpop.xlane.xlu0 %1889
      %v1891 = vsel %vm1521, %v298, 0.0
      %1892 = vadd.xlane.f32.xlu0 %v1891
      %v1893 = vpop.xlane.xlu0 %1892
      %v1894 = vsel %vm1521, %v299, 0.0
      %1895 = vadd.xlane.f32.xlu0 %v1894
      %v1896 = vpop.xlane.xlu0 %1895
      %v1897 = vsel %vm1521, %v300, 0.0
      %1898 = vadd.xlane.f32.xlu0 %v1897
      %v1899 = vpop.xlane.xlu0 %1898
      %v1900 = vsel %vm1521, %v301, 0.0
      %1901 = vadd.xlane.f32.xlu0 %v1900
      %v1902 = vpop.xlane.xlu0 %1901
      %v1903 = vsel %vm1521, %v302, 0.0
      %1904 = vadd.xlane.f32.xlu0 %v1903
      %v1905 = vpop.xlane.xlu0 %1904
      %v1906 = vsel %vm1521, %v303, 0.0
      %1907 = vadd.xlane.f32.xlu0 %v1906
      %v1908 = vpop.xlane.xlu0 %1907
      %v1909 = vsel %vm1521, %v304, 0.0
      %1910 = vadd.xlane.f32.xlu0 %v1909
      %v1911 = vpop.xlane.xlu0 %1910
      %v1912 = vsel %vm1521, %v305, 0.0
      %1913 = vadd.xlane.f32.xlu0 %v1912
      %v1914 = vpop.xlane.xlu0 %1913
      %v1915 = vsel %vm1521, %v306, 0.0
      %1916 = vadd.xlane.f32.xlu0 %v1915
      %v1917 = vpop.xlane.xlu0 %1916
      %v1918 = vsel %vm1521, %v307, 0.0
      %1919 = vadd.xlane.f32.xlu0 %v1918
      %v1920 = vpop.xlane.xlu0 %1919
      %v1921 = vsel %vm1521, %v308, 0.0
      %1922 = vadd.xlane.f32.xlu0 %v1921
      %v1923 = vpop.xlane.xlu0 %1922
      %v1924 = vsel %vm1521, %v309, 0.0
      %1925 = vadd.xlane.f32.xlu0 %v1924
      %v1926 = vpop.xlane.xlu0 %1925
      %v1927 = vsel %vm1521, %v310, 0.0
      %1928 = vadd.xlane.f32.xlu0 %v1927
      %v1929 = vpop.xlane.xlu0 %1928
      %v1930 = vsel %vm1521, %v311, 0.0
      %1931 = vadd.xlane.f32.xlu0 %v1930
      %v1932 = vpop.xlane.xlu0 %1931
      %v1933 = vsel %vm1521, %v312, 0.0
      %1934 = vadd.xlane.f32.xlu0 %v1933
      %v1935 = vpop.xlane.xlu0 %1934
      %v1936 = vsel %vm1521, %v313, 0.0
      %1937 = vadd.xlane.f32.xlu0 %v1936
      %v1938 = vpop.xlane.xlu0 %1937
      %v1939 = vsel %vm1521, %v314, 0.0
      %1940 = vadd.xlane.f32.xlu0 %v1939
      %v1941 = vpop.xlane.xlu0 %1940
      %v1942 = vsel %vm1521, %v315, 0.0
      %1943 = vadd.xlane.f32.xlu0 %v1942
      %v1944 = vpop.xlane.xlu0 %1943
      %v1945 = vsel %vm1521, %v316, 0.0
      %1946 = vadd.xlane.f32.xlu0 %v1945
      %v1947 = vpop.xlane.xlu0 %1946
      %v1948 = vsel %vm1521, %v317, 0.0
      %1949 = vadd.xlane.f32.xlu0 %v1948
      %v1950 = vpop.xlane.xlu0 %1949
      %v1951 = vsel %vm1521, %v318, 0.0
      %1952 = vadd.xlane.f32.xlu0 %v1951
      %v1953 = vpop.xlane.xlu0 %1952
      %v1954 = vsel %vm1521, %v319, 0.0
      %1955 = vadd.xlane.f32.xlu0 %v1954
      %v1956 = vpop.xlane.xlu0 %1955
      %v1957 = vsel %vm1521, %v320, 0.0
      %1958 = vadd.xlane.f32.xlu0 %v1957
      %v1959 = vpop.xlane.xlu0 %1958
      %v1960 = vsel %vm1521, %v321, 0.0
      %1961 = vadd.xlane.f32.xlu0 %v1960
      %v1962 = vpop.xlane.xlu0 %1961
      %v1963 = vsel %vm1521, %v322, 0.0
      %1964 = vadd.xlane.f32.xlu0 %v1963
      %v1965 = vpop.xlane.xlu0 %1964
      %v1966 = vsel %vm1521, %v323, 0.0
      %1967 = vadd.xlane.f32.xlu0 %v1966
      %v1968 = vpop.xlane.xlu0 %1967
      %v1969 = vsel %vm1521, %v324, 0.0
      %1970 = vadd.xlane.f32.xlu0 %v1969
      %v1971 = vpop.xlane.xlu0 %1970
      %v1972 = vsel %vm1521, %v325, 0.0
      %1973 = vadd.xlane.f32.xlu0 %v1972
      %v1974 = vpop.xlane.xlu0 %1973
      %v1975 = vsel %vm1521, %v326, 0.0
      %1976 = vadd.xlane.f32.xlu0 %v1975
      %v1977 = vpop.xlane.xlu0 %1976
      %v1978 = vsel %vm1521, %v327, 0.0
      %1979 = vadd.xlane.f32.xlu0 %v1978
      %v1980 = vpop.xlane.xlu0 %1979
      %v1981 = vsel %vm1521, %v328, 0.0
      %1982 = vadd.xlane.f32.xlu0 %v1981
      %v1983 = vpop.xlane.xlu0 %1982
      %v1984 = vsel %vm1521, %v329, 0.0
      %1985 = vadd.xlane.f32.xlu0 %v1984
      %v1986 = vpop.xlane.xlu0 %1985
      %v1987 = vsel %vm1521, %v330, 0.0
      %1988 = vadd.xlane.f32.xlu0 %v1987
      %v1989 = vpop.xlane.xlu0 %1988
      %v1990 = vsel %vm1521, %v331, 0.0
      %1991 = vadd.xlane.f32.xlu0 %v1990
      %v1992 = vpop.xlane.xlu0 %1991
      %v1993 = vsel %vm1521, %v332, 0.0
      %1994 = vadd.xlane.f32.xlu0 %v1993
      %v1995 = vpop.xlane.xlu0 %1994
      %v1996 = vsel %vm1521, %v333, 0.0
      %1997 = vadd.xlane.f32.xlu0 %v1996
      %v1998 = vpop.xlane.xlu0 %1997
      %v1999 = vsel %vm1521, %v334, 0.0
      %2000 = vadd.xlane.f32.xlu0 %v1999
      %v2001 = vpop.xlane.xlu0 %2000
      %v2002 = vsel %vm1521, %v335, 0.0
      %2003 = vadd.xlane.f32.xlu0 %v2002
      %v2004 = vpop.xlane.xlu0 %2003
      %v2005 = vsel %vm1521, %v336, 0.0
      %2006 = vadd.xlane.f32.xlu0 %v2005
      %v2007 = vpop.xlane.xlu0 %2006
      %v2008 = vsel %vm1521, %v337, 0.0
      %2009 = vadd.xlane.f32.xlu0 %v2008
      %v2010 = vpop.xlane.xlu0 %2009
      %v2011 = vsel %vm1521, %v338, 0.0
      %2012 = vadd.xlane.f32.xlu0 %v2011
      %v2013 = vpop.xlane.xlu0 %2012
      %v2014 = vsel %vm1521, %v339, 0.0
      %2015 = vadd.xlane.f32.xlu0 %v2014
      %v2016 = vpop.xlane.xlu0 %2015
      %v2017 = vsel %vm1521, %v340, 0.0
      %2018 = vadd.xlane.f32.xlu0 %v2017
      %v2019 = vpop.xlane.xlu0 %2018
      %v2020 = vsel %vm1521, %v341, 0.0
      %2021 = vadd.xlane.f32.xlu0 %v2020
      %v2022 = vpop.xlane.xlu0 %2021
      %v2023 = vsel %vm1521, %v342, 0.0
      %2024 = vadd.xlane.f32.xlu0 %v2023
      %v2025 = vpop.xlane.xlu0 %2024
      %v2026 = vsel %vm1521, %v343, 0.0
      %2027 = vadd.xlane.f32.xlu0 %v2026
      %v2028 = vpop.xlane.xlu0 %2027
      %v2029 = vsel %vm1521, %v344, 0.0
      %2030 = vadd.xlane.f32.xlu0 %v2029
      %v2031 = vpop.xlane.xlu0 %2030
      %v2032 = vsel %vm1521, %v345, 0.0
      %2033 = vadd.xlane.f32.xlu0 %v2032
      %v2034 = vpop.xlane.xlu0 %2033
      %v2035 = vsel %vm1521, %v346, 0.0
      %2036 = vadd.xlane.f32.xlu0 %v2035
      %v2037 = vpop.xlane.xlu0 %2036
      %v2038 = vsel %vm1521, %v347, 0.0
      %2039 = vadd.xlane.f32.xlu0 %v2038
      %v2040 = vpop.xlane.xlu0 %2039
      %v2041 = vsel %vm1521, %v348, 0.0
      %2042 = vadd.xlane.f32.xlu0 %v2041
      %v2043 = vpop.xlane.xlu0 %2042
      %v2044 = vsel %vm1521, %v349, 0.0
      %2045 = vadd.xlane.f32.xlu0 %v2044
      %v2046 = vpop.xlane.xlu0 %2045
      %v2047 = vsel %vm1521, %v350, 0.0
      %2048 = vadd.xlane.f32.xlu0 %v2047
      %v2049 = vpop.xlane.xlu0 %2048
      %v2050 = vsel %vm1521, %v351, 0.0
      %2051 = vadd.xlane.f32.xlu0 %v2050
      %v2052 = vpop.xlane.xlu0 %2051
      %v2053 = vsel %vm1521, %v352, 0.0
      %2054 = vadd.xlane.f32.xlu0 %v2053
      %v2055 = vpop.xlane.xlu0 %2054
      %v2056 = vsel %vm1521, %v353, 0.0
      %2057 = vadd.xlane.f32.xlu0 %v2056
      %v2058 = vpop.xlane.xlu0 %2057
      %v2059 = vsel %vm1521, %v354, 0.0
      %2060 = vadd.xlane.f32.xlu0 %v2059
      %v2061 = vpop.xlane.xlu0 %2060
      %v2062 = vsel %vm1521, %v355, 0.0
      %2063 = vadd.xlane.f32.xlu0 %v2062
      %v2064 = vpop.xlane.xlu0 %2063
      %v2065 = vsel %vm1521, %v356, 0.0
      %2066 = vadd.xlane.f32.xlu0 %v2065
      %v2067 = vpop.xlane.xlu0 %2066
      %v2068 = vsel %vm1521, %v357, 0.0
      %2069 = vadd.xlane.f32.xlu0 %v2068
      %v2070 = vpop.xlane.xlu0 %2069
      %v2071 = vsel %vm1521, %v358, 0.0
      %2072 = vadd.xlane.f32.xlu0 %v2071
      %v2073 = vpop.xlane.xlu0 %2072
      %v2074 = vsel %vm1521, %v359, 0.0
      %2075 = vadd.xlane.f32.xlu0 %v2074
      %v2076 = vpop.xlane.xlu0 %2075
      %v2077 = vsel %vm1521, %v360, 0.0
      %2078 = vadd.xlane.f32.xlu0 %v2077
      %v2079 = vpop.xlane.xlu0 %2078
      %v2080 = vsel %vm1521, %v361, 0.0
      %2081 = vadd.xlane.f32.xlu0 %v2080
      %v2082 = vpop.xlane.xlu0 %2081
      %v2083 = vsel %vm1521, %v362, 0.0
      %2084 = vadd.xlane.f32.xlu0 %v2083
      %v2085 = vpop.xlane.xlu0 %2084
      %v2086 = vsel %vm1521, %v363, 0.0
      %2087 = vadd.xlane.f32.xlu0 %v2086
      %v2088 = vpop.xlane.xlu0 %2087
      %v2089 = vsel %vm1521, %v364, 0.0
      %2090 = vadd.xlane.f32.xlu0 %v2089
      %v2091 = vpop.xlane.xlu0 %2090
      %v2092 = vsel %vm1521, %v365, 0.0
      %2093 = vadd.xlane.f32.xlu0 %v2092
      %v2094 = vpop.xlane.xlu0 %2093
      %v2095 = vsel %vm1521, %v366, 0.0
      %2096 = vadd.xlane.f32.xlu0 %v2095
      %v2097 = vpop.xlane.xlu0 %2096
      %v2098 = vmul.f32 %v947, 0.071428575
      %v2099 = vmul.f32 %v950, 0.071428575
      %v2100 = vmul.f32 %v953, 0.071428575
      %v2101 = vmul.f32 %v956, 0.071428575
      %v2102 = vmul.f32 %v959, 0.071428575
      %v2103 = vmul.f32 %v962, 0.071428575
      %v2104 = vmul.f32 %v965, 0.071428575
      %v2105 = vmul.f32 %v968, 0.071428575
      %v2106 = vmul.f32 %v971, 0.071428575
      %v2107 = vmul.f32 %v974, 0.071428575
      %v2108 = vmul.f32 %v977, 0.071428575
      %v2109 = vmul.f32 %v980, 0.071428575
      %v2110 = vmul.f32 %v983, 0.071428575
      %v2111 = vmul.f32 %v986, 0.071428575
      %v2112 = vmul.f32 %v989, 0.071428575
      %v2113 = vmul.f32 %v992, 0.071428575
      %v2114 = vmul.f32 %v995, 0.071428575
      %v2115 = vmul.f32 %v998, 0.071428575
      %v2116 = vmul.f32 %v1001, 0.071428575
      %v2117 = vmul.f32 %v1004, 0.071428575
      %v2118 = vmul.f32 %v1007, 0.071428575
      %v2119 = vmul.f32 %v1010, 0.071428575
      %v2120 = vmul.f32 %v1013, 0.071428575
      %v2121 = vmul.f32 %v1016, 0.071428575
      %v2122 = vmul.f32 %v1019, 0.071428575
      %v2123 = vmul.f32 %v1022, 0.071428575
      %v2124 = vmul.f32 %v1025, 0.071428575
      %v2125 = vmul.f32 %v1028, 0.071428575
      %v2126 = vmul.f32 %v1031, 0.071428575
      %v2127 = vmul.f32 %v1034, 0.071428575
      %v2128 = vmul.f32 %v1037, 0.071428575
      %v2129 = vmul.f32 %v1040, 0.071428575
      %v2130 = vmul.f32 %v1043, 0.071428575
      %v2131 = vmul.f32 %v1046, 0.071428575
      %v2132 = vmul.f32 %v1049, 0.071428575
      %v2133 = vmul.f32 %v1052, 0.071428575
      %v2134 = vmul.f32 %v1055, 0.071428575
      %v2135 = vmul.f32 %v1058, 0.071428575
      %v2136 = vmul.f32 %v1061, 0.071428575
      %v2137 = vmul.f32 %v1064, 0.071428575
      %v2138 = vmul.f32 %v1067, 0.071428575
      %v2139 = vmul.f32 %v1070, 0.071428575
      %v2140 = vmul.f32 %v1073, 0.071428575
      %v2141 = vmul.f32 %v1076, 0.071428575
      %v2142 = vmul.f32 %v1079, 0.071428575
      %v2143 = vmul.f32 %v1082, 0.071428575
      %v2144 = vmul.f32 %v1085, 0.071428575
      %v2145 = vmul.f32 %v1088, 0.071428575
      %v2146 = vmul.f32 %v1091, 0.071428575
      %v2147 = vmul.f32 %v1094, 0.071428575
      %v2148 = vmul.f32 %v1097, 0.071428575
      %v2149 = vmul.f32 %v1100, 0.071428575
      %v2150 = vmul.f32 %v1103, 0.071428575
      %v2151 = vmul.f32 %v1106, 0.071428575
      %v2152 = vmul.f32 %v1109, 0.071428575
      %v2153 = vmul.f32 %v1112, 0.071428575
      %v2154 = vmul.f32 %v1115, 0.071428575
      %v2155 = vmul.f32 %v1118, 0.071428575
      %v2156 = vmul.f32 %v1121, 0.071428575
      %v2157 = vmul.f32 %v1124, 0.071428575
      %v2158 = vmul.f32 %v1127, 0.071428575
      %v2159 = vmul.f32 %v1130, 0.071428575
      %v2160 = vmul.f32 %v1133, 0.071428575
      %v2161 = vmul.f32 %v1136, 0.071428575
      %v2162 = vmul.f32 %v1139, 0.071428575
      %v2163 = vmul.f32 %v1142, 0.071428575
      %v2164 = vmul.f32 %v1145, 0.071428575
      %v2165 = vmul.f32 %v1148, 0.071428575
      %v2166 = vmul.f32 %v1151, 0.071428575
      %v2167 = vmul.f32 %v1154, 0.071428575
      %v2168 = vmul.f32 %v1157, 0.071428575
      %v2169 = vmul.f32 %v1160, 0.071428575
      %v2170 = vmul.f32 %v1163, 0.071428575
      %v2171 = vmul.f32 %v1166, 0.071428575
      %v2172 = vmul.f32 %v1169, 0.071428575
      %v2173 = vmul.f32 %v1172, 0.071428575
      %v2174 = vmul.f32 %v1175, 0.071428575
      %v2175 = vmul.f32 %v1178, 0.071428575
      %v2176 = vmul.f32 %v1181, 0.071428575
      %v2177 = vmul.f32 %v1184, 0.071428575
      %v2178 = vmul.f32 %v1187, 0.071428575
      %v2179 = vmul.f32 %v1190, 0.071428575
      %v2180 = vmul.f32 %v1193, 0.071428575
      %v2181 = vmul.f32 %v1196, 0.071428575
      %v2182 = vmul.f32 %v1199, 0.071428575
      %v2183 = vmul.f32 %v1202, 0.071428575
      %v2184 = vmul.f32 %v1205, 0.071428575
      %v2185 = vmul.f32 %v1208, 0.071428575
      %v2186 = vmul.f32 %v1211, 0.071428575
      %v2187 = vmul.f32 %v1214, 0.071428575
      %v2188 = vmul.f32 %v1217, 0.071428575
      %v2189 = vmul.f32 %v1220, 0.071428575
      %v2190 = vmul.f32 %v1223, 0.071428575
      %v2191 = vmul.f32 %v1226, 0.071428575
      %v2192 = vmul.f32 %v1229, 0.071428575
      %v2193 = vmul.f32 %v1232, 0.071428575
      %v2194 = vmul.f32 %v1235, 0.071428575
      %v2195 = vmul.f32 %v1238, 0.071428575
      %v2196 = vmul.f32 %v1241, 0.071428575
      %v2197 = vmul.f32 %v1244, 0.071428575
      %v2198 = vmul.f32 %v1247, 0.071428575
      %v2199 = vmul.f32 %v1250, 0.071428575
      %v2200 = vmul.f32 %v1253, 0.071428575
      %v2201 = vmul.f32 %v1256, 0.071428575
      %v2202 = vmul.f32 %v1259, 0.071428575
      %v2203 = vmul.f32 %v1262, 0.071428575
      %v2204 = vmul.f32 %v1265, 0.071428575
      %v2205 = vmul.f32 %v1268, 0.071428575
      %v2206 = vmul.f32 %v1271, 0.071428575
      %v2207 = vmul.f32 %v1274, 0.071428575
      %v2208 = vmul.f32 %v1277, 0.071428575
      %v2209 = vmul.f32 %v1280, 0.071428575
      %v2210 = vmul.f32 %v1283, 0.071428575
      %v2211 = vmul.f32 %v1286, 0.071428575
      %v2212 = vmul.f32 %v1289, 0.071428575
      %v2213 = vmul.f32 %v1292, 0.071428575
      %v2214 = vmul.f32 %v1295, 0.071428575
      %v2215 = vmul.f32 %v1298, 0.071428575
      %v2216 = vmul.f32 %v1301, 0.071428575
      %v2217 = vmul.f32 %v1304, 0.071428575
      %v2218 = vmul.f32 %v1307, 0.071428575
      %v2219 = vmul.f32 %v1310, 0.071428575
      %v2220 = vmul.f32 %v1313, 0.071428575
      %v2221 = vmul.f32 %v1316, 0.071428575
      %v2222 = vmul.f32 %v1319, 0.071428575
      %v2223 = vmul.f32 %v1322, 0.071428575
      %v2224 = vmul.f32 %v1325, 0.071428575
      %v2225 = vmul.f32 %v1328, 0.071428575
      %v2226 = vmul.f32 %v1331, 0.071428575
      %v2227 = vmul.f32 %v1334, 0.071428575
      %v2228 = vmul.f32 %v1337, 0.071428575
      %v2229 = vmul.f32 %v1340, 0.071428575
      %v2230 = vmul.f32 %v1343, 0.071428575
      %v2231 = vmul.f32 %v1346, 0.071428575
      %v2232 = vmul.f32 %v1349, 0.071428575
      %v2233 = vmul.f32 %v1352, 0.071428575
      %v2234 = vmul.f32 %v1355, 0.071428575
      %v2235 = vmul.f32 %v1358, 0.071428575
      %v2236 = vmul.f32 %v1361, 0.071428575
      %v2237 = vmul.f32 %v1364, 0.071428575
      %v2238 = vmul.f32 %v1367, 0.071428575
      %v2239 = vmul.f32 %v1370, 0.071428575
      %v2240 = vmul.f32 %v1373, 0.071428575
      %v2241 = vmul.f32 %v1376, 0.071428575
      %v2242 = vmul.f32 %v1379, 0.071428575
      %v2243 = vmul.f32 %v1382, 0.071428575
      %v2244 = vmul.f32 %v1385, 0.071428575
      %v2245 = vmul.f32 %v1388, 0.071428575
      %v2246 = vmul.f32 %v1391, 0.071428575
      %v2247 = vmul.f32 %v1394, 0.071428575
      %v2248 = vmul.f32 %v1397, 0.071428575
      %v2249 = vmul.f32 %v1400, 0.071428575
      %v2250 = vmul.f32 %v1403, 0.071428575
      %v2251 = vmul.f32 %v1406, 0.071428575
      %v2252 = vmul.f32 %v1409, 0.071428575
      %v2253 = vmul.f32 %v1412, 0.071428575
      %v2254 = vmul.f32 %v1415, 0.071428575
      %v2255 = vmul.f32 %v1418, 0.071428575
      %v2256 = vmul.f32 %v1421, 0.071428575
      %v2257 = vmul.f32 %v1424, 0.071428575
      %v2258 = vmul.f32 %v1427, 0.071428575
      %v2259 = vmul.f32 %v1430, 0.071428575
      %v2260 = vmul.f32 %v1433, 0.071428575
      %v2261 = vmul.f32 %v1436, 0.071428575
      %v2262 = vmul.f32 %v1439, 0.071428575
      %v2263 = vmul.f32 %v1442, 0.071428575
      %v2264 = vmul.f32 %v1445, 0.071428575
      %v2265 = vmul.f32 %v1448, 0.071428575
      %v2266 = vmul.f32 %v1451, 0.071428575
      %v2267 = vmul.f32 %v1454, 0.071428575
      %v2268 = vmul.f32 %v1457, 0.071428575
      %v2269 = vmul.f32 %v1460, 0.071428575
      %v2270 = vmul.f32 %v1463, 0.071428575
      %v2271 = vmul.f32 %v1466, 0.071428575
      %v2272 = vmul.f32 %v1469, 0.071428575
      %v2273 = vmul.f32 %v1472, 0.071428575
      %v2274 = vmul.f32 %v1475, 0.071428575
      %v2275 = vmul.f32 %v1478, 0.071428575
      %v2276 = vmul.f32 %v1481, 0.071428575
      %v2277 = vmul.f32 %v1484, 0.071428575
      %v2278 = vmul.f32 %v1487, 0.071428575
      %v2279 = vmul.f32 %v1490, 0.071428575
      %v2280 = vmul.f32 %v1493, 0.071428575
      %v2281 = vmul.f32 %v1496, 0.071428575
      %v2282 = vmul.f32 %v1499, 0.071428575
      %v2283 = vmul.f32 %v1502, 0.071428575
      %v2284 = vmul.f32 %v1505, 0.071428575
      %v2285 = vmul.f32 %v1508, 0.071428575
      %v2286 = vmul.f32 %v1511, 0.071428575
      %v2287 = vmul.f32 %v1514, 0.071428575
      %v2288 = vmul.f32 %v1517, 0.071428575
      %v2289 = vmul.f32 %v1520, 0.071428575
      %v2290 = vsub.f32 %v370, %v1524
      %v2291 = vsub.f32 %v373, %v1527
      %v2292 = vsub.f32 %v376, %v1530
      %v2293 = vsub.f32 %v379, %v1533
      %v2294 = vsub.f32 %v382, %v1536
      %v2295 = vsub.f32 %v385, %v1539
      %v2296 = vsub.f32 %v388, %v1542
      %v2297 = vsub.f32 %v391, %v1545
      %v2298 = vsub.f32 %v394, %v1548
      %v2299 = vsub.f32 %v397, %v1551
      %v2300 = vsub.f32 %v400, %v1554
      %v2301 = vsub.f32 %v403, %v1557
      %v2302 = vsub.f32 %v406, %v1560
      %v2303 = vsub.f32 %v409, %v1563
      %v2304 = vsub.f32 %v412, %v1566
      %v2305 = vsub.f32 %v415, %v1569
      %v2306 = vsub.f32 %v418, %v1572
      %v2307 = vsub.f32 %v421, %v1575
      %v2308 = vsub.f32 %v424, %v1578
      %v2309 = vsub.f32 %v427, %v1581
      %v2310 = vsub.f32 %v430, %v1584
      %v2311 = vsub.f32 %v433, %v1587
      %v2312 = vsub.f32 %v436, %v1590
      %v2313 = vsub.f32 %v439, %v1593
      %v2314 = vsub.f32 %v442, %v1596
      %v2315 = vsub.f32 %v445, %v1599
      %v2316 = vsub.f32 %v448, %v1602
      %v2317 = vsub.f32 %v451, %v1605
      %v2318 = vsub.f32 %v454, %v1608
      %v2319 = vsub.f32 %v457, %v1611
      %v2320 = vsub.f32 %v460, %v1614
      %v2321 = vsub.f32 %v463, %v1617
      %v2322 = vsub.f32 %v466, %v1620
      %v2323 = vsub.f32 %v469, %v1623
      %v2324 = vsub.f32 %v472, %v1626
      %v2325 = vsub.f32 %v475, %v1629
      %v2326 = vsub.f32 %v478, %v1632
      %v2327 = vsub.f32 %v481, %v1635
      %v2328 = vsub.f32 %v484, %v1638
      %v2329 = vsub.f32 %v487, %v1641
      %v2330 = vsub.f32 %v490, %v1644
      %v2331 = vsub.f32 %v493, %v1647
      %v2332 = vsub.f32 %v496, %v1650
      %v2333 = vsub.f32 %v499, %v1653
      %v2334 = vsub.f32 %v502, %v1656
      %v2335 = vsub.f32 %v505, %v1659
      %v2336 = vsub.f32 %v508, %v1662
      %v2337 = vsub.f32 %v511, %v1665
      %v2338 = vsub.f32 %v514, %v1668
      %v2339 = vsub.f32 %v517, %v1671
      %v2340 = vsub.f32 %v520, %v1674
      %v2341 = vsub.f32 %v523, %v1677
      %v2342 = vsub.f32 %v526, %v1680
      %v2343 = vsub.f32 %v529, %v1683
      %v2344 = vsub.f32 %v532, %v1686
      %v2345 = vsub.f32 %v535, %v1689
      %v2346 = vsub.f32 %v538, %v1692
      %v2347 = vsub.f32 %v541, %v1695
      %v2348 = vsub.f32 %v544, %v1698
      %v2349 = vsub.f32 %v547, %v1701
      %v2350 = vsub.f32 %v550, %v1704
      %v2351 = vsub.f32 %v553, %v1707
      %v2352 = vsub.f32 %v556, %v1710
      %v2353 = vsub.f32 %v559, %v1713
      %v2354 = vsub.f32 %v562, %v1716
      %v2355 = vsub.f32 %v565, %v1719
      %v2356 = vsub.f32 %v568, %v1722
      %v2357 = vsub.f32 %v571, %v1725
      %v2358 = vsub.f32 %v574, %v1728
      %v2359 = vsub.f32 %v577, %v1731
      %v2360 = vsub.f32 %v580, %v1734
      %v2361 = vsub.f32 %v583, %v1737
      %v2362 = vsub.f32 %v586, %v1740
      %v2363 = vsub.f32 %v589, %v1743
      %v2364 = vsub.f32 %v592, %v1746
      %v2365 = vsub.f32 %v595, %v1749
      %v2366 = vsub.f32 %v598, %v1752
      %v2367 = vsub.f32 %v601, %v1755
      %v2368 = vsub.f32 %v604, %v1758
      %v2369 = vsub.f32 %v607, %v1761
      %v2370 = vsub.f32 %v610, %v1764
      %v2371 = vsub.f32 %v613, %v1767
      %v2372 = vsub.f32 %v616, %v1770
      %v2373 = vsub.f32 %v619, %v1773
      %v2374 = vsub.f32 %v622, %v1776
      %v2375 = vsub.f32 %v625, %v1779
      %v2376 = vsub.f32 %v628, %v1782
      %v2377 = vsub.f32 %v631, %v1785
      %v2378 = vsub.f32 %v634, %v1788
      %v2379 = vsub.f32 %v637, %v1791
      %v2380 = vsub.f32 %v640, %v1794
      %v2381 = vsub.f32 %v643, %v1797
      %v2382 = vsub.f32 %v646, %v1800
      %v2383 = vsub.f32 %v649, %v1803
      %v2384 = vsub.f32 %v652, %v1806
      %v2385 = vsub.f32 %v655, %v1809
      %v2386 = vsub.f32 %v658, %v1812
      %v2387 = vsub.f32 %v661, %v1815
      %v2388 = vsub.f32 %v664, %v1818
      %v2389 = vsub.f32 %v667, %v1821
      %v2390 = vsub.f32 %v670, %v1824
      %v2391 = vsub.f32 %v673, %v1827
      %v2392 = vsub.f32 %v676, %v1830
      %v2393 = vsub.f32 %v679, %v1833
      %v2394 = vsub.f32 %v682, %v1836
      %v2395 = vsub.f32 %v685, %v1839
      %v2396 = vsub.f32 %v688, %v1842
      %v2397 = vsub.f32 %v691, %v1845
      %v2398 = vsub.f32 %v694, %v1848
      %v2399 = vsub.f32 %v697, %v1851
      %v2400 = vsub.f32 %v700, %v1854
      %v2401 = vsub.f32 %v703, %v1857
      %v2402 = vsub.f32 %v706, %v1860
      %v2403 = vsub.f32 %v709, %v1863
      %v2404 = vsub.f32 %v712, %v1866
      %v2405 = vsub.f32 %v715, %v1869
      %v2406 = vsub.f32 %v718, %v1872
      %v2407 = vsub.f32 %v721, %v1875
      %v2408 = vsub.f32 %v724, %v1878
      %v2409 = vsub.f32 %v727, %v1881
      %v2410 = vsub.f32 %v730, %v1884
      %v2411 = vsub.f32 %v733, %v1887
      %v2412 = vsub.f32 %v736, %v1890
      %v2413 = vsub.f32 %v739, %v1893
      %v2414 = vsub.f32 %v742, %v1896
      %v2415 = vsub.f32 %v745, %v1899
      %v2416 = vsub.f32 %v748, %v1902
      %v2417 = vsub.f32 %v751, %v1905
      %v2418 = vsub.f32 %v754, %v1908
      %v2419 = vsub.f32 %v757, %v1911
      %v2420 = vsub.f32 %v760, %v1914
      %v2421 = vsub.f32 %v763, %v1917
      %v2422 = vsub.f32 %v766, %v1920
      %v2423 = vsub.f32 %v769, %v1923
      %v2424 = vsub.f32 %v772, %v1926
      %v2425 = vsub.f32 %v775, %v1929
      %v2426 = vsub.f32 %v778, %v1932
      %v2427 = vsub.f32 %v781, %v1935
      %v2428 = vsub.f32 %v784, %v1938
      %v2429 = vsub.f32 %v787, %v1941
      %v2430 = vsub.f32 %v790, %v1944
      %v2431 = vsub.f32 %v793, %v1947
      %v2432 = vsub.f32 %v796, %v1950
      %v2433 = vsub.f32 %v799, %v1953
      %v2434 = vsub.f32 %v802, %v1956
      %v2435 = vsub.f32 %v805, %v1959
      %v2436 = vsub.f32 %v808, %v1962
      %v2437 = vsub.f32 %v811, %v1965
      %v2438 = vsub.f32 %v814, %v1968
      %v2439 = vsub.f32 %v817, %v1971
      %v2440 = vsub.f32 %v820, %v1974
      %v2441 = vsub.f32 %v823, %v1977
      %v2442 = vsub.f32 %v826, %v1980
      %v2443 = vsub.f32 %v829, %v1983
      %v2444 = vsub.f32 %v832, %v1986
      %v2445 = vsub.f32 %v835, %v1989
      %v2446 = vsub.f32 %v838, %v1992
      %v2447 = vsub.f32 %v841, %v1995
      %v2448 = vsub.f32 %v844, %v1998
      %v2449 = vsub.f32 %v847, %v2001
      %v2450 = vsub.f32 %v850, %v2004
      %v2451 = vsub.f32 %v853, %v2007
      %v2452 = vsub.f32 %v856, %v2010
      %v2453 = vsub.f32 %v859, %v2013
      %v2454 = vsub.f32 %v862, %v2016
      %v2455 = vsub.f32 %v865, %v2019
      %v2456 = vsub.f32 %v868, %v2022
      %v2457 = vsub.f32 %v871, %v2025
      %v2458 = vsub.f32 %v874, %v2028
      %v2459 = vsub.f32 %v877, %v2031
      %v2460 = vsub.f32 %v880, %v2034
      %v2461 = vsub.f32 %v883, %v2037
      %v2462 = vsub.f32 %v886, %v2040
      %v2463 = vsub.f32 %v889, %v2043
      %v2464 = vsub.f32 %v892, %v2046
      %v2465 = vsub.f32 %v895, %v2049
      %v2466 = vsub.f32 %v898, %v2052
      %v2467 = vsub.f32 %v901, %v2055
      %v2468 = vsub.f32 %v904, %v2058
      %v2469 = vsub.f32 %v907, %v2061
      %v2470 = vsub.f32 %v910, %v2064
      %v2471 = vsub.f32 %v913, %v2067
      %v2472 = vsub.f32 %v916, %v2070
      %v2473 = vsub.f32 %v919, %v2073
      %v2474 = vsub.f32 %v922, %v2076
      %v2475 = vsub.f32 %v925, %v2079
      %v2476 = vsub.f32 %v928, %v2082
      %v2477 = vsub.f32 %v931, %v2085
      %v2478 = vsub.f32 %v934, %v2088
      %v2479 = vsub.f32 %v937, %v2091
      %v2480 = vsub.f32 %v940, %v2094
      %v2481 = vsub.f32 %v943, %v2097
      %v2482 = vmul.f32 %v2290, 0.071428575
      %v2483 = vmul.f32 %v2291, 0.071428575
      %v2484 = vmul.f32 %v2292, 0.071428575
      %v2485 = vmul.f32 %v2293, 0.071428575
      %v2486 = vmul.f32 %v2294, 0.071428575
      %v2487 = vmul.f32 %v2295, 0.071428575
      %v2488 = vmul.f32 %v2296, 0.071428575
      %v2489 = vmul.f32 %v2297, 0.071428575
      %v2490 = vmul.f32 %v2298, 0.071428575
      %v2491 = vmul.f32 %v2299, 0.071428575
      %v2492 = vmul.f32 %v2300, 0.071428575
      %v2493 = vmul.f32 %v2301, 0.071428575
      %v2494 = vmul.f32 %v2302, 0.071428575
      %v2495 = vmul.f32 %v2303, 0.071428575
      %v2496 = vmul.f32 %v2304, 0.071428575
      %v2497 = vmul.f32 %v2305, 0.071428575
      %v2498 = vmul.f32 %v2306, 0.071428575
      %v2499 = vmul.f32 %v2307, 0.071428575
      %v2500 = vmul.f32 %v2308, 0.071428575
      %v2501 = vmul.f32 %v2309, 0.071428575
      %v2502 = vmul.f32 %v2310, 0.071428575
      %v2503 = vmul.f32 %v2311, 0.071428575
      %v2504 = vmul.f32 %v2312, 0.071428575
      %v2505 = vmul.f32 %v2313, 0.071428575
      %v2506 = vmul.f32 %v2314, 0.071428575
      %v2507 = vmul.f32 %v2315, 0.071428575
      %v2508 = vmul.f32 %v2316, 0.071428575
      %v2509 = vmul.f32 %v2317, 0.071428575
      %v2510 = vmul.f32 %v2318, 0.071428575
      %v2511 = vmul.f32 %v2319, 0.071428575
      %v2512 = vmul.f32 %v2320, 0.071428575
      %v2513 = vmul.f32 %v2321, 0.071428575
      %v2514 = vmul.f32 %v2322, 0.071428575
      %v2515 = vmul.f32 %v2323, 0.071428575
      %v2516 = vmul.f32 %v2324, 0.071428575
      %v2517 = vmul.f32 %v2325, 0.071428575
      %v2518 = vmul.f32 %v2326, 0.071428575
      %v2519 = vmul.f32 %v2327, 0.071428575
      %v2520 = vmul.f32 %v2328, 0.071428575
      %v2521 = vmul.f32 %v2329, 0.071428575
      %v2522 = vmul.f32 %v2330, 0.071428575
      %v2523 = vmul.f32 %v2331, 0.071428575
      %v2524 = vmul.f32 %v2332, 0.071428575
      %v2525 = vmul.f32 %v2333, 0.071428575
      %v2526 = vmul.f32 %v2334, 0.071428575
      %v2527 = vmul.f32 %v2335, 0.071428575
      %v2528 = vmul.f32 %v2336, 0.071428575
      %v2529 = vmul.f32 %v2337, 0.071428575
      %v2530 = vmul.f32 %v2338, 0.071428575
      %v2531 = vmul.f32 %v2339, 0.071428575
      %v2532 = vmul.f32 %v2340, 0.071428575
      %v2533 = vmul.f32 %v2341, 0.071428575
      %v2534 = vmul.f32 %v2342, 0.071428575
      %v2535 = vmul.f32 %v2343, 0.071428575
      %v2536 = vmul.f32 %v2344, 0.071428575
      %v2537 = vmul.f32 %v2345, 0.071428575
      %v2538 = vmul.f32 %v2346, 0.071428575
      %v2539 = vmul.f32 %v2347, 0.071428575
      %v2540 = vmul.f32 %v2348, 0.071428575
      %v2541 = vmul.f32 %v2349, 0.071428575
      %v2542 = vmul.f32 %v2350, 0.071428575
      %v2543 = vmul.f32 %v2351, 0.071428575
      %v2544 = vmul.f32 %v2352, 0.071428575
      %v2545 = vmul.f32 %v2353, 0.071428575
      %v2546 = vmul.f32 %v2354, 0.071428575
      %v2547 = vmul.f32 %v2355, 0.071428575
      %v2548 = vmul.f32 %v2356, 0.071428575
      %v2549 = vmul.f32 %v2357, 0.071428575
      %v2550 = vmul.f32 %v2358, 0.071428575
      %v2551 = vmul.f32 %v2359, 0.071428575
      %v2552 = vmul.f32 %v2360, 0.071428575
      %v2553 = vmul.f32 %v2361, 0.071428575
      %v2554 = vmul.f32 %v2362, 0.071428575
      %v2555 = vmul.f32 %v2363, 0.071428575
      %v2556 = vmul.f32 %v2364, 0.071428575
      %v2557 = vmul.f32 %v2365, 0.071428575
      %v2558 = vmul.f32 %v2366, 0.071428575
      %v2559 = vmul.f32 %v2367, 0.071428575
      %v2560 = vmul.f32 %v2368, 0.071428575
      %v2561 = vmul.f32 %v2369, 0.071428575
      %v2562 = vmul.f32 %v2370, 0.071428575
      %v2563 = vmul.f32 %v2371, 0.071428575
      %v2564 = vmul.f32 %v2372, 0.071428575
      %v2565 = vmul.f32 %v2373, 0.071428575
      %v2566 = vmul.f32 %v2374, 0.071428575
      %v2567 = vmul.f32 %v2375, 0.071428575
      %v2568 = vmul.f32 %v2376, 0.071428575
      %v2569 = vmul.f32 %v2377, 0.071428575
      %v2570 = vmul.f32 %v2378, 0.071428575
      %v2571 = vmul.f32 %v2379, 0.071428575
      %v2572 = vmul.f32 %v2380, 0.071428575
      %v2573 = vmul.f32 %v2381, 0.071428575
      %v2574 = vmul.f32 %v2382, 0.071428575
      %v2575 = vmul.f32 %v2383, 0.071428575
      %v2576 = vmul.f32 %v2384, 0.071428575
      %v2577 = vmul.f32 %v2385, 0.071428575
      %v2578 = vmul.f32 %v2386, 0.071428575
      %v2579 = vmul.f32 %v2387, 0.071428575
      %v2580 = vmul.f32 %v2388, 0.071428575
      %v2581 = vmul.f32 %v2389, 0.071428575
      %v2582 = vmul.f32 %v2390, 0.071428575
      %v2583 = vmul.f32 %v2391, 0.071428575
      %v2584 = vmul.f32 %v2392, 0.071428575
      %v2585 = vmul.f32 %v2393, 0.071428575
      %v2586 = vmul.f32 %v2394, 0.071428575
      %v2587 = vmul.f32 %v2395, 0.071428575
      %v2588 = vmul.f32 %v2396, 0.071428575
      %v2589 = vmul.f32 %v2397, 0.071428575
      %v2590 = vmul.f32 %v2398, 0.071428575
      %v2591 = vmul.f32 %v2399, 0.071428575
      %v2592 = vmul.f32 %v2400, 0.071428575
      %v2593 = vmul.f32 %v2401, 0.071428575
      %v2594 = vmul.f32 %v2402, 0.071428575
      %v2595 = vmul.f32 %v2403, 0.071428575
      %v2596 = vmul.f32 %v2404, 0.071428575
      %v2597 = vmul.f32 %v2405, 0.071428575
      %v2598 = vmul.f32 %v2406, 0.071428575
      %v2599 = vmul.f32 %v2407, 0.071428575
      %v2600 = vmul.f32 %v2408, 0.071428575
      %v2601 = vmul.f32 %v2409, 0.071428575
      %v2602 = vmul.f32 %v2410, 0.071428575
      %v2603 = vmul.f32 %v2411, 0.071428575
      %v2604 = vmul.f32 %v2412, 0.071428575
      %v2605 = vmul.f32 %v2413, 0.071428575
      %v2606 = vmul.f32 %v2414, 0.071428575
      %v2607 = vmul.f32 %v2415, 0.071428575
      %v2608 = vmul.f32 %v2416, 0.071428575
      %v2609 = vmul.f32 %v2417, 0.071428575
      %v2610 = vmul.f32 %v2418, 0.071428575
      %v2611 = vmul.f32 %v2419, 0.071428575
      %v2612 = vmul.f32 %v2420, 0.071428575
      %v2613 = vmul.f32 %v2421, 0.071428575
      %v2614 = vmul.f32 %v2422, 0.071428575
      %v2615 = vmul.f32 %v2423, 0.071428575
      %v2616 = vmul.f32 %v2424, 0.071428575
      %v2617 = vmul.f32 %v2425, 0.071428575
      %v2618 = vmul.f32 %v2426, 0.071428575
      %v2619 = vmul.f32 %v2427, 0.071428575
      %v2620 = vmul.f32 %v2428, 0.071428575
      %v2621 = vmul.f32 %v2429, 0.071428575
      %v2622 = vmul.f32 %v2430, 0.071428575
      %v2623 = vmul.f32 %v2431, 0.071428575
      %v2624 = vmul.f32 %v2432, 0.071428575
      %v2625 = vmul.f32 %v2433, 0.071428575
      %v2626 = vmul.f32 %v2434, 0.071428575
      %v2627 = vmul.f32 %v2435, 0.071428575
      %v2628 = vmul.f32 %v2436, 0.071428575
      %v2629 = vmul.f32 %v2437, 0.071428575
      %v2630 = vmul.f32 %v2438, 0.071428575
      %v2631 = vmul.f32 %v2439, 0.071428575
      %v2632 = vmul.f32 %v2440, 0.071428575
      %v2633 = vmul.f32 %v2441, 0.071428575
      %v2634 = vmul.f32 %v2442, 0.071428575
      %v2635 = vmul.f32 %v2443, 0.071428575
      %v2636 = vmul.f32 %v2444, 0.071428575
      %v2637 = vmul.f32 %v2445, 0.071428575
      %v2638 = vmul.f32 %v2446, 0.071428575
      %v2639 = vmul.f32 %v2447, 0.071428575
      %v2640 = vmul.f32 %v2448, 0.071428575
      %v2641 = vmul.f32 %v2449, 0.071428575
      %v2642 = vmul.f32 %v2450, 0.071428575
      %v2643 = vmul.f32 %v2451, 0.071428575
      %v2644 = vmul.f32 %v2452, 0.071428575
      %v2645 = vmul.f32 %v2453, 0.071428575
      %v2646 = vmul.f32 %v2454, 0.071428575
      %v2647 = vmul.f32 %v2455, 0.071428575
      %v2648 = vmul.f32 %v2456, 0.071428575
      %v2649 = vmul.f32 %v2457, 0.071428575
      %v2650 = vmul.f32 %v2458, 0.071428575
      %v2651 = vmul.f32 %v2459, 0.071428575
      %v2652 = vmul.f32 %v2460, 0.071428575
      %v2653 = vmul.f32 %v2461, 0.071428575
      %v2654 = vmul.f32 %v2462, 0.071428575
      %v2655 = vmul.f32 %v2463, 0.071428575
      %v2656 = vmul.f32 %v2464, 0.071428575
      %v2657 = vmul.f32 %v2465, 0.071428575
      %v2658 = vmul.f32 %v2466, 0.071428575
      %v2659 = vmul.f32 %v2467, 0.071428575
      %v2660 = vmul.f32 %v2468, 0.071428575
      %v2661 = vmul.f32 %v2469, 0.071428575
      %v2662 = vmul.f32 %v2470, 0.071428575
      %v2663 = vmul.f32 %v2471, 0.071428575
      %v2664 = vmul.f32 %v2472, 0.071428575
      %v2665 = vmul.f32 %v2473, 0.071428575
      %v2666 = vmul.f32 %v2474, 0.071428575
      %v2667 = vmul.f32 %v2475, 0.071428575
      %v2668 = vmul.f32 %v2476, 0.071428575
      %v2669 = vmul.f32 %v2477, 0.071428575
      %v2670 = vmul.f32 %v2478, 0.071428575
      %v2671 = vmul.f32 %v2479, 0.071428575
      %v2672 = vmul.f32 %v2480, 0.071428575
      %v2673 = vmul.f32 %v2481, 0.071428575
      %v2866 = vlaneseq
      %v2867 = vand.u32 %v2866, 127
      %v2868 = vlaneseq
      %v2869 = vshrl.u32 %v2868, 7
      %v2870 = vsub.s32 %v2867, %v2869
      %v2871 = vrot.slane %v2098, %v2870
      %v2872 = vadd.s32 %v2867, 4294967288
      %v2873 = vlaneseq
      %v2874 = vshrl.u32 %v2873, 7
      %v2875 = vsub.s32 %v2872, %v2874
      %v2876 = vrot.slane %v2099, %v2875
      %vm2877 = vcmask 130112
      %v2878 = vsel %vm2877, %v2876, %v2871
      %v2879 = vadd.s32 %v2867, 4294967280
      %v2880 = vlaneseq
      %v2881 = vshrl.u32 %v2880, 7
      %v2882 = vsub.s32 %v2879, %v2881
      %v2883 = vrot.slane %v2100, %v2882
      %vm2884 = vcmask 195712
      %v2885 = vsel %vm2884, %v2883, %v2878
      %v2886 = vadd.s32 %v2867, 4294967272
      %v2887 = vlaneseq
      %v2888 = vshrl.u32 %v2887, 7
      %v2889 = vsub.s32 %v2886, %v2888
      %v2890 = vrot.slane %v2101, %v2889
      %vm2891 = vcmask 261312
      %v2892 = vsel %vm2891, %v2890, %v2885
      %v2893 = vadd.s32 %v2867, 4294967264
      %v2894 = vlaneseq
      %v2895 = vshrl.u32 %v2894, 7
      %v2896 = vsub.s32 %v2893, %v2895
      %v2897 = vrot.slane %v2102, %v2896
      %vm2898 = vcmask 326912
      %v2899 = vsel %vm2898, %v2897, %v2892
      %v2900 = vadd.s32 %v2867, 4294967256
      %v2901 = vlaneseq
      %v2902 = vshrl.u32 %v2901, 7
      %v2903 = vsub.s32 %v2900, %v2902
      %v2904 = vrot.slane %v2103, %v2903
      %vm2905 = vcmask 392512
      %v2906 = vsel %vm2905, %v2904, %v2899
      %v2907 = vadd.s32 %v2867, 4294967248
      %v2908 = vlaneseq
      %v2909 = vshrl.u32 %v2908, 7
      %v2910 = vsub.s32 %v2907, %v2909
      %v2911 = vrot.slane %v2104, %v2910
      %vm2912 = vcmask 458112
      %v2913 = vsel %vm2912, %v2911, %v2906
      %v2914 = vadd.s32 %v2867, 4294967240
      %v2915 = vlaneseq
      %v2916 = vshrl.u32 %v2915, 7
      %v2917 = vsub.s32 %v2914, %v2916
      %v2918 = vrot.slane %v2105, %v2917
      %vm2919 = vcmask 523712
      %v2920 = vsel %vm2919, %v2918, %v2913
      %v2921 = vadd.s32 %v2867, 4294967232
      %v2922 = vlaneseq
      %v2923 = vshrl.u32 %v2922, 7
      %v2924 = vsub.s32 %v2921, %v2923
      %v2925 = vrot.slane %v2106, %v2924
      %vm2926 = vcmask 589312
      %v2927 = vsel %vm2926, %v2925, %v2920
      %v2928 = vadd.s32 %v2867, 4294967224
      %v2929 = vlaneseq
      %v2930 = vshrl.u32 %v2929, 7
      %v2931 = vsub.s32 %v2928, %v2930
      %v2932 = vrot.slane %v2107, %v2931
      %vm2933 = vcmask 654912
      %v2934 = vsel %vm2933, %v2932, %v2927
      %v2935 = vadd.s32 %v2867, 4294967216
      %v2936 = vlaneseq
      %v2937 = vshrl.u32 %v2936, 7
      %v2938 = vsub.s32 %v2935, %v2937
      %v2939 = vrot.slane %v2108, %v2938
      %vm2940 = vcmask 720512
      %v2941 = vsel %vm2940, %v2939, %v2934
      %v2942 = vadd.s32 %v2867, 4294967208
      %v2943 = vlaneseq
      %v2944 = vshrl.u32 %v2943, 7
      %v2945 = vsub.s32 %v2942, %v2944
      %v2946 = vrot.slane %v2109, %v2945
      %vm2947 = vcmask 786112
      %v2948 = vsel %vm2947, %v2946, %v2941
      %v2949 = vadd.s32 %v2867, 4294967200
      %v2950 = vlaneseq
      %v2951 = vshrl.u32 %v2950, 7
      %v2952 = vsub.s32 %v2949, %v2951
      %v2953 = vrot.slane %v2110, %v2952
      %vm2954 = vcmask 851712
      %v2955 = vsel %vm2954, %v2953, %v2948
      %v2956 = vadd.s32 %v2867, 4294967192
      %v2957 = vlaneseq
      %v2958 = vshrl.u32 %v2957, 7
      %v2959 = vsub.s32 %v2956, %v2958
      %v2960 = vrot.slane %v2111, %v2959
      %vm2961 = vcmask 917312
      %v2962 = vsel %vm2961, %v2960, %v2955
      %v2963 = vadd.s32 %v2867, 4294967184
      %v2964 = vlaneseq
      %v2965 = vshrl.u32 %v2964, 7
      %v2966 = vsub.s32 %v2963, %v2965
      %v2967 = vrot.slane %v2112, %v2966
      %vm2968 = vcmask 982912
      %v2969 = vsel %vm2968, %v2967, %v2962
      %v2970 = vadd.s32 %v2867, 4294967176
      %v2971 = vlaneseq
      %v2972 = vshrl.u32 %v2971, 7
      %v2973 = vsub.s32 %v2970, %v2972
      %v2974 = vrot.slane %v2113, %v2973
      %vm2975 = vcmask 1048512
      %v2976 = vsel %vm2975, %v2974, %v2969
      %v2977 = vlaneseq
      %v2978 = vshrl.u32 %v2977, 7
      %v2979 = vsub.s32 %v2867, %v2978
      %v2980 = vrot.slane %v2114, %v2979
      %v2981 = vlaneseq
      %v2982 = vshrl.u32 %v2981, 7
      %v2983 = vsub.s32 %v2872, %v2982
      %v2984 = vrot.slane %v2115, %v2983
      %v2985 = vsel %vm2877, %v2984, %v2980
      %v2986 = vlaneseq
      %v2987 = vshrl.u32 %v2986, 7
      %v2988 = vsub.s32 %v2879, %v2987
      %v2989 = vrot.slane %v2116, %v2988
      %v2990 = vsel %vm2884, %v2989, %v2985
      %v2991 = vlaneseq
      %v2992 = vshrl.u32 %v2991, 7
      %v2993 = vsub.s32 %v2886, %v2992
      %v2994 = vrot.slane %v2117, %v2993
      %v2995 = vsel %vm2891, %v2994, %v2990
      %v2996 = vlaneseq
      %v2997 = vshrl.u32 %v2996, 7
      %v2998 = vsub.s32 %v2893, %v2997
      %v2999 = vrot.slane %v2118, %v2998
      %v3000 = vsel %vm2898, %v2999, %v2995
      %v3001 = vlaneseq
      %v3002 = vshrl.u32 %v3001, 7
      %v3003 = vsub.s32 %v2900, %v3002
      %v3004 = vrot.slane %v2119, %v3003
      %v3005 = vsel %vm2905, %v3004, %v3000
      %v3006 = vlaneseq
      %v3007 = vshrl.u32 %v3006, 7
      %v3008 = vsub.s32 %v2907, %v3007
      %v3009 = vrot.slane %v2120, %v3008
      %v3010 = vsel %vm2912, %v3009, %v3005
      %v3011 = vlaneseq
      %v3012 = vshrl.u32 %v3011, 7
      %v3013 = vsub.s32 %v2914, %v3012
      %v3014 = vrot.slane %v2121, %v3013
      %v3015 = vsel %vm2919, %v3014, %v3010
      %v3016 = vlaneseq
      %v3017 = vshrl.u32 %v3016, 7
      %v3018 = vsub.s32 %v2921, %v3017
      %v3019 = vrot.slane %v2122, %v3018
      %v3020 = vsel %vm2926, %v3019, %v3015
      %v3021 = vlaneseq
      %v3022 = vshrl.u32 %v3021, 7
      %v3023 = vsub.s32 %v2928, %v3022
      %v3024 = vrot.slane %v2123, %v3023
      %v3025 = vsel %vm2933, %v3024, %v3020
      %v3026 = vlaneseq
      %v3027 = vshrl.u32 %v3026, 7
      %v3028 = vsub.s32 %v2935, %v3027
      %v3029 = vrot.slane %v2124, %v3028
      %v3030 = vsel %vm2940, %v3029, %v3025
      %v3031 = vlaneseq
      %v3032 = vshrl.u32 %v3031, 7
      %v3033 = vsub.s32 %v2942, %v3032
      %v3034 = vrot.slane %v2125, %v3033
      %v3035 = vsel %vm2947, %v3034, %v3030
      %v3036 = vlaneseq
      %v3037 = vshrl.u32 %v3036, 7
      %v3038 = vsub.s32 %v2949, %v3037
      %v3039 = vrot.slane %v2126, %v3038
      %v3040 = vsel %vm2954, %v3039, %v3035
      %v3041 = vlaneseq
      %v3042 = vshrl.u32 %v3041, 7
      %v3043 = vsub.s32 %v2956, %v3042
      %v3044 = vrot.slane %v2127, %v3043
      %v3045 = vsel %vm2961, %v3044, %v3040
      %v3046 = vlaneseq
      %v3047 = vshrl.u32 %v3046, 7
      %v3048 = vsub.s32 %v2963, %v3047
      %v3049 = vrot.slane %v2128, %v3048
      %v3050 = vsel %vm2968, %v3049, %v3045
      %v3051 = vlaneseq
      %v3052 = vshrl.u32 %v3051, 7
      %v3053 = vsub.s32 %v2970, %v3052
      %v3054 = vrot.slane %v2129, %v3053
      %v3055 = vsel %vm2975, %v3054, %v3050
      %v3056 = vlaneseq
      %v3057 = vshrl.u32 %v3056, 7
      %v3058 = vsub.s32 %v2867, %v3057
      %v3059 = vrot.slane %v2130, %v3058
      %v3060 = vlaneseq
      %v3061 = vshrl.u32 %v3060, 7
      %v3062 = vsub.s32 %v2872, %v3061
      %v3063 = vrot.slane %v2131, %v3062
      %v3064 = vsel %vm2877, %v3063, %v3059
      %v3065 = vlaneseq
      %v3066 = vshrl.u32 %v3065, 7
      %v3067 = vsub.s32 %v2879, %v3066
      %v3068 = vrot.slane %v2132, %v3067
      %v3069 = vsel %vm2884, %v3068, %v3064
      %v3070 = vlaneseq
      %v3071 = vshrl.u32 %v3070, 7
      %v3072 = vsub.s32 %v2886, %v3071
      %v3073 = vrot.slane %v2133, %v3072
      %v3074 = vsel %vm2891, %v3073, %v3069
      %v3075 = vlaneseq
      %v3076 = vshrl.u32 %v3075, 7
      %v3077 = vsub.s32 %v2893, %v3076
      %v3078 = vrot.slane %v2134, %v3077
      %v3079 = vsel %vm2898, %v3078, %v3074
      %v3080 = vlaneseq
      %v3081 = vshrl.u32 %v3080, 7
      %v3082 = vsub.s32 %v2900, %v3081
      %v3083 = vrot.slane %v2135, %v3082
      %v3084 = vsel %vm2905, %v3083, %v3079
      %v3085 = vlaneseq
      %v3086 = vshrl.u32 %v3085, 7
      %v3087 = vsub.s32 %v2907, %v3086
      %v3088 = vrot.slane %v2136, %v3087
      %v3089 = vsel %vm2912, %v3088, %v3084
      %v3090 = vlaneseq
      %v3091 = vshrl.u32 %v3090, 7
      %v3092 = vsub.s32 %v2914, %v3091
      %v3093 = vrot.slane %v2137, %v3092
      %v3094 = vsel %vm2919, %v3093, %v3089
      %v3095 = vlaneseq
      %v3096 = vshrl.u32 %v3095, 7
      %v3097 = vsub.s32 %v2921, %v3096
      %v3098 = vrot.slane %v2138, %v3097
      %v3099 = vsel %vm2926, %v3098, %v3094
      %v3100 = vlaneseq
      %v3101 = vshrl.u32 %v3100, 7
      %v3102 = vsub.s32 %v2928, %v3101
      %v3103 = vrot.slane %v2139, %v3102
      %v3104 = vsel %vm2933, %v3103, %v3099
      %v3105 = vlaneseq
      %v3106 = vshrl.u32 %v3105, 7
      %v3107 = vsub.s32 %v2935, %v3106
      %v3108 = vrot.slane %v2140, %v3107
      %v3109 = vsel %vm2940, %v3108, %v3104
      %v3110 = vlaneseq
      %v3111 = vshrl.u32 %v3110, 7
      %v3112 = vsub.s32 %v2942, %v3111
      %v3113 = vrot.slane %v2141, %v3112
      %v3114 = vsel %vm2947, %v3113, %v3109
      %v3115 = vlaneseq
      %v3116 = vshrl.u32 %v3115, 7
      %v3117 = vsub.s32 %v2949, %v3116
      %v3118 = vrot.slane %v2142, %v3117
      %v3119 = vsel %vm2954, %v3118, %v3114
      %v3120 = vlaneseq
      %v3121 = vshrl.u32 %v3120, 7
      %v3122 = vsub.s32 %v2956, %v3121
      %v3123 = vrot.slane %v2143, %v3122
      %v3124 = vsel %vm2961, %v3123, %v3119
      %v3125 = vlaneseq
      %v3126 = vshrl.u32 %v3125, 7
      %v3127 = vsub.s32 %v2963, %v3126
      %v3128 = vrot.slane %v2144, %v3127
      %v3129 = vsel %vm2968, %v3128, %v3124
      %v3130 = vlaneseq
      %v3131 = vshrl.u32 %v3130, 7
      %v3132 = vsub.s32 %v2970, %v3131
      %v3133 = vrot.slane %v2145, %v3132
      %v3134 = vsel %vm2975, %v3133, %v3129
      %v3135 = vlaneseq
      %v3136 = vshrl.u32 %v3135, 7
      %v3137 = vsub.s32 %v2867, %v3136
      %v3138 = vrot.slane %v2146, %v3137
      %v3139 = vlaneseq
      %v3140 = vshrl.u32 %v3139, 7
      %v3141 = vsub.s32 %v2872, %v3140
      %v3142 = vrot.slane %v2147, %v3141
      %v3143 = vsel %vm2877, %v3142, %v3138
      %v3144 = vlaneseq
      %v3145 = vshrl.u32 %v3144, 7
      %v3146 = vsub.s32 %v2879, %v3145
      %v3147 = vrot.slane %v2148, %v3146
      %v3148 = vsel %vm2884, %v3147, %v3143
      %v3149 = vlaneseq
      %v3150 = vshrl.u32 %v3149, 7
      %v3151 = vsub.s32 %v2886, %v3150
      %v3152 = vrot.slane %v2149, %v3151
      %v3153 = vsel %vm2891, %v3152, %v3148
      %v3154 = vlaneseq
      %v3155 = vshrl.u32 %v3154, 7
      %v3156 = vsub.s32 %v2893, %v3155
      %v3157 = vrot.slane %v2150, %v3156
      %v3158 = vsel %vm2898, %v3157, %v3153
      %v3159 = vlaneseq
      %v3160 = vshrl.u32 %v3159, 7
      %v3161 = vsub.s32 %v2900, %v3160
      %v3162 = vrot.slane %v2151, %v3161
      %v3163 = vsel %vm2905, %v3162, %v3158
      %v3164 = vlaneseq
      %v3165 = vshrl.u32 %v3164, 7
      %v3166 = vsub.s32 %v2907, %v3165
      %v3167 = vrot.slane %v2152, %v3166
      %v3168 = vsel %vm2912, %v3167, %v3163
      %v3169 = vlaneseq
      %v3170 = vshrl.u32 %v3169, 7
      %v3171 = vsub.s32 %v2914, %v3170
      %v3172 = vrot.slane %v2153, %v3171
      %v3173 = vsel %vm2919, %v3172, %v3168
      %v3174 = vlaneseq
      %v3175 = vshrl.u32 %v3174, 7
      %v3176 = vsub.s32 %v2921, %v3175
      %v3177 = vrot.slane %v2154, %v3176
      %v3178 = vsel %vm2926, %v3177, %v3173
      %v3179 = vlaneseq
      %v3180 = vshrl.u32 %v3179, 7
      %v3181 = vsub.s32 %v2928, %v3180
      %v3182 = vrot.slane %v2155, %v3181
      %v3183 = vsel %vm2933, %v3182, %v3178
      %v3184 = vlaneseq
      %v3185 = vshrl.u32 %v3184, 7
      %v3186 = vsub.s32 %v2935, %v3185
      %v3187 = vrot.slane %v2156, %v3186
      %v3188 = vsel %vm2940, %v3187, %v3183
      %v3189 = vlaneseq
      %v3190 = vshrl.u32 %v3189, 7
      %v3191 = vsub.s32 %v2942, %v3190
      %v3192 = vrot.slane %v2157, %v3191
      %v3193 = vsel %vm2947, %v3192, %v3188
      %v3194 = vlaneseq
      %v3195 = vshrl.u32 %v3194, 7
      %v3196 = vsub.s32 %v2949, %v3195
      %v3197 = vrot.slane %v2158, %v3196
      %v3198 = vsel %vm2954, %v3197, %v3193
      %v3199 = vlaneseq
      %v3200 = vshrl.u32 %v3199, 7
      %v3201 = vsub.s32 %v2956, %v3200
      %v3202 = vrot.slane %v2159, %v3201
      %v3203 = vsel %vm2961, %v3202, %v3198
      %v3204 = vlaneseq
      %v3205 = vshrl.u32 %v3204, 7
      %v3206 = vsub.s32 %v2963, %v3205
      %v3207 = vrot.slane %v2160, %v3206
      %v3208 = vsel %vm2968, %v3207, %v3203
      %v3209 = vlaneseq
      %v3210 = vshrl.u32 %v3209, 7
      %v3211 = vsub.s32 %v2970, %v3210
      %v3212 = vrot.slane %v2161, %v3211
      %v3213 = vsel %vm2975, %v3212, %v3208
      %v3214 = vlaneseq
      %v3215 = vshrl.u32 %v3214, 7
      %v3216 = vsub.s32 %v2867, %v3215
      %v3217 = vrot.slane %v2162, %v3216
      %v3218 = vlaneseq
      %v3219 = vshrl.u32 %v3218, 7
      %v3220 = vsub.s32 %v2872, %v3219
      %v3221 = vrot.slane %v2163, %v3220
      %v3222 = vsel %vm2877, %v3221, %v3217
      %v3223 = vlaneseq
      %v3224 = vshrl.u32 %v3223, 7
      %v3225 = vsub.s32 %v2879, %v3224
      %v3226 = vrot.slane %v2164, %v3225
      %v3227 = vsel %vm2884, %v3226, %v3222
      %v3228 = vlaneseq
      %v3229 = vshrl.u32 %v3228, 7
      %v3230 = vsub.s32 %v2886, %v3229
      %v3231 = vrot.slane %v2165, %v3230
      %v3232 = vsel %vm2891, %v3231, %v3227
      %v3233 = vlaneseq
      %v3234 = vshrl.u32 %v3233, 7
      %v3235 = vsub.s32 %v2893, %v3234
      %v3236 = vrot.slane %v2166, %v3235
      %v3237 = vsel %vm2898, %v3236, %v3232
      %v3238 = vlaneseq
      %v3239 = vshrl.u32 %v3238, 7
      %v3240 = vsub.s32 %v2900, %v3239
      %v3241 = vrot.slane %v2167, %v3240
      %v3242 = vsel %vm2905, %v3241, %v3237
      %v3243 = vlaneseq
      %v3244 = vshrl.u32 %v3243, 7
      %v3245 = vsub.s32 %v2907, %v3244
      %v3246 = vrot.slane %v2168, %v3245
      %v3247 = vsel %vm2912, %v3246, %v3242
      %v3248 = vlaneseq
      %v3249 = vshrl.u32 %v3248, 7
      %v3250 = vsub.s32 %v2914, %v3249
      %v3251 = vrot.slane %v2169, %v3250
      %v3252 = vsel %vm2919, %v3251, %v3247
      %v3253 = vlaneseq
      %v3254 = vshrl.u32 %v3253, 7
      %v3255 = vsub.s32 %v2921, %v3254
      %v3256 = vrot.slane %v2170, %v3255
      %v3257 = vsel %vm2926, %v3256, %v3252
      %v3258 = vlaneseq
      %v3259 = vshrl.u32 %v3258, 7
      %v3260 = vsub.s32 %v2928, %v3259
      %v3261 = vrot.slane %v2171, %v3260
      %v3262 = vsel %vm2933, %v3261, %v3257
      %v3263 = vlaneseq
      %v3264 = vshrl.u32 %v3263, 7
      %v3265 = vsub.s32 %v2935, %v3264
      %v3266 = vrot.slane %v2172, %v3265
      %v3267 = vsel %vm2940, %v3266, %v3262
      %v3268 = vlaneseq
      %v3269 = vshrl.u32 %v3268, 7
      %v3270 = vsub.s32 %v2942, %v3269
      %v3271 = vrot.slane %v2173, %v3270
      %v3272 = vsel %vm2947, %v3271, %v3267
      %v3273 = vlaneseq
      %v3274 = vshrl.u32 %v3273, 7
      %v3275 = vsub.s32 %v2949, %v3274
      %v3276 = vrot.slane %v2174, %v3275
      %v3277 = vsel %vm2954, %v3276, %v3272
      %v3278 = vlaneseq
      %v3279 = vshrl.u32 %v3278, 7
      %v3280 = vsub.s32 %v2956, %v3279
      %v3281 = vrot.slane %v2175, %v3280
      %v3282 = vsel %vm2961, %v3281, %v3277
      %v3283 = vlaneseq
      %v3284 = vshrl.u32 %v3283, 7
      %v3285 = vsub.s32 %v2963, %v3284
      %v3286 = vrot.slane %v2176, %v3285
      %v3287 = vsel %vm2968, %v3286, %v3282
      %v3288 = vlaneseq
      %v3289 = vshrl.u32 %v3288, 7
      %v3290 = vsub.s32 %v2970, %v3289
      %v3291 = vrot.slane %v2177, %v3290
      %v3292 = vsel %vm2975, %v3291, %v3287
      %v3293 = vlaneseq
      %v3294 = vshrl.u32 %v3293, 7
      %v3295 = vsub.s32 %v2867, %v3294
      %v3296 = vrot.slane %v2178, %v3295
      %v3297 = vlaneseq
      %v3298 = vshrl.u32 %v3297, 7
      %v3299 = vsub.s32 %v2872, %v3298
      %v3300 = vrot.slane %v2179, %v3299
      %v3301 = vsel %vm2877, %v3300, %v3296
      %v3302 = vlaneseq
      %v3303 = vshrl.u32 %v3302, 7
      %v3304 = vsub.s32 %v2879, %v3303
      %v3305 = vrot.slane %v2180, %v3304
      %v3306 = vsel %vm2884, %v3305, %v3301
      %v3307 = vlaneseq
      %v3308 = vshrl.u32 %v3307, 7
      %v3309 = vsub.s32 %v2886, %v3308
      %v3310 = vrot.slane %v2181, %v3309
      %v3311 = vsel %vm2891, %v3310, %v3306
      %v3312 = vlaneseq
      %v3313 = vshrl.u32 %v3312, 7
      %v3314 = vsub.s32 %v2893, %v3313
      %v3315 = vrot.slane %v2182, %v3314
      %v3316 = vsel %vm2898, %v3315, %v3311
      %v3317 = vlaneseq
      %v3318 = vshrl.u32 %v3317, 7
      %v3319 = vsub.s32 %v2900, %v3318
      %v3320 = vrot.slane %v2183, %v3319
      %v3321 = vsel %vm2905, %v3320, %v3316
      %v3322 = vlaneseq
      %v3323 = vshrl.u32 %v3322, 7
      %v3324 = vsub.s32 %v2907, %v3323
      %v3325 = vrot.slane %v2184, %v3324
      %v3326 = vsel %vm2912, %v3325, %v3321
      %v3327 = vlaneseq
      %v3328 = vshrl.u32 %v3327, 7
      %v3329 = vsub.s32 %v2914, %v3328
      %v3330 = vrot.slane %v2185, %v3329
      %v3331 = vsel %vm2919, %v3330, %v3326
      %v3332 = vlaneseq
      %v3333 = vshrl.u32 %v3332, 7
      %v3334 = vsub.s32 %v2921, %v3333
      %v3335 = vrot.slane %v2186, %v3334
      %v3336 = vsel %vm2926, %v3335, %v3331
      %v3337 = vlaneseq
      %v3338 = vshrl.u32 %v3337, 7
      %v3339 = vsub.s32 %v2928, %v3338
      %v3340 = vrot.slane %v2187, %v3339
      %v3341 = vsel %vm2933, %v3340, %v3336
      %v3342 = vlaneseq
      %v3343 = vshrl.u32 %v3342, 7
      %v3344 = vsub.s32 %v2935, %v3343
      %v3345 = vrot.slane %v2188, %v3344
      %v3346 = vsel %vm2940, %v3345, %v3341
      %v3347 = vlaneseq
      %v3348 = vshrl.u32 %v3347, 7
      %v3349 = vsub.s32 %v2942, %v3348
      %v3350 = vrot.slane %v2189, %v3349
      %v3351 = vsel %vm2947, %v3350, %v3346
      %v3352 = vlaneseq
      %v3353 = vshrl.u32 %v3352, 7
      %v3354 = vsub.s32 %v2949, %v3353
      %v3355 = vrot.slane %v2190, %v3354
      %v3356 = vsel %vm2954, %v3355, %v3351
      %v3357 = vlaneseq
      %v3358 = vshrl.u32 %v3357, 7
      %v3359 = vsub.s32 %v2956, %v3358
      %v3360 = vrot.slane %v2191, %v3359
      %v3361 = vsel %vm2961, %v3360, %v3356
      %v3362 = vlaneseq
      %v3363 = vshrl.u32 %v3362, 7
      %v3364 = vsub.s32 %v2963, %v3363
      %v3365 = vrot.slane %v2192, %v3364
      %v3366 = vsel %vm2968, %v3365, %v3361
      %v3367 = vlaneseq
      %v3368 = vshrl.u32 %v3367, 7
      %v3369 = vsub.s32 %v2970, %v3368
      %v3370 = vrot.slane %v2193, %v3369
      %v3371 = vsel %vm2975, %v3370, %v3366
      %v3372 = vlaneseq
      %v3373 = vshrl.u32 %v3372, 7
      %v3374 = vsub.s32 %v2867, %v3373
      %v3375 = vrot.slane %v2194, %v3374
      %v3376 = vlaneseq
      %v3377 = vshrl.u32 %v3376, 7
      %v3378 = vsub.s32 %v2872, %v3377
      %v3379 = vrot.slane %v2195, %v3378
      %v3380 = vsel %vm2877, %v3379, %v3375
      %v3381 = vlaneseq
      %v3382 = vshrl.u32 %v3381, 7
      %v3383 = vsub.s32 %v2879, %v3382
      %v3384 = vrot.slane %v2196, %v3383
      %v3385 = vsel %vm2884, %v3384, %v3380
      %v3386 = vlaneseq
      %v3387 = vshrl.u32 %v3386, 7
      %v3388 = vsub.s32 %v2886, %v3387
      %v3389 = vrot.slane %v2197, %v3388
      %v3390 = vsel %vm2891, %v3389, %v3385
      %v3391 = vlaneseq
      %v3392 = vshrl.u32 %v3391, 7
      %v3393 = vsub.s32 %v2893, %v3392
      %v3394 = vrot.slane %v2198, %v3393
      %v3395 = vsel %vm2898, %v3394, %v3390
      %v3396 = vlaneseq
      %v3397 = vshrl.u32 %v3396, 7
      %v3398 = vsub.s32 %v2900, %v3397
      %v3399 = vrot.slane %v2199, %v3398
      %v3400 = vsel %vm2905, %v3399, %v3395
      %v3401 = vlaneseq
      %v3402 = vshrl.u32 %v3401, 7
      %v3403 = vsub.s32 %v2907, %v3402
      %v3404 = vrot.slane %v2200, %v3403
      %v3405 = vsel %vm2912, %v3404, %v3400
      %v3406 = vlaneseq
      %v3407 = vshrl.u32 %v3406, 7
      %v3408 = vsub.s32 %v2914, %v3407
      %v3409 = vrot.slane %v2201, %v3408
      %v3410 = vsel %vm2919, %v3409, %v3405
      %v3411 = vlaneseq
      %v3412 = vshrl.u32 %v3411, 7
      %v3413 = vsub.s32 %v2921, %v3412
      %v3414 = vrot.slane %v2202, %v3413
      %v3415 = vsel %vm2926, %v3414, %v3410
      %v3416 = vlaneseq
      %v3417 = vshrl.u32 %v3416, 7
      %v3418 = vsub.s32 %v2928, %v3417
      %v3419 = vrot.slane %v2203, %v3418
      %v3420 = vsel %vm2933, %v3419, %v3415
      %v3421 = vlaneseq
      %v3422 = vshrl.u32 %v3421, 7
      %v3423 = vsub.s32 %v2935, %v3422
      %v3424 = vrot.slane %v2204, %v3423
      %v3425 = vsel %vm2940, %v3424, %v3420
      %v3426 = vlaneseq
      %v3427 = vshrl.u32 %v3426, 7
      %v3428 = vsub.s32 %v2942, %v3427
      %v3429 = vrot.slane %v2205, %v3428
      %v3430 = vsel %vm2947, %v3429, %v3425
      %v3431 = vlaneseq
      %v3432 = vshrl.u32 %v3431, 7
      %v3433 = vsub.s32 %v2949, %v3432
      %v3434 = vrot.slane %v2206, %v3433
      %v3435 = vsel %vm2954, %v3434, %v3430
      %v3436 = vlaneseq
      %v3437 = vshrl.u32 %v3436, 7
      %v3438 = vsub.s32 %v2956, %v3437
      %v3439 = vrot.slane %v2207, %v3438
      %v3440 = vsel %vm2961, %v3439, %v3435
      %v3441 = vlaneseq
      %v3442 = vshrl.u32 %v3441, 7
      %v3443 = vsub.s32 %v2963, %v3442
      %v3444 = vrot.slane %v2208, %v3443
      %v3445 = vsel %vm2968, %v3444, %v3440
      %v3446 = vlaneseq
      %v3447 = vshrl.u32 %v3446, 7
      %v3448 = vsub.s32 %v2970, %v3447
      %v3449 = vrot.slane %v2209, %v3448
      %v3450 = vsel %vm2975, %v3449, %v3445
      %v3451 = vlaneseq
      %v3452 = vshrl.u32 %v3451, 7
      %v3453 = vsub.s32 %v2867, %v3452
      %v3454 = vrot.slane %v2210, %v3453
      %v3455 = vlaneseq
      %v3456 = vshrl.u32 %v3455, 7
      %v3457 = vsub.s32 %v2872, %v3456
      %v3458 = vrot.slane %v2211, %v3457
      %v3459 = vsel %vm2877, %v3458, %v3454
      %v3460 = vlaneseq
      %v3461 = vshrl.u32 %v3460, 7
      %v3462 = vsub.s32 %v2879, %v3461
      %v3463 = vrot.slane %v2212, %v3462
      %v3464 = vsel %vm2884, %v3463, %v3459
      %v3465 = vlaneseq
      %v3466 = vshrl.u32 %v3465, 7
      %v3467 = vsub.s32 %v2886, %v3466
      %v3468 = vrot.slane %v2213, %v3467
      %v3469 = vsel %vm2891, %v3468, %v3464
      %v3470 = vlaneseq
      %v3471 = vshrl.u32 %v3470, 7
      %v3472 = vsub.s32 %v2893, %v3471
      %v3473 = vrot.slane %v2214, %v3472
      %v3474 = vsel %vm2898, %v3473, %v3469
      %v3475 = vlaneseq
      %v3476 = vshrl.u32 %v3475, 7
      %v3477 = vsub.s32 %v2900, %v3476
      %v3478 = vrot.slane %v2215, %v3477
      %v3479 = vsel %vm2905, %v3478, %v3474
      %v3480 = vlaneseq
      %v3481 = vshrl.u32 %v3480, 7
      %v3482 = vsub.s32 %v2907, %v3481
      %v3483 = vrot.slane %v2216, %v3482
      %v3484 = vsel %vm2912, %v3483, %v3479
      %v3485 = vlaneseq
      %v3486 = vshrl.u32 %v3485, 7
      %v3487 = vsub.s32 %v2914, %v3486
      %v3488 = vrot.slane %v2217, %v3487
      %v3489 = vsel %vm2919, %v3488, %v3484
      %v3490 = vlaneseq
      %v3491 = vshrl.u32 %v3490, 7
      %v3492 = vsub.s32 %v2921, %v3491
      %v3493 = vrot.slane %v2218, %v3492
      %v3494 = vsel %vm2926, %v3493, %v3489
      %v3495 = vlaneseq
      %v3496 = vshrl.u32 %v3495, 7
      %v3497 = vsub.s32 %v2928, %v3496
      %v3498 = vrot.slane %v2219, %v3497
      %v3499 = vsel %vm2933, %v3498, %v3494
      %v3500 = vlaneseq
      %v3501 = vshrl.u32 %v3500, 7
      %v3502 = vsub.s32 %v2935, %v3501
      %v3503 = vrot.slane %v2220, %v3502
      %v3504 = vsel %vm2940, %v3503, %v3499
      %v3505 = vlaneseq
      %v3506 = vshrl.u32 %v3505, 7
      %v3507 = vsub.s32 %v2942, %v3506
      %v3508 = vrot.slane %v2221, %v3507
      %v3509 = vsel %vm2947, %v3508, %v3504
      %v3510 = vlaneseq
      %v3511 = vshrl.u32 %v3510, 7
      %v3512 = vsub.s32 %v2949, %v3511
      %v3513 = vrot.slane %v2222, %v3512
      %v3514 = vsel %vm2954, %v3513, %v3509
      %v3515 = vlaneseq
      %v3516 = vshrl.u32 %v3515, 7
      %v3517 = vsub.s32 %v2956, %v3516
      %v3518 = vrot.slane %v2223, %v3517
      %v3519 = vsel %vm2961, %v3518, %v3514
      %v3520 = vlaneseq
      %v3521 = vshrl.u32 %v3520, 7
      %v3522 = vsub.s32 %v2963, %v3521
      %v3523 = vrot.slane %v2224, %v3522
      %v3524 = vsel %vm2968, %v3523, %v3519
      %v3525 = vlaneseq
      %v3526 = vshrl.u32 %v3525, 7
      %v3527 = vsub.s32 %v2970, %v3526
      %v3528 = vrot.slane %v2225, %v3527
      %v3529 = vsel %vm2975, %v3528, %v3524
      %v3530 = vlaneseq
      %v3531 = vshrl.u32 %v3530, 7
      %v3532 = vsub.s32 %v2867, %v3531
      %v3533 = vrot.slane %v2226, %v3532
      %v3534 = vlaneseq
      %v3535 = vshrl.u32 %v3534, 7
      %v3536 = vsub.s32 %v2872, %v3535
      %v3537 = vrot.slane %v2227, %v3536
      %v3538 = vsel %vm2877, %v3537, %v3533
      %v3539 = vlaneseq
      %v3540 = vshrl.u32 %v3539, 7
      %v3541 = vsub.s32 %v2879, %v3540
      %v3542 = vrot.slane %v2228, %v3541
      %v3543 = vsel %vm2884, %v3542, %v3538
      %v3544 = vlaneseq
      %v3545 = vshrl.u32 %v3544, 7
      %v3546 = vsub.s32 %v2886, %v3545
      %v3547 = vrot.slane %v2229, %v3546
      %v3548 = vsel %vm2891, %v3547, %v3543
      %v3549 = vlaneseq
      %v3550 = vshrl.u32 %v3549, 7
      %v3551 = vsub.s32 %v2893, %v3550
      %v3552 = vrot.slane %v2230, %v3551
      %v3553 = vsel %vm2898, %v3552, %v3548
      %v3554 = vlaneseq
      %v3555 = vshrl.u32 %v3554, 7
      %v3556 = vsub.s32 %v2900, %v3555
      %v3557 = vrot.slane %v2231, %v3556
      %v3558 = vsel %vm2905, %v3557, %v3553
      %v3559 = vlaneseq
      %v3560 = vshrl.u32 %v3559, 7
      %v3561 = vsub.s32 %v2907, %v3560
      %v3562 = vrot.slane %v2232, %v3561
      %v3563 = vsel %vm2912, %v3562, %v3558
      %v3564 = vlaneseq
      %v3565 = vshrl.u32 %v3564, 7
      %v3566 = vsub.s32 %v2914, %v3565
      %v3567 = vrot.slane %v2233, %v3566
      %v3568 = vsel %vm2919, %v3567, %v3563
      %v3569 = vlaneseq
      %v3570 = vshrl.u32 %v3569, 7
      %v3571 = vsub.s32 %v2921, %v3570
      %v3572 = vrot.slane %v2234, %v3571
      %v3573 = vsel %vm2926, %v3572, %v3568
      %v3574 = vlaneseq
      %v3575 = vshrl.u32 %v3574, 7
      %v3576 = vsub.s32 %v2928, %v3575
      %v3577 = vrot.slane %v2235, %v3576
      %v3578 = vsel %vm2933, %v3577, %v3573
      %v3579 = vlaneseq
      %v3580 = vshrl.u32 %v3579, 7
      %v3581 = vsub.s32 %v2935, %v3580
      %v3582 = vrot.slane %v2236, %v3581
      %v3583 = vsel %vm2940, %v3582, %v3578
      %v3584 = vlaneseq
      %v3585 = vshrl.u32 %v3584, 7
      %v3586 = vsub.s32 %v2942, %v3585
      %v3587 = vrot.slane %v2237, %v3586
      %v3588 = vsel %vm2947, %v3587, %v3583
      %v3589 = vlaneseq
      %v3590 = vshrl.u32 %v3589, 7
      %v3591 = vsub.s32 %v2949, %v3590
      %v3592 = vrot.slane %v2238, %v3591
      %v3593 = vsel %vm2954, %v3592, %v3588
      %v3594 = vlaneseq
      %v3595 = vshrl.u32 %v3594, 7
      %v3596 = vsub.s32 %v2956, %v3595
      %v3597 = vrot.slane %v2239, %v3596
      %v3598 = vsel %vm2961, %v3597, %v3593
      %v3599 = vlaneseq
      %v3600 = vshrl.u32 %v3599, 7
      %v3601 = vsub.s32 %v2963, %v3600
      %v3602 = vrot.slane %v2240, %v3601
      %v3603 = vsel %vm2968, %v3602, %v3598
      %v3604 = vlaneseq
      %v3605 = vshrl.u32 %v3604, 7
      %v3606 = vsub.s32 %v2970, %v3605
      %v3607 = vrot.slane %v2241, %v3606
      %v3608 = vsel %vm2975, %v3607, %v3603
      %v3609 = vlaneseq
      %v3610 = vshrl.u32 %v3609, 7
      %v3611 = vsub.s32 %v2867, %v3610
      %v3612 = vrot.slane %v2242, %v3611
      %v3613 = vlaneseq
      %v3614 = vshrl.u32 %v3613, 7
      %v3615 = vsub.s32 %v2872, %v3614
      %v3616 = vrot.slane %v2243, %v3615
      %v3617 = vsel %vm2877, %v3616, %v3612
      %v3618 = vlaneseq
      %v3619 = vshrl.u32 %v3618, 7
      %v3620 = vsub.s32 %v2879, %v3619
      %v3621 = vrot.slane %v2244, %v3620
      %v3622 = vsel %vm2884, %v3621, %v3617
      %v3623 = vlaneseq
      %v3624 = vshrl.u32 %v3623, 7
      %v3625 = vsub.s32 %v2886, %v3624
      %v3626 = vrot.slane %v2245, %v3625
      %v3627 = vsel %vm2891, %v3626, %v3622
      %v3628 = vlaneseq
      %v3629 = vshrl.u32 %v3628, 7
      %v3630 = vsub.s32 %v2893, %v3629
      %v3631 = vrot.slane %v2246, %v3630
      %v3632 = vsel %vm2898, %v3631, %v3627
      %v3633 = vlaneseq
      %v3634 = vshrl.u32 %v3633, 7
      %v3635 = vsub.s32 %v2900, %v3634
      %v3636 = vrot.slane %v2247, %v3635
      %v3637 = vsel %vm2905, %v3636, %v3632
      %v3638 = vlaneseq
      %v3639 = vshrl.u32 %v3638, 7
      %v3640 = vsub.s32 %v2907, %v3639
      %v3641 = vrot.slane %v2248, %v3640
      %v3642 = vsel %vm2912, %v3641, %v3637
      %v3643 = vlaneseq
      %v3644 = vshrl.u32 %v3643, 7
      %v3645 = vsub.s32 %v2914, %v3644
      %v3646 = vrot.slane %v2249, %v3645
      %v3647 = vsel %vm2919, %v3646, %v3642
      %v3648 = vlaneseq
      %v3649 = vshrl.u32 %v3648, 7
      %v3650 = vsub.s32 %v2921, %v3649
      %v3651 = vrot.slane %v2250, %v3650
      %v3652 = vsel %vm2926, %v3651, %v3647
      %v3653 = vlaneseq
      %v3654 = vshrl.u32 %v3653, 7
      %v3655 = vsub.s32 %v2928, %v3654
      %v3656 = vrot.slane %v2251, %v3655
      %v3657 = vsel %vm2933, %v3656, %v3652
      %v3658 = vlaneseq
      %v3659 = vshrl.u32 %v3658, 7
      %v3660 = vsub.s32 %v2935, %v3659
      %v3661 = vrot.slane %v2252, %v3660
      %v3662 = vsel %vm2940, %v3661, %v3657
      %v3663 = vlaneseq
      %v3664 = vshrl.u32 %v3663, 7
      %v3665 = vsub.s32 %v2942, %v3664
      %v3666 = vrot.slane %v2253, %v3665
      %v3667 = vsel %vm2947, %v3666, %v3662
      %v3668 = vlaneseq
      %v3669 = vshrl.u32 %v3668, 7
      %v3670 = vsub.s32 %v2949, %v3669
      %v3671 = vrot.slane %v2254, %v3670
      %v3672 = vsel %vm2954, %v3671, %v3667
      %v3673 = vlaneseq
      %v3674 = vshrl.u32 %v3673, 7
      %v3675 = vsub.s32 %v2956, %v3674
      %v3676 = vrot.slane %v2255, %v3675
      %v3677 = vsel %vm2961, %v3676, %v3672
      %v3678 = vlaneseq
      %v3679 = vshrl.u32 %v3678, 7
      %v3680 = vsub.s32 %v2963, %v3679
      %v3681 = vrot.slane %v2256, %v3680
      %v3682 = vsel %vm2968, %v3681, %v3677
      %v3683 = vlaneseq
      %v3684 = vshrl.u32 %v3683, 7
      %v3685 = vsub.s32 %v2970, %v3684
      %v3686 = vrot.slane %v2257, %v3685
      %v3687 = vsel %vm2975, %v3686, %v3682
      %v3688 = vlaneseq
      %v3689 = vshrl.u32 %v3688, 7
      %v3690 = vsub.s32 %v2867, %v3689
      %v3691 = vrot.slane %v2258, %v3690
      %v3692 = vlaneseq
      %v3693 = vshrl.u32 %v3692, 7
      %v3694 = vsub.s32 %v2872, %v3693
      %v3695 = vrot.slane %v2259, %v3694
      %v3696 = vsel %vm2877, %v3695, %v3691
      %v3697 = vlaneseq
      %v3698 = vshrl.u32 %v3697, 7
      %v3699 = vsub.s32 %v2879, %v3698
      %v3700 = vrot.slane %v2260, %v3699
      %v3701 = vsel %vm2884, %v3700, %v3696
      %v3702 = vlaneseq
      %v3703 = vshrl.u32 %v3702, 7
      %v3704 = vsub.s32 %v2886, %v3703
      %v3705 = vrot.slane %v2261, %v3704
      %v3706 = vsel %vm2891, %v3705, %v3701
      %v3707 = vlaneseq
      %v3708 = vshrl.u32 %v3707, 7
      %v3709 = vsub.s32 %v2893, %v3708
      %v3710 = vrot.slane %v2262, %v3709
      %v3711 = vsel %vm2898, %v3710, %v3706
      %v3712 = vlaneseq
      %v3713 = vshrl.u32 %v3712, 7
      %v3714 = vsub.s32 %v2900, %v3713
      %v3715 = vrot.slane %v2263, %v3714
      %v3716 = vsel %vm2905, %v3715, %v3711
      %v3717 = vlaneseq
      %v3718 = vshrl.u32 %v3717, 7
      %v3719 = vsub.s32 %v2907, %v3718
      %v3720 = vrot.slane %v2264, %v3719
      %v3721 = vsel %vm2912, %v3720, %v3716
      %v3722 = vlaneseq
      %v3723 = vshrl.u32 %v3722, 7
      %v3724 = vsub.s32 %v2914, %v3723
      %v3725 = vrot.slane %v2265, %v3724
      %v3726 = vsel %vm2919, %v3725, %v3721
      %v3727 = vlaneseq
      %v3728 = vshrl.u32 %v3727, 7
      %v3729 = vsub.s32 %v2921, %v3728
      %v3730 = vrot.slane %v2266, %v3729
      %v3731 = vsel %vm2926, %v3730, %v3726
      %v3732 = vlaneseq
      %v3733 = vshrl.u32 %v3732, 7
      %v3734 = vsub.s32 %v2928, %v3733
      %v3735 = vrot.slane %v2267, %v3734
      %v3736 = vsel %vm2933, %v3735, %v3731
      %v3737 = vlaneseq
      %v3738 = vshrl.u32 %v3737, 7
      %v3739 = vsub.s32 %v2935, %v3738
      %v3740 = vrot.slane %v2268, %v3739
      %v3741 = vsel %vm2940, %v3740, %v3736
      %v3742 = vlaneseq
      %v3743 = vshrl.u32 %v3742, 7
      %v3744 = vsub.s32 %v2942, %v3743
      %v3745 = vrot.slane %v2269, %v3744
      %v3746 = vsel %vm2947, %v3745, %v3741
      %v3747 = vlaneseq
      %v3748 = vshrl.u32 %v3747, 7
      %v3749 = vsub.s32 %v2949, %v3748
      %v3750 = vrot.slane %v2270, %v3749
      %v3751 = vsel %vm2954, %v3750, %v3746
      %v3752 = vlaneseq
      %v3753 = vshrl.u32 %v3752, 7
      %v3754 = vsub.s32 %v2956, %v3753
      %v3755 = vrot.slane %v2271, %v3754
      %v3756 = vsel %vm2961, %v3755, %v3751
      %v3757 = vlaneseq
      %v3758 = vshrl.u32 %v3757, 7
      %v3759 = vsub.s32 %v2963, %v3758
      %v3760 = vrot.slane %v2272, %v3759
      %v3761 = vsel %vm2968, %v3760, %v3756
      %v3762 = vlaneseq
      %v3763 = vshrl.u32 %v3762, 7
      %v3764 = vsub.s32 %v2970, %v3763
      %v3765 = vrot.slane %v2273, %v3764
      %v3766 = vsel %vm2975, %v3765, %v3761
      %v3767 = vlaneseq
      %v3768 = vshrl.u32 %v3767, 7
      %v3769 = vsub.s32 %v2867, %v3768
      %v3770 = vrot.slane %v2274, %v3769
      %v3771 = vlaneseq
      %v3772 = vshrl.u32 %v3771, 7
      %v3773 = vsub.s32 %v2872, %v3772
      %v3774 = vrot.slane %v2275, %v3773
      %v3775 = vsel %vm2877, %v3774, %v3770
      %v3776 = vlaneseq
      %v3777 = vshrl.u32 %v3776, 7
      %v3778 = vsub.s32 %v2879, %v3777
      %v3779 = vrot.slane %v2276, %v3778
      %v3780 = vsel %vm2884, %v3779, %v3775
      %v3781 = vlaneseq
      %v3782 = vshrl.u32 %v3781, 7
      %v3783 = vsub.s32 %v2886, %v3782
      %v3784 = vrot.slane %v2277, %v3783
      %v3785 = vsel %vm2891, %v3784, %v3780
      %v3786 = vlaneseq
      %v3787 = vshrl.u32 %v3786, 7
      %v3788 = vsub.s32 %v2893, %v3787
      %v3789 = vrot.slane %v2278, %v3788
      %v3790 = vsel %vm2898, %v3789, %v3785
      %v3791 = vlaneseq
      %v3792 = vshrl.u32 %v3791, 7
      %v3793 = vsub.s32 %v2900, %v3792
      %v3794 = vrot.slane %v2279, %v3793
      %v3795 = vsel %vm2905, %v3794, %v3790
      %v3796 = vlaneseq
      %v3797 = vshrl.u32 %v3796, 7
      %v3798 = vsub.s32 %v2907, %v3797
      %v3799 = vrot.slane %v2280, %v3798
      %v3800 = vsel %vm2912, %v3799, %v3795
      %v3801 = vlaneseq
      %v3802 = vshrl.u32 %v3801, 7
      %v3803 = vsub.s32 %v2914, %v3802
      %v3804 = vrot.slane %v2281, %v3803
      %v3805 = vsel %vm2919, %v3804, %v3800
      %v3806 = vlaneseq
      %v3807 = vshrl.u32 %v3806, 7
      %v3808 = vsub.s32 %v2921, %v3807
      %v3809 = vrot.slane %v2282, %v3808
      %v3810 = vsel %vm2926, %v3809, %v3805
      %v3811 = vlaneseq
      %v3812 = vshrl.u32 %v3811, 7
      %v3813 = vsub.s32 %v2928, %v3812
      %v3814 = vrot.slane %v2283, %v3813
      %v3815 = vsel %vm2933, %v3814, %v3810
      %v3816 = vlaneseq
      %v3817 = vshrl.u32 %v3816, 7
      %v3818 = vsub.s32 %v2935, %v3817
      %v3819 = vrot.slane %v2284, %v3818
      %v3820 = vsel %vm2940, %v3819, %v3815
      %v3821 = vlaneseq
      %v3822 = vshrl.u32 %v3821, 7
      %v3823 = vsub.s32 %v2942, %v3822
      %v3824 = vrot.slane %v2285, %v3823
      %v3825 = vsel %vm2947, %v3824, %v3820
      %v3826 = vlaneseq
      %v3827 = vshrl.u32 %v3826, 7
      %v3828 = vsub.s32 %v2949, %v3827
      %v3829 = vrot.slane %v2286, %v3828
      %v3830 = vsel %vm2954, %v3829, %v3825
      %v3831 = vlaneseq
      %v3832 = vshrl.u32 %v3831, 7
      %v3833 = vsub.s32 %v2956, %v3832
      %v3834 = vrot.slane %v2287, %v3833
      %v3835 = vsel %vm2961, %v3834, %v3830
      %v3836 = vlaneseq
      %v3837 = vshrl.u32 %v3836, 7
      %v3838 = vsub.s32 %v2963, %v3837
      %v3839 = vrot.slane %v2288, %v3838
      %v3840 = vsel %vm2968, %v3839, %v3835
      %v3841 = vlaneseq
      %v3842 = vshrl.u32 %v3841, 7
      %v3843 = vsub.s32 %v2970, %v3842
      %v3844 = vrot.slane %v2289, %v3843
      %v3845 = vsel %vm2975, %v3844, %v3840
      %vm3846 = vcmask 1041409
      %v3847 = vsel %vm3846, %v3450, %v2976
      %v3848 = vsel %vm3846, %v3529, %v3055
      %v3849 = vsel %vm3846, %v3608, %v3134
      %v3850 = vsel %vm3846, %v3687, %v3213
      %v3851 = vsel %vm3846, %v3766, %v3292
      %v3852 = vsel %vm3846, %v3845, %v3371
      %v4051 = vlaneseq
      %v4052 = vshrl.u32 %v4051, 7
      %v4053 = vsub.s32 %v2867, %v4052
      %v4054 = vrot.slane %v2482, %v4053
      %v4055 = vlaneseq
      %v4056 = vshrl.u32 %v4055, 7
      %v4057 = vsub.s32 %v2872, %v4056
      %v4058 = vrot.slane %v2483, %v4057
      %v4059 = vsel %vm2877, %v4058, %v4054
      %v4060 = vlaneseq
      %v4061 = vshrl.u32 %v4060, 7
      %v4062 = vsub.s32 %v2879, %v4061
      %v4063 = vrot.slane %v2484, %v4062
      %v4064 = vsel %vm2884, %v4063, %v4059
      %v4065 = vlaneseq
      %v4066 = vshrl.u32 %v4065, 7
      %v4067 = vsub.s32 %v2886, %v4066
      %v4068 = vrot.slane %v2485, %v4067
      %v4069 = vsel %vm2891, %v4068, %v4064
      %v4070 = vlaneseq
      %v4071 = vshrl.u32 %v4070, 7
      %v4072 = vsub.s32 %v2893, %v4071
      %v4073 = vrot.slane %v2486, %v4072
      %v4074 = vsel %vm2898, %v4073, %v4069
      %v4075 = vlaneseq
      %v4076 = vshrl.u32 %v4075, 7
      %v4077 = vsub.s32 %v2900, %v4076
      %v4078 = vrot.slane %v2487, %v4077
      %v4079 = vsel %vm2905, %v4078, %v4074
      %v4080 = vlaneseq
      %v4081 = vshrl.u32 %v4080, 7
      %v4082 = vsub.s32 %v2907, %v4081
      %v4083 = vrot.slane %v2488, %v4082
      %v4084 = vsel %vm2912, %v4083, %v4079
      %v4085 = vlaneseq
      %v4086 = vshrl.u32 %v4085, 7
      %v4087 = vsub.s32 %v2914, %v4086
      %v4088 = vrot.slane %v2489, %v4087
      %v4089 = vsel %vm2919, %v4088, %v4084
      %v4090 = vlaneseq
      %v4091 = vshrl.u32 %v4090, 7
      %v4092 = vsub.s32 %v2921, %v4091
      %v4093 = vrot.slane %v2490, %v4092
      %v4094 = vsel %vm2926, %v4093, %v4089
      %v4095 = vlaneseq
      %v4096 = vshrl.u32 %v4095, 7
      %v4097 = vsub.s32 %v2928, %v4096
      %v4098 = vrot.slane %v2491, %v4097
      %v4099 = vsel %vm2933, %v4098, %v4094
      %v4100 = vlaneseq
      %v4101 = vshrl.u32 %v4100, 7
      %v4102 = vsub.s32 %v2935, %v4101
      %v4103 = vrot.slane %v2492, %v4102
      %v4104 = vsel %vm2940, %v4103, %v4099
      %v4105 = vlaneseq
      %v4106 = vshrl.u32 %v4105, 7
      %v4107 = vsub.s32 %v2942, %v4106
      %v4108 = vrot.slane %v2493, %v4107
      %v4109 = vsel %vm2947, %v4108, %v4104
      %v4110 = vlaneseq
      %v4111 = vshrl.u32 %v4110, 7
      %v4112 = vsub.s32 %v2949, %v4111
      %v4113 = vrot.slane %v2494, %v4112
      %v4114 = vsel %vm2954, %v4113, %v4109
      %v4115 = vlaneseq
      %v4116 = vshrl.u32 %v4115, 7
      %v4117 = vsub.s32 %v2956, %v4116
      %v4118 = vrot.slane %v2495, %v4117
      %v4119 = vsel %vm2961, %v4118, %v4114
      %v4120 = vlaneseq
      %v4121 = vshrl.u32 %v4120, 7
      %v4122 = vsub.s32 %v2963, %v4121
      %v4123 = vrot.slane %v2496, %v4122
      %v4124 = vsel %vm2968, %v4123, %v4119
      %v4125 = vlaneseq
      %v4126 = vshrl.u32 %v4125, 7
      %v4127 = vsub.s32 %v2970, %v4126
      %v4128 = vrot.slane %v2497, %v4127
      %v4129 = vsel %vm2975, %v4128, %v4124
      %v4130 = vlaneseq
      %v4131 = vshrl.u32 %v4130, 7
      %v4132 = vsub.s32 %v2867, %v4131
      %v4133 = vrot.slane %v2498, %v4132
      %v4134 = vlaneseq
      %v4135 = vshrl.u32 %v4134, 7
      %v4136 = vsub.s32 %v2872, %v4135
      %v4137 = vrot.slane %v2499, %v4136
      %v4138 = vsel %vm2877, %v4137, %v4133
      %v4139 = vlaneseq
      %v4140 = vshrl.u32 %v4139, 7
      %v4141 = vsub.s32 %v2879, %v4140
      %v4142 = vrot.slane %v2500, %v4141
      %v4143 = vsel %vm2884, %v4142, %v4138
      %v4144 = vlaneseq
      %v4145 = vshrl.u32 %v4144, 7
      %v4146 = vsub.s32 %v2886, %v4145
      %v4147 = vrot.slane %v2501, %v4146
      %v4148 = vsel %vm2891, %v4147, %v4143
      %v4149 = vlaneseq
      %v4150 = vshrl.u32 %v4149, 7
      %v4151 = vsub.s32 %v2893, %v4150
      %v4152 = vrot.slane %v2502, %v4151
      %v4153 = vsel %vm2898, %v4152, %v4148
      %v4154 = vlaneseq
      %v4155 = vshrl.u32 %v4154, 7
      %v4156 = vsub.s32 %v2900, %v4155
      %v4157 = vrot.slane %v2503, %v4156
      %v4158 = vsel %vm2905, %v4157, %v4153
      %v4159 = vlaneseq
      %v4160 = vshrl.u32 %v4159, 7
      %v4161 = vsub.s32 %v2907, %v4160
      %v4162 = vrot.slane %v2504, %v4161
      %v4163 = vsel %vm2912, %v4162, %v4158
      %v4164 = vlaneseq
      %v4165 = vshrl.u32 %v4164, 7
      %v4166 = vsub.s32 %v2914, %v4165
      %v4167 = vrot.slane %v2505, %v4166
      %v4168 = vsel %vm2919, %v4167, %v4163
      %v4169 = vlaneseq
      %v4170 = vshrl.u32 %v4169, 7
      %v4171 = vsub.s32 %v2921, %v4170
      %v4172 = vrot.slane %v2506, %v4171
      %v4173 = vsel %vm2926, %v4172, %v4168
      %v4174 = vlaneseq
      %v4175 = vshrl.u32 %v4174, 7
      %v4176 = vsub.s32 %v2928, %v4175
      %v4177 = vrot.slane %v2507, %v4176
      %v4178 = vsel %vm2933, %v4177, %v4173
      %v4179 = vlaneseq
      %v4180 = vshrl.u32 %v4179, 7
      %v4181 = vsub.s32 %v2935, %v4180
      %v4182 = vrot.slane %v2508, %v4181
      %v4183 = vsel %vm2940, %v4182, %v4178
      %v4184 = vlaneseq
      %v4185 = vshrl.u32 %v4184, 7
      %v4186 = vsub.s32 %v2942, %v4185
      %v4187 = vrot.slane %v2509, %v4186
      %v4188 = vsel %vm2947, %v4187, %v4183
      %v4189 = vlaneseq
      %v4190 = vshrl.u32 %v4189, 7
      %v4191 = vsub.s32 %v2949, %v4190
      %v4192 = vrot.slane %v2510, %v4191
      %v4193 = vsel %vm2954, %v4192, %v4188
      %v4194 = vlaneseq
      %v4195 = vshrl.u32 %v4194, 7
      %v4196 = vsub.s32 %v2956, %v4195
      %v4197 = vrot.slane %v2511, %v4196
      %v4198 = vsel %vm2961, %v4197, %v4193
      %v4199 = vlaneseq
      %v4200 = vshrl.u32 %v4199, 7
      %v4201 = vsub.s32 %v2963, %v4200
      %v4202 = vrot.slane %v2512, %v4201
      %v4203 = vsel %vm2968, %v4202, %v4198
      %v4204 = vlaneseq
      %v4205 = vshrl.u32 %v4204, 7
      %v4206 = vsub.s32 %v2970, %v4205
      %v4207 = vrot.slane %v2513, %v4206
      %v4208 = vsel %vm2975, %v4207, %v4203
      %v4209 = vlaneseq
      %v4210 = vshrl.u32 %v4209, 7
      %v4211 = vsub.s32 %v2867, %v4210
      %v4212 = vrot.slane %v2514, %v4211
      %v4213 = vlaneseq
      %v4214 = vshrl.u32 %v4213, 7
      %v4215 = vsub.s32 %v2872, %v4214
      %v4216 = vrot.slane %v2515, %v4215
      %v4217 = vsel %vm2877, %v4216, %v4212
      %v4218 = vlaneseq
      %v4219 = vshrl.u32 %v4218, 7
      %v4220 = vsub.s32 %v2879, %v4219
      %v4221 = vrot.slane %v2516, %v4220
      %v4222 = vsel %vm2884, %v4221, %v4217
      %v4223 = vlaneseq
      %v4224 = vshrl.u32 %v4223, 7
      %v4225 = vsub.s32 %v2886, %v4224
      %v4226 = vrot.slane %v2517, %v4225
      %v4227 = vsel %vm2891, %v4226, %v4222
      %v4228 = vlaneseq
      %v4229 = vshrl.u32 %v4228, 7
      %v4230 = vsub.s32 %v2893, %v4229
      %v4231 = vrot.slane %v2518, %v4230
      %v4232 = vsel %vm2898, %v4231, %v4227
      %v4233 = vlaneseq
      %v4234 = vshrl.u32 %v4233, 7
      %v4235 = vsub.s32 %v2900, %v4234
      %v4236 = vrot.slane %v2519, %v4235
      %v4237 = vsel %vm2905, %v4236, %v4232
      %v4238 = vlaneseq
      %v4239 = vshrl.u32 %v4238, 7
      %v4240 = vsub.s32 %v2907, %v4239
      %v4241 = vrot.slane %v2520, %v4240
      %v4242 = vsel %vm2912, %v4241, %v4237
      %v4243 = vlaneseq
      %v4244 = vshrl.u32 %v4243, 7
      %v4245 = vsub.s32 %v2914, %v4244
      %v4246 = vrot.slane %v2521, %v4245
      %v4247 = vsel %vm2919, %v4246, %v4242
      %v4248 = vlaneseq
      %v4249 = vshrl.u32 %v4248, 7
      %v4250 = vsub.s32 %v2921, %v4249
      %v4251 = vrot.slane %v2522, %v4250
      %v4252 = vsel %vm2926, %v4251, %v4247
      %v4253 = vlaneseq
      %v4254 = vshrl.u32 %v4253, 7
      %v4255 = vsub.s32 %v2928, %v4254
      %v4256 = vrot.slane %v2523, %v4255
      %v4257 = vsel %vm2933, %v4256, %v4252
      %v4258 = vlaneseq
      %v4259 = vshrl.u32 %v4258, 7
      %v4260 = vsub.s32 %v2935, %v4259
      %v4261 = vrot.slane %v2524, %v4260
      %v4262 = vsel %vm2940, %v4261, %v4257
      %v4263 = vlaneseq
      %v4264 = vshrl.u32 %v4263, 7
      %v4265 = vsub.s32 %v2942, %v4264
      %v4266 = vrot.slane %v2525, %v4265
      %v4267 = vsel %vm2947, %v4266, %v4262
      %v4268 = vlaneseq
      %v4269 = vshrl.u32 %v4268, 7
      %v4270 = vsub.s32 %v2949, %v4269
      %v4271 = vrot.slane %v2526, %v4270
      %v4272 = vsel %vm2954, %v4271, %v4267
      %v4273 = vlaneseq
      %v4274 = vshrl.u32 %v4273, 7
      %v4275 = vsub.s32 %v2956, %v4274
      %v4276 = vrot.slane %v2527, %v4275
      %v4277 = vsel %vm2961, %v4276, %v4272
      %v4278 = vlaneseq
      %v4279 = vshrl.u32 %v4278, 7
      %v4280 = vsub.s32 %v2963, %v4279
      %v4281 = vrot.slane %v2528, %v4280
      %v4282 = vsel %vm2968, %v4281, %v4277
      %v4283 = vlaneseq
      %v4284 = vshrl.u32 %v4283, 7
      %v4285 = vsub.s32 %v2970, %v4284
      %v4286 = vrot.slane %v2529, %v4285
      %v4287 = vsel %vm2975, %v4286, %v4282
      %v4288 = vlaneseq
      %v4289 = vshrl.u32 %v4288, 7
      %v4290 = vsub.s32 %v2867, %v4289
      %v4291 = vrot.slane %v2530, %v4290
      %v4292 = vlaneseq
      %v4293 = vshrl.u32 %v4292, 7
      %v4294 = vsub.s32 %v2872, %v4293
      %v4295 = vrot.slane %v2531, %v4294
      %v4296 = vsel %vm2877, %v4295, %v4291
      %v4297 = vlaneseq
      %v4298 = vshrl.u32 %v4297, 7
      %v4299 = vsub.s32 %v2879, %v4298
      %v4300 = vrot.slane %v2532, %v4299
      %v4301 = vsel %vm2884, %v4300, %v4296
      %v4302 = vlaneseq
      %v4303 = vshrl.u32 %v4302, 7
      %v4304 = vsub.s32 %v2886, %v4303
      %v4305 = vrot.slane %v2533, %v4304
      %v4306 = vsel %vm2891, %v4305, %v4301
      %v4307 = vlaneseq
      %v4308 = vshrl.u32 %v4307, 7
      %v4309 = vsub.s32 %v2893, %v4308
      %v4310 = vrot.slane %v2534, %v4309
      %v4311 = vsel %vm2898, %v4310, %v4306
      %v4312 = vlaneseq
      %v4313 = vshrl.u32 %v4312, 7
      %v4314 = vsub.s32 %v2900, %v4313
      %v4315 = vrot.slane %v2535, %v4314
      %v4316 = vsel %vm2905, %v4315, %v4311
      %v4317 = vlaneseq
      %v4318 = vshrl.u32 %v4317, 7
      %v4319 = vsub.s32 %v2907, %v4318
      %v4320 = vrot.slane %v2536, %v4319
      %v4321 = vsel %vm2912, %v4320, %v4316
      %v4322 = vlaneseq
      %v4323 = vshrl.u32 %v4322, 7
      %v4324 = vsub.s32 %v2914, %v4323
      %v4325 = vrot.slane %v2537, %v4324
      %v4326 = vsel %vm2919, %v4325, %v4321
      %v4327 = vlaneseq
      %v4328 = vshrl.u32 %v4327, 7
      %v4329 = vsub.s32 %v2921, %v4328
      %v4330 = vrot.slane %v2538, %v4329
      %v4331 = vsel %vm2926, %v4330, %v4326
      %v4332 = vlaneseq
      %v4333 = vshrl.u32 %v4332, 7
      %v4334 = vsub.s32 %v2928, %v4333
      %v4335 = vrot.slane %v2539, %v4334
      %v4336 = vsel %vm2933, %v4335, %v4331
      %v4337 = vlaneseq
      %v4338 = vshrl.u32 %v4337, 7
      %v4339 = vsub.s32 %v2935, %v4338
      %v4340 = vrot.slane %v2540, %v4339
      %v4341 = vsel %vm2940, %v4340, %v4336
      %v4342 = vlaneseq
      %v4343 = vshrl.u32 %v4342, 7
      %v4344 = vsub.s32 %v2942, %v4343
      %v4345 = vrot.slane %v2541, %v4344
      %v4346 = vsel %vm2947, %v4345, %v4341
      %v4347 = vlaneseq
      %v4348 = vshrl.u32 %v4347, 7
      %v4349 = vsub.s32 %v2949, %v4348
      %v4350 = vrot.slane %v2542, %v4349
      %v4351 = vsel %vm2954, %v4350, %v4346
      %v4352 = vlaneseq
      %v4353 = vshrl.u32 %v4352, 7
      %v4354 = vsub.s32 %v2956, %v4353
      %v4355 = vrot.slane %v2543, %v4354
      %v4356 = vsel %vm2961, %v4355, %v4351
      %v4357 = vlaneseq
      %v4358 = vshrl.u32 %v4357, 7
      %v4359 = vsub.s32 %v2963, %v4358
      %v4360 = vrot.slane %v2544, %v4359
      %v4361 = vsel %vm2968, %v4360, %v4356
      %v4362 = vlaneseq
      %v4363 = vshrl.u32 %v4362, 7
      %v4364 = vsub.s32 %v2970, %v4363
      %v4365 = vrot.slane %v2545, %v4364
      %v4366 = vsel %vm2975, %v4365, %v4361
      %v4367 = vlaneseq
      %v4368 = vshrl.u32 %v4367, 7
      %v4369 = vsub.s32 %v2867, %v4368
      %v4370 = vrot.slane %v2546, %v4369
      %v4371 = vlaneseq
      %v4372 = vshrl.u32 %v4371, 7
      %v4373 = vsub.s32 %v2872, %v4372
      %v4374 = vrot.slane %v2547, %v4373
      %v4375 = vsel %vm2877, %v4374, %v4370
      %v4376 = vlaneseq
      %v4377 = vshrl.u32 %v4376, 7
      %v4378 = vsub.s32 %v2879, %v4377
      %v4379 = vrot.slane %v2548, %v4378
      %v4380 = vsel %vm2884, %v4379, %v4375
      %v4381 = vlaneseq
      %v4382 = vshrl.u32 %v4381, 7
      %v4383 = vsub.s32 %v2886, %v4382
      %v4384 = vrot.slane %v2549, %v4383
      %v4385 = vsel %vm2891, %v4384, %v4380
      %v4386 = vlaneseq
      %v4387 = vshrl.u32 %v4386, 7
      %v4388 = vsub.s32 %v2893, %v4387
      %v4389 = vrot.slane %v2550, %v4388
      %v4390 = vsel %vm2898, %v4389, %v4385
      %v4391 = vlaneseq
      %v4392 = vshrl.u32 %v4391, 7
      %v4393 = vsub.s32 %v2900, %v4392
      %v4394 = vrot.slane %v2551, %v4393
      %v4395 = vsel %vm2905, %v4394, %v4390
      %v4396 = vlaneseq
      %v4397 = vshrl.u32 %v4396, 7
      %v4398 = vsub.s32 %v2907, %v4397
      %v4399 = vrot.slane %v2552, %v4398
      %v4400 = vsel %vm2912, %v4399, %v4395
      %v4401 = vlaneseq
      %v4402 = vshrl.u32 %v4401, 7
      %v4403 = vsub.s32 %v2914, %v4402
      %v4404 = vrot.slane %v2553, %v4403
      %v4405 = vsel %vm2919, %v4404, %v4400
      %v4406 = vlaneseq
      %v4407 = vshrl.u32 %v4406, 7
      %v4408 = vsub.s32 %v2921, %v4407
      %v4409 = vrot.slane %v2554, %v4408
      %v4410 = vsel %vm2926, %v4409, %v4405
      %v4411 = vlaneseq
      %v4412 = vshrl.u32 %v4411, 7
      %v4413 = vsub.s32 %v2928, %v4412
      %v4414 = vrot.slane %v2555, %v4413
      %v4415 = vsel %vm2933, %v4414, %v4410
      %v4416 = vlaneseq
      %v4417 = vshrl.u32 %v4416, 7
      %v4418 = vsub.s32 %v2935, %v4417
      %v4419 = vrot.slane %v2556, %v4418
      %v4420 = vsel %vm2940, %v4419, %v4415
      %v4421 = vlaneseq
      %v4422 = vshrl.u32 %v4421, 7
      %v4423 = vsub.s32 %v2942, %v4422
      %v4424 = vrot.slane %v2557, %v4423
      %v4425 = vsel %vm2947, %v4424, %v4420
      %v4426 = vlaneseq
      %v4427 = vshrl.u32 %v4426, 7
      %v4428 = vsub.s32 %v2949, %v4427
      %v4429 = vrot.slane %v2558, %v4428
      %v4430 = vsel %vm2954, %v4429, %v4425
      %v4431 = vlaneseq
      %v4432 = vshrl.u32 %v4431, 7
      %v4433 = vsub.s32 %v2956, %v4432
      %v4434 = vrot.slane %v2559, %v4433
      %v4435 = vsel %vm2961, %v4434, %v4430
      %v4436 = vlaneseq
      %v4437 = vshrl.u32 %v4436, 7
      %v4438 = vsub.s32 %v2963, %v4437
      %v4439 = vrot.slane %v2560, %v4438
      %v4440 = vsel %vm2968, %v4439, %v4435
      %v4441 = vlaneseq
      %v4442 = vshrl.u32 %v4441, 7
      %v4443 = vsub.s32 %v2970, %v4442
      %v4444 = vrot.slane %v2561, %v4443
      %v4445 = vsel %vm2975, %v4444, %v4440
      %v4446 = vlaneseq
      %v4447 = vshrl.u32 %v4446, 7
      %v4448 = vsub.s32 %v2867, %v4447
      %v4449 = vrot.slane %v2562, %v4448
      %v4450 = vlaneseq
      %v4451 = vshrl.u32 %v4450, 7
      %v4452 = vsub.s32 %v2872, %v4451
      %v4453 = vrot.slane %v2563, %v4452
      %v4454 = vsel %vm2877, %v4453, %v4449
      %v4455 = vlaneseq
      %v4456 = vshrl.u32 %v4455, 7
      %v4457 = vsub.s32 %v2879, %v4456
      %v4458 = vrot.slane %v2564, %v4457
      %v4459 = vsel %vm2884, %v4458, %v4454
      %v4460 = vlaneseq
      %v4461 = vshrl.u32 %v4460, 7
      %v4462 = vsub.s32 %v2886, %v4461
      %v4463 = vrot.slane %v2565, %v4462
      %v4464 = vsel %vm2891, %v4463, %v4459
      %v4465 = vlaneseq
      %v4466 = vshrl.u32 %v4465, 7
      %v4467 = vsub.s32 %v2893, %v4466
      %v4468 = vrot.slane %v2566, %v4467
      %v4469 = vsel %vm2898, %v4468, %v4464
      %v4470 = vlaneseq
      %v4471 = vshrl.u32 %v4470, 7
      %v4472 = vsub.s32 %v2900, %v4471
      %v4473 = vrot.slane %v2567, %v4472
      %v4474 = vsel %vm2905, %v4473, %v4469
      %v4475 = vlaneseq
      %v4476 = vshrl.u32 %v4475, 7
      %v4477 = vsub.s32 %v2907, %v4476
      %v4478 = vrot.slane %v2568, %v4477
      %v4479 = vsel %vm2912, %v4478, %v4474
      %v4480 = vlaneseq
      %v4481 = vshrl.u32 %v4480, 7
      %v4482 = vsub.s32 %v2914, %v4481
      %v4483 = vrot.slane %v2569, %v4482
      %v4484 = vsel %vm2919, %v4483, %v4479
      %v4485 = vlaneseq
      %v4486 = vshrl.u32 %v4485, 7
      %v4487 = vsub.s32 %v2921, %v4486
      %v4488 = vrot.slane %v2570, %v4487
      %v4489 = vsel %vm2926, %v4488, %v4484
      %v4490 = vlaneseq
      %v4491 = vshrl.u32 %v4490, 7
      %v4492 = vsub.s32 %v2928, %v4491
      %v4493 = vrot.slane %v2571, %v4492
      %v4494 = vsel %vm2933, %v4493, %v4489
      %v4495 = vlaneseq
      %v4496 = vshrl.u32 %v4495, 7
      %v4497 = vsub.s32 %v2935, %v4496
      %v4498 = vrot.slane %v2572, %v4497
      %v4499 = vsel %vm2940, %v4498, %v4494
      %v4500 = vlaneseq
      %v4501 = vshrl.u32 %v4500, 7
      %v4502 = vsub.s32 %v2942, %v4501
      %v4503 = vrot.slane %v2573, %v4502
      %v4504 = vsel %vm2947, %v4503, %v4499
      %v4505 = vlaneseq
      %v4506 = vshrl.u32 %v4505, 7
      %v4507 = vsub.s32 %v2949, %v4506
      %v4508 = vrot.slane %v2574, %v4507
      %v4509 = vsel %vm2954, %v4508, %v4504
      %v4510 = vlaneseq
      %v4511 = vshrl.u32 %v4510, 7
      %v4512 = vsub.s32 %v2956, %v4511
      %v4513 = vrot.slane %v2575, %v4512
      %v4514 = vsel %vm2961, %v4513, %v4509
      %v4515 = vlaneseq
      %v4516 = vshrl.u32 %v4515, 7
      %v4517 = vsub.s32 %v2963, %v4516
      %v4518 = vrot.slane %v2576, %v4517
      %v4519 = vsel %vm2968, %v4518, %v4514
      %v4520 = vlaneseq
      %v4521 = vshrl.u32 %v4520, 7
      %v4522 = vsub.s32 %v2970, %v4521
      %v4523 = vrot.slane %v2577, %v4522
      %v4524 = vsel %vm2975, %v4523, %v4519
      %v4525 = vlaneseq
      %v4526 = vshrl.u32 %v4525, 7
      %v4527 = vsub.s32 %v2867, %v4526
      %v4528 = vrot.slane %v2578, %v4527
      %v4529 = vlaneseq
      %v4530 = vshrl.u32 %v4529, 7
      %v4531 = vsub.s32 %v2872, %v4530
      %v4532 = vrot.slane %v2579, %v4531
      %v4533 = vsel %vm2877, %v4532, %v4528
      %v4534 = vlaneseq
      %v4535 = vshrl.u32 %v4534, 7
      %v4536 = vsub.s32 %v2879, %v4535
      %v4537 = vrot.slane %v2580, %v4536
      %v4538 = vsel %vm2884, %v4537, %v4533
      %v4539 = vlaneseq
      %v4540 = vshrl.u32 %v4539, 7
      %v4541 = vsub.s32 %v2886, %v4540
      %v4542 = vrot.slane %v2581, %v4541
      %v4543 = vsel %vm2891, %v4542, %v4538
      %v4544 = vlaneseq
      %v4545 = vshrl.u32 %v4544, 7
      %v4546 = vsub.s32 %v2893, %v4545
      %v4547 = vrot.slane %v2582, %v4546
      %v4548 = vsel %vm2898, %v4547, %v4543
      %v4549 = vlaneseq
      %v4550 = vshrl.u32 %v4549, 7
      %v4551 = vsub.s32 %v2900, %v4550
      %v4552 = vrot.slane %v2583, %v4551
      %v4553 = vsel %vm2905, %v4552, %v4548
      %v4554 = vlaneseq
      %v4555 = vshrl.u32 %v4554, 7
      %v4556 = vsub.s32 %v2907, %v4555
      %v4557 = vrot.slane %v2584, %v4556
      %v4558 = vsel %vm2912, %v4557, %v4553
      %v4559 = vlaneseq
      %v4560 = vshrl.u32 %v4559, 7
      %v4561 = vsub.s32 %v2914, %v4560
      %v4562 = vrot.slane %v2585, %v4561
      %v4563 = vsel %vm2919, %v4562, %v4558
      %v4564 = vlaneseq
      %v4565 = vshrl.u32 %v4564, 7
      %v4566 = vsub.s32 %v2921, %v4565
      %v4567 = vrot.slane %v2586, %v4566
      %v4568 = vsel %vm2926, %v4567, %v4563
      %v4569 = vlaneseq
      %v4570 = vshrl.u32 %v4569, 7
      %v4571 = vsub.s32 %v2928, %v4570
      %v4572 = vrot.slane %v2587, %v4571
      %v4573 = vsel %vm2933, %v4572, %v4568
      %v4574 = vlaneseq
      %v4575 = vshrl.u32 %v4574, 7
      %v4576 = vsub.s32 %v2935, %v4575
      %v4577 = vrot.slane %v2588, %v4576
      %v4578 = vsel %vm2940, %v4577, %v4573
      %v4579 = vlaneseq
      %v4580 = vshrl.u32 %v4579, 7
      %v4581 = vsub.s32 %v2942, %v4580
      %v4582 = vrot.slane %v2589, %v4581
      %v4583 = vsel %vm2947, %v4582, %v4578
      %v4584 = vlaneseq
      %v4585 = vshrl.u32 %v4584, 7
      %v4586 = vsub.s32 %v2949, %v4585
      %v4587 = vrot.slane %v2590, %v4586
      %v4588 = vsel %vm2954, %v4587, %v4583
      %v4589 = vlaneseq
      %v4590 = vshrl.u32 %v4589, 7
      %v4591 = vsub.s32 %v2956, %v4590
      %v4592 = vrot.slane %v2591, %v4591
      %v4593 = vsel %vm2961, %v4592, %v4588
      %v4594 = vlaneseq
      %v4595 = vshrl.u32 %v4594, 7
      %v4596 = vsub.s32 %v2963, %v4595
      %v4597 = vrot.slane %v2592, %v4596
      %v4598 = vsel %vm2968, %v4597, %v4593
      %v4599 = vlaneseq
      %v4600 = vshrl.u32 %v4599, 7
      %v4601 = vsub.s32 %v2970, %v4600
      %v4602 = vrot.slane %v2593, %v4601
      %v4603 = vsel %vm2975, %v4602, %v4598
      %v4604 = vlaneseq
      %v4605 = vshrl.u32 %v4604, 7
      %v4606 = vsub.s32 %v2867, %v4605
      %v4607 = vrot.slane %v2594, %v4606
      %v4608 = vlaneseq
      %v4609 = vshrl.u32 %v4608, 7
      %v4610 = vsub.s32 %v2872, %v4609
      %v4611 = vrot.slane %v2595, %v4610
      %v4612 = vsel %vm2877, %v4611, %v4607
      %v4613 = vlaneseq
      %v4614 = vshrl.u32 %v4613, 7
      %v4615 = vsub.s32 %v2879, %v4614
      %v4616 = vrot.slane %v2596, %v4615
      %v4617 = vsel %vm2884, %v4616, %v4612
      %v4618 = vlaneseq
      %v4619 = vshrl.u32 %v4618, 7
      %v4620 = vsub.s32 %v2886, %v4619
      %v4621 = vrot.slane %v2597, %v4620
      %v4622 = vsel %vm2891, %v4621, %v4617
      %v4623 = vlaneseq
      %v4624 = vshrl.u32 %v4623, 7
      %v4625 = vsub.s32 %v2893, %v4624
      %v4626 = vrot.slane %v2598, %v4625
      %v4627 = vsel %vm2898, %v4626, %v4622
      %v4628 = vlaneseq
      %v4629 = vshrl.u32 %v4628, 7
      %v4630 = vsub.s32 %v2900, %v4629
      %v4631 = vrot.slane %v2599, %v4630
      %v4632 = vsel %vm2905, %v4631, %v4627
      %v4633 = vlaneseq
      %v4634 = vshrl.u32 %v4633, 7
      %v4635 = vsub.s32 %v2907, %v4634
      %v4636 = vrot.slane %v2600, %v4635
      %v4637 = vsel %vm2912, %v4636, %v4632
      %v4638 = vlaneseq
      %v4639 = vshrl.u32 %v4638, 7
      %v4640 = vsub.s32 %v2914, %v4639
      %v4641 = vrot.slane %v2601, %v4640
      %v4642 = vsel %vm2919, %v4641, %v4637
      %v4643 = vlaneseq
      %v4644 = vshrl.u32 %v4643, 7
      %v4645 = vsub.s32 %v2921, %v4644
      %v4646 = vrot.slane %v2602, %v4645
      %v4647 = vsel %vm2926, %v4646, %v4642
      %v4648 = vlaneseq
      %v4649 = vshrl.u32 %v4648, 7
      %v4650 = vsub.s32 %v2928, %v4649
      %v4651 = vrot.slane %v2603, %v4650
      %v4652 = vsel %vm2933, %v4651, %v4647
      %v4653 = vlaneseq
      %v4654 = vshrl.u32 %v4653, 7
      %v4655 = vsub.s32 %v2935, %v4654
      %v4656 = vrot.slane %v2604, %v4655
      %v4657 = vsel %vm2940, %v4656, %v4652
      %v4658 = vlaneseq
      %v4659 = vshrl.u32 %v4658, 7
      %v4660 = vsub.s32 %v2942, %v4659
      %v4661 = vrot.slane %v2605, %v4660
      %v4662 = vsel %vm2947, %v4661, %v4657
      %v4663 = vlaneseq
      %v4664 = vshrl.u32 %v4663, 7
      %v4665 = vsub.s32 %v2949, %v4664
      %v4666 = vrot.slane %v2606, %v4665
      %v4667 = vsel %vm2954, %v4666, %v4662
      %v4668 = vlaneseq
      %v4669 = vshrl.u32 %v4668, 7
      %v4670 = vsub.s32 %v2956, %v4669
      %v4671 = vrot.slane %v2607, %v4670
      %v4672 = vsel %vm2961, %v4671, %v4667
      %v4673 = vlaneseq
      %v4674 = vshrl.u32 %v4673, 7
      %v4675 = vsub.s32 %v2963, %v4674
      %v4676 = vrot.slane %v2608, %v4675
      %v4677 = vsel %vm2968, %v4676, %v4672
      %v4678 = vlaneseq
      %v4679 = vshrl.u32 %v4678, 7
      %v4680 = vsub.s32 %v2970, %v4679
      %v4681 = vrot.slane %v2609, %v4680
      %v4682 = vsel %vm2975, %v4681, %v4677
      %v4683 = vlaneseq
      %v4684 = vshrl.u32 %v4683, 7
      %v4685 = vsub.s32 %v2867, %v4684
      %v4686 = vrot.slane %v2610, %v4685
      %v4687 = vlaneseq
      %v4688 = vshrl.u32 %v4687, 7
      %v4689 = vsub.s32 %v2872, %v4688
      %v4690 = vrot.slane %v2611, %v4689
      %v4691 = vsel %vm2877, %v4690, %v4686
      %v4692 = vlaneseq
      %v4693 = vshrl.u32 %v4692, 7
      %v4694 = vsub.s32 %v2879, %v4693
      %v4695 = vrot.slane %v2612, %v4694
      %v4696 = vsel %vm2884, %v4695, %v4691
      %v4697 = vlaneseq
      %v4698 = vshrl.u32 %v4697, 7
      %v4699 = vsub.s32 %v2886, %v4698
      %v4700 = vrot.slane %v2613, %v4699
      %v4701 = vsel %vm2891, %v4700, %v4696
      %v4702 = vlaneseq
      %v4703 = vshrl.u32 %v4702, 7
      %v4704 = vsub.s32 %v2893, %v4703
      %v4705 = vrot.slane %v2614, %v4704
      %v4706 = vsel %vm2898, %v4705, %v4701
      %v4707 = vlaneseq
      %v4708 = vshrl.u32 %v4707, 7
      %v4709 = vsub.s32 %v2900, %v4708
      %v4710 = vrot.slane %v2615, %v4709
      %v4711 = vsel %vm2905, %v4710, %v4706
      %v4712 = vlaneseq
      %v4713 = vshrl.u32 %v4712, 7
      %v4714 = vsub.s32 %v2907, %v4713
      %v4715 = vrot.slane %v2616, %v4714
      %v4716 = vsel %vm2912, %v4715, %v4711
      %v4717 = vlaneseq
      %v4718 = vshrl.u32 %v4717, 7
      %v4719 = vsub.s32 %v2914, %v4718
      %v4720 = vrot.slane %v2617, %v4719
      %v4721 = vsel %vm2919, %v4720, %v4716
      %v4722 = vlaneseq
      %v4723 = vshrl.u32 %v4722, 7
      %v4724 = vsub.s32 %v2921, %v4723
      %v4725 = vrot.slane %v2618, %v4724
      %v4726 = vsel %vm2926, %v4725, %v4721
      %v4727 = vlaneseq
      %v4728 = vshrl.u32 %v4727, 7
      %v4729 = vsub.s32 %v2928, %v4728
      %v4730 = vrot.slane %v2619, %v4729
      %v4731 = vsel %vm2933, %v4730, %v4726
      %v4732 = vlaneseq
      %v4733 = vshrl.u32 %v4732, 7
      %v4734 = vsub.s32 %v2935, %v4733
      %v4735 = vrot.slane %v2620, %v4734
      %v4736 = vsel %vm2940, %v4735, %v4731
      %v4737 = vlaneseq
      %v4738 = vshrl.u32 %v4737, 7
      %v4739 = vsub.s32 %v2942, %v4738
      %v4740 = vrot.slane %v2621, %v4739
      %v4741 = vsel %vm2947, %v4740, %v4736
      %v4742 = vlaneseq
      %v4743 = vshrl.u32 %v4742, 7
      %v4744 = vsub.s32 %v2949, %v4743
      %v4745 = vrot.slane %v2622, %v4744
      %v4746 = vsel %vm2954, %v4745, %v4741
      %v4747 = vlaneseq
      %v4748 = vshrl.u32 %v4747, 7
      %v4749 = vsub.s32 %v2956, %v4748
      %v4750 = vrot.slane %v2623, %v4749
      %v4751 = vsel %vm2961, %v4750, %v4746
      %v4752 = vlaneseq
      %v4753 = vshrl.u32 %v4752, 7
      %v4754 = vsub.s32 %v2963, %v4753
      %v4755 = vrot.slane %v2624, %v4754
      %v4756 = vsel %vm2968, %v4755, %v4751
      %v4757 = vlaneseq
      %v4758 = vshrl.u32 %v4757, 7
      %v4759 = vsub.s32 %v2970, %v4758
      %v4760 = vrot.slane %v2625, %v4759
      %v4761 = vsel %vm2975, %v4760, %v4756
      %v4762 = vlaneseq
      %v4763 = vshrl.u32 %v4762, 7
      %v4764 = vsub.s32 %v2867, %v4763
      %v4765 = vrot.slane %v2626, %v4764
      %v4766 = vlaneseq
      %v4767 = vshrl.u32 %v4766, 7
      %v4768 = vsub.s32 %v2872, %v4767
      %v4769 = vrot.slane %v2627, %v4768
      %v4770 = vsel %vm2877, %v4769, %v4765
      %v4771 = vlaneseq
      %v4772 = vshrl.u32 %v4771, 7
      %v4773 = vsub.s32 %v2879, %v4772
      %v4774 = vrot.slane %v2628, %v4773
      %v4775 = vsel %vm2884, %v4774, %v4770
      %v4776 = vlaneseq
      %v4777 = vshrl.u32 %v4776, 7
      %v4778 = vsub.s32 %v2886, %v4777
      %v4779 = vrot.slane %v2629, %v4778
      %v4780 = vsel %vm2891, %v4779, %v4775
      %v4781 = vlaneseq
      %v4782 = vshrl.u32 %v4781, 7
      %v4783 = vsub.s32 %v2893, %v4782
      %v4784 = vrot.slane %v2630, %v4783
      %v4785 = vsel %vm2898, %v4784, %v4780
      %v4786 = vlaneseq
      %v4787 = vshrl.u32 %v4786, 7
      %v4788 = vsub.s32 %v2900, %v4787
      %v4789 = vrot.slane %v2631, %v4788
      %v4790 = vsel %vm2905, %v4789, %v4785
      %v4791 = vlaneseq
      %v4792 = vshrl.u32 %v4791, 7
      %v4793 = vsub.s32 %v2907, %v4792
      %v4794 = vrot.slane %v2632, %v4793
      %v4795 = vsel %vm2912, %v4794, %v4790
      %v4796 = vlaneseq
      %v4797 = vshrl.u32 %v4796, 7
      %v4798 = vsub.s32 %v2914, %v4797
      %v4799 = vrot.slane %v2633, %v4798
      %v4800 = vsel %vm2919, %v4799, %v4795
      %v4801 = vlaneseq
      %v4802 = vshrl.u32 %v4801, 7
      %v4803 = vsub.s32 %v2921, %v4802
      %v4804 = vrot.slane %v2634, %v4803
      %v4805 = vsel %vm2926, %v4804, %v4800
      %v4806 = vlaneseq
      %v4807 = vshrl.u32 %v4806, 7
      %v4808 = vsub.s32 %v2928, %v4807
      %v4809 = vrot.slane %v2635, %v4808
      %v4810 = vsel %vm2933, %v4809, %v4805
      %v4811 = vlaneseq
      %v4812 = vshrl.u32 %v4811, 7
      %v4813 = vsub.s32 %v2935, %v4812
      %v4814 = vrot.slane %v2636, %v4813
      %v4815 = vsel %vm2940, %v4814, %v4810
      %v4816 = vlaneseq
      %v4817 = vshrl.u32 %v4816, 7
      %v4818 = vsub.s32 %v2942, %v4817
      %v4819 = vrot.slane %v2637, %v4818
      %v4820 = vsel %vm2947, %v4819, %v4815
      %v4821 = vlaneseq
      %v4822 = vshrl.u32 %v4821, 7
      %v4823 = vsub.s32 %v2949, %v4822
      %v4824 = vrot.slane %v2638, %v4823
      %v4825 = vsel %vm2954, %v4824, %v4820
      %v4826 = vlaneseq
      %v4827 = vshrl.u32 %v4826, 7
      %v4828 = vsub.s32 %v2956, %v4827
      %v4829 = vrot.slane %v2639, %v4828
      %v4830 = vsel %vm2961, %v4829, %v4825
      %v4831 = vlaneseq
      %v4832 = vshrl.u32 %v4831, 7
      %v4833 = vsub.s32 %v2963, %v4832
      %v4834 = vrot.slane %v2640, %v4833
      %v4835 = vsel %vm2968, %v4834, %v4830
      %v4836 = vlaneseq
      %v4837 = vshrl.u32 %v4836, 7
      %v4838 = vsub.s32 %v2970, %v4837
      %v4839 = vrot.slane %v2641, %v4838
      %v4840 = vsel %vm2975, %v4839, %v4835
      %v4841 = vlaneseq
      %v4842 = vshrl.u32 %v4841, 7
      %v4843 = vsub.s32 %v2867, %v4842
      %v4844 = vrot.slane %v2642, %v4843
      %v4845 = vlaneseq
      %v4846 = vshrl.u32 %v4845, 7
      %v4847 = vsub.s32 %v2872, %v4846
      %v4848 = vrot.slane %v2643, %v4847
      %v4849 = vsel %vm2877, %v4848, %v4844
      %v4850 = vlaneseq
      %v4851 = vshrl.u32 %v4850, 7
      %v4852 = vsub.s32 %v2879, %v4851
      %v4853 = vrot.slane %v2644, %v4852
      %v4854 = vsel %vm2884, %v4853, %v4849
      %v4855 = vlaneseq
      %v4856 = vshrl.u32 %v4855, 7
      %v4857 = vsub.s32 %v2886, %v4856
      %v4858 = vrot.slane %v2645, %v4857
      %v4859 = vsel %vm2891, %v4858, %v4854
      %v4860 = vlaneseq
      %v4861 = vshrl.u32 %v4860, 7
      %v4862 = vsub.s32 %v2893, %v4861
      %v4863 = vrot.slane %v2646, %v4862
      %v4864 = vsel %vm2898, %v4863, %v4859
      %v4865 = vlaneseq
      %v4866 = vshrl.u32 %v4865, 7
      %v4867 = vsub.s32 %v2900, %v4866
      %v4868 = vrot.slane %v2647, %v4867
      %v4869 = vsel %vm2905, %v4868, %v4864
      %v4870 = vlaneseq
      %v4871 = vshrl.u32 %v4870, 7
      %v4872 = vsub.s32 %v2907, %v4871
      %v4873 = vrot.slane %v2648, %v4872
      %v4874 = vsel %vm2912, %v4873, %v4869
      %v4875 = vlaneseq
      %v4876 = vshrl.u32 %v4875, 7
      %v4877 = vsub.s32 %v2914, %v4876
      %v4878 = vrot.slane %v2649, %v4877
      %v4879 = vsel %vm2919, %v4878, %v4874
      %v4880 = vlaneseq
      %v4881 = vshrl.u32 %v4880, 7
      %v4882 = vsub.s32 %v2921, %v4881
      %v4883 = vrot.slane %v2650, %v4882
      %v4884 = vsel %vm2926, %v4883, %v4879
      %v4885 = vlaneseq
      %v4886 = vshrl.u32 %v4885, 7
      %v4887 = vsub.s32 %v2928, %v4886
      %v4888 = vrot.slane %v2651, %v4887
      %v4889 = vsel %vm2933, %v4888, %v4884
      %v4890 = vlaneseq
      %v4891 = vshrl.u32 %v4890, 7
      %v4892 = vsub.s32 %v2935, %v4891
      %v4893 = vrot.slane %v2652, %v4892
      %v4894 = vsel %vm2940, %v4893, %v4889
      %v4895 = vlaneseq
      %v4896 = vshrl.u32 %v4895, 7
      %v4897 = vsub.s32 %v2942, %v4896
      %v4898 = vrot.slane %v2653, %v4897
      %v4899 = vsel %vm2947, %v4898, %v4894
      %v4900 = vlaneseq
      %v4901 = vshrl.u32 %v4900, 7
      %v4902 = vsub.s32 %v2949, %v4901
      %v4903 = vrot.slane %v2654, %v4902
      %v4904 = vsel %vm2954, %v4903, %v4899
      %v4905 = vlaneseq
      %v4906 = vshrl.u32 %v4905, 7
      %v4907 = vsub.s32 %v2956, %v4906
      %v4908 = vrot.slane %v2655, %v4907
      %v4909 = vsel %vm2961, %v4908, %v4904
      %v4910 = vlaneseq
      %v4911 = vshrl.u32 %v4910, 7
      %v4912 = vsub.s32 %v2963, %v4911
      %v4913 = vrot.slane %v2656, %v4912
      %v4914 = vsel %vm2968, %v4913, %v4909
      %v4915 = vlaneseq
      %v4916 = vshrl.u32 %v4915, 7
      %v4917 = vsub.s32 %v2970, %v4916
      %v4918 = vrot.slane %v2657, %v4917
      %v4919 = vsel %vm2975, %v4918, %v4914
      %v4920 = vlaneseq
      %v4921 = vshrl.u32 %v4920, 7
      %v4922 = vsub.s32 %v2867, %v4921
      %v4923 = vrot.slane %v2658, %v4922
      %v4924 = vlaneseq
      %v4925 = vshrl.u32 %v4924, 7
      %v4926 = vsub.s32 %v2872, %v4925
      %v4927 = vrot.slane %v2659, %v4926
      %v4928 = vsel %vm2877, %v4927, %v4923
      %v4929 = vlaneseq
      %v4930 = vshrl.u32 %v4929, 7
      %v4931 = vsub.s32 %v2879, %v4930
      %v4932 = vrot.slane %v2660, %v4931
      %v4933 = vsel %vm2884, %v4932, %v4928
      %v4934 = vlaneseq
      %v4935 = vshrl.u32 %v4934, 7
      %v4936 = vsub.s32 %v2886, %v4935
      %v4937 = vrot.slane %v2661, %v4936
      %v4938 = vsel %vm2891, %v4937, %v4933
      %v4939 = vlaneseq
      %v4940 = vshrl.u32 %v4939, 7
      %v4941 = vsub.s32 %v2893, %v4940
      %v4942 = vrot.slane %v2662, %v4941
      %v4943 = vsel %vm2898, %v4942, %v4938
      %v4944 = vlaneseq
      %v4945 = vshrl.u32 %v4944, 7
      %v4946 = vsub.s32 %v2900, %v4945
      %v4947 = vrot.slane %v2663, %v4946
      %v4948 = vsel %vm2905, %v4947, %v4943
      %v4949 = vlaneseq
      %v4950 = vshrl.u32 %v4949, 7
      %v4951 = vsub.s32 %v2907, %v4950
      %v4952 = vrot.slane %v2664, %v4951
      %v4953 = vsel %vm2912, %v4952, %v4948
      %v4954 = vlaneseq
      %v4955 = vshrl.u32 %v4954, 7
      %v4956 = vsub.s32 %v2914, %v4955
      %v4957 = vrot.slane %v2665, %v4956
      %v4958 = vsel %vm2919, %v4957, %v4953
      %v4959 = vlaneseq
      %v4960 = vshrl.u32 %v4959, 7
      %v4961 = vsub.s32 %v2921, %v4960
      %v4962 = vrot.slane %v2666, %v4961
      %v4963 = vsel %vm2926, %v4962, %v4958
      %v4964 = vlaneseq
      %v4965 = vshrl.u32 %v4964, 7
      %v4966 = vsub.s32 %v2928, %v4965
      %v4967 = vrot.slane %v2667, %v4966
      %v4968 = vsel %vm2933, %v4967, %v4963
      %v4969 = vlaneseq
      %v4970 = vshrl.u32 %v4969, 7
      %v4971 = vsub.s32 %v2935, %v4970
      %v4972 = vrot.slane %v2668, %v4971
      %v4973 = vsel %vm2940, %v4972, %v4968
      %v4974 = vlaneseq
      %v4975 = vshrl.u32 %v4974, 7
      %v4976 = vsub.s32 %v2942, %v4975
      %v4977 = vrot.slane %v2669, %v4976
      %v4978 = vsel %vm2947, %v4977, %v4973
      %v4979 = vlaneseq
      %v4980 = vshrl.u32 %v4979, 7
      %v4981 = vsub.s32 %v2949, %v4980
      %v4982 = vrot.slane %v2670, %v4981
      %v4983 = vsel %vm2954, %v4982, %v4978
      %v4984 = vlaneseq
      %v4985 = vshrl.u32 %v4984, 7
      %v4986 = vsub.s32 %v2956, %v4985
      %v4987 = vrot.slane %v2671, %v4986
      %v4988 = vsel %vm2961, %v4987, %v4983
      %v4989 = vlaneseq
      %v4990 = vshrl.u32 %v4989, 7
      %v4991 = vsub.s32 %v2963, %v4990
      %v4992 = vrot.slane %v2672, %v4991
      %v4993 = vsel %vm2968, %v4992, %v4988
      %v4994 = vlaneseq
      %v4995 = vshrl.u32 %v4994, 7
      %v4996 = vsub.s32 %v2970, %v4995
      %v4997 = vrot.slane %v2673, %v4996
      %v4998 = vsel %vm2975, %v4997, %v4993
      %v4999 = vsel %vm3846, %v4603, %v4129
      %v5000 = vsel %vm3846, %v4682, %v4208
      %v5001 = vsel %vm3846, %v4761, %v4287
      %v5002 = vsel %vm3846, %v4840, %v4366
      %v5003 = vsel %vm3846, %v4919, %v4445
      %v5004 = vsel %vm3846, %v4998, %v4524
      %v5011 = vld [vmem:[%s1] sm:$0xff]
      %v5012 = vld [vmem:[%s1 + $0x8] sm:$0xff]
      %v5013 = vld [vmem:[%s1 + $0x10] sm:$0xff]
      %v5014 = vld [vmem:[%s1 + $0x18] sm:$0xff]
      %v5015 = vld [vmem:[%s1 + $0x20] sm:$0xff]
      %v5016 = vld [vmem:[%s1 + $0x28] sm:$0xff]
      %v5017 = vld [vmem:[%s1 + $0x30] sm:$0xff]
      %v5018 = vld [vmem:[%s1 + $0x38] sm:$0xff]
      %v5019 = vld [vmem:[%s1 + $0x40] sm:$0xff]
      %v5020 = vld [vmem:[%s1 + $0x48] sm:$0xff]
      %v5021 = vld [vmem:[%s1 + $0x50] sm:$0xff]
      %v5022 = vld [vmem:[%s1 + $0x58] sm:$0xff]
      %v5023 = vld [vmem:[%s1 + $0x60] sm:$0xff]
      %v5024 = vld [vmem:[%s1 + $0x68] sm:$0xff]
      %v5025 = vld [vmem:[%s1 + $0x70] sm:$0xff]
      %v5026 = vld [vmem:[%s1 + $0x78] sm:$0xff]
      %v5027 = vld [vmem:[%s1 + $0x80] sm:$0xff]
      %v5028 = vld [vmem:[%s1 + $0x88] sm:$0xff]
      %v5029 = vld [vmem:[%s1 + $0x90] sm:$0xff]
      %v5030 = vld [vmem:[%s1 + $0x98] sm:$0xff]
      %v5031 = vld [vmem:[%s1 + $0xa0] sm:$0xff]
      %v5032 = vld [vmem:[%s1 + $0xa8] sm:$0xff]
      %v5033 = vld [vmem:[%s1 + $0xb0] sm:$0xff]
      %v5034 = vld [vmem:[%s1 + $0xb8] sm:$0xff]
      %v5035 = vld [vmem:[%s1 + $0xc0] sm:$0xff]
      %v5036 = vld [vmem:[%s1 + $0xc8] sm:$0xff]
      %v5037 = vld [vmem:[%s1 + $0xd0] sm:$0xff]
      %v5038 = vld [vmem:[%s1 + $0xd8] sm:$0xff]
      %v5039 = vld [vmem:[%s1 + $0xe0] sm:$0xff]
      %v5040 = vld [vmem:[%s1 + $0xe8] sm:$0xff]
      %v5041 = vld [vmem:[%s1 + $0xf0] sm:$0xff]
      %v5042 = vld [vmem:[%s1 + $0xf8] sm:$0xff]
      %v5043 = vld [vmem:[%s1 + $0x100] sm:$0xff]
      %v5044 = vld [vmem:[%s1 + $0x108] sm:$0xff]
      %v5045 = vld [vmem:[%s1 + $0x110] sm:$0xff]
      %v5046 = vld [vmem:[%s1 + $0x118] sm:$0xff]
      %v5047 = vld [vmem:[%s1 + $0x120] sm:$0xff]
      %v5048 = vld [vmem:[%s1 + $0x128] sm:$0xff]
      %v5049 = vld [vmem:[%s1 + $0x130] sm:$0xff]
      %v5050 = vld [vmem:[%s1 + $0x138] sm:$0xff]
      %v5051 = vld [vmem:[%s1 + $0x140] sm:$0xff]
      %v5052 = vld [vmem:[%s1 + $0x148] sm:$0xff]
      %v5053 = vld [vmem:[%s1 + $0x150] sm:$0xff]
      %v5054 = vld [vmem:[%s1 + $0x158] sm:$0xff]
      %v5055 = vld [vmem:[%s1 + $0x160] sm:$0xff]
      %v5056 = vld [vmem:[%s1 + $0x168] sm:$0xff]
      %v5057 = vld [vmem:[%s1 + $0x170] sm:$0xff]
      %v5058 = vld [vmem:[%s1 + $0x178] sm:$0xff]
      %v5059 = vld [vmem:[%s1 + $0x180] sm:$0xff]
      %v5060 = vld [vmem:[%s1 + $0x188] sm:$0xff]
      %v5061 = vld [vmem:[%s1 + $0x190] sm:$0xff]
      %v5062 = vld [vmem:[%s1 + $0x198] sm:$0xff]
      %v5063 = vld [vmem:[%s1 + $0x1a0] sm:$0xff]
      %v5064 = vld [vmem:[%s1 + $0x1a8] sm:$0xff]
      %v5065 = vld [vmem:[%s1 + $0x1b0] sm:$0xff]
      %v5066 = vld [vmem:[%s1 + $0x1b8] sm:$0xff]
      %v5067 = vld [vmem:[%s1 + $0x1c0] sm:$0xff]
      %v5068 = vld [vmem:[%s1 + $0x1c8] sm:$0xff]
      %v5069 = vld [vmem:[%s1 + $0x1d0] sm:$0xff]
      %v5070 = vld [vmem:[%s1 + $0x1d8] sm:$0xff]
      %v5071 = vld [vmem:[%s1 + $0x1e0] sm:$0xff]
      %v5072 = vld [vmem:[%s1 + $0x1e8] sm:$0xff]
      %v5073 = vld [vmem:[%s1 + $0x1f0] sm:$0xff]
      %v5074 = vld [vmem:[%s1 + $0x1f8] sm:$0xff]
      %v5075 = vld [vmem:[%s1 + $0x200] sm:$0xff]
      %v5076 = vld [vmem:[%s1 + $0x208] sm:$0xff]
      %v5077 = vld [vmem:[%s1 + $0x210] sm:$0xff]
      %v5078 = vld [vmem:[%s1 + $0x218] sm:$0xff]
      %v5079 = vld [vmem:[%s1 + $0x220] sm:$0xff]
      %v5080 = vld [vmem:[%s1 + $0x228] sm:$0xff]
      %v5081 = vld [vmem:[%s1 + $0x230] sm:$0xff]
      %v5082 = vld [vmem:[%s1 + $0x238] sm:$0xff]
      %v5083 = vld [vmem:[%s1 + $0x240] sm:$0xff]
      %v5084 = vld [vmem:[%s1 + $0x248] sm:$0xff]
      %v5085 = vld [vmem:[%s1 + $0x250] sm:$0xff]
      %v5086 = vld [vmem:[%s1 + $0x258] sm:$0xff]
      %v5087 = vld [vmem:[%s1 + $0x260] sm:$0xff]
      %v5088 = vld [vmem:[%s1 + $0x268] sm:$0xff]
      %v5089 = vld [vmem:[%s1 + $0x270] sm:$0xff]
      %v5090 = vld [vmem:[%s1 + $0x278] sm:$0xff]
      %v5091 = vld [vmem:[%s1 + $0x280] sm:$0xff]
      %v5092 = vld [vmem:[%s1 + $0x288] sm:$0xff]
      %v5093 = vld [vmem:[%s1 + $0x290] sm:$0xff]
      %v5094 = vld [vmem:[%s1 + $0x298] sm:$0xff]
      %v5095 = vld [vmem:[%s1 + $0x2a0] sm:$0xff]
      %v5096 = vld [vmem:[%s1 + $0x2a8] sm:$0xff]
      %v5097 = vld [vmem:[%s1 + $0x2b0] sm:$0xff]
      %v5098 = vld [vmem:[%s1 + $0x2b8] sm:$0xff]
      %v5099 = vld [vmem:[%s1 + $0x2c0] sm:$0xff]
      %v5100 = vld [vmem:[%s1 + $0x2c8] sm:$0xff]
      %v5101 = vld [vmem:[%s1 + $0x2d0] sm:$0xff]
      %v5102 = vld [vmem:[%s1 + $0x2d8] sm:$0xff]
      %v5103 = vld [vmem:[%s1 + $0x2e0] sm:$0xff]
      %v5104 = vld [vmem:[%s1 + $0x2e8] sm:$0xff]
      %v5105 = vld [vmem:[%s1 + $0x2f0] sm:$0xff]
      %v5106 = vld [vmem:[%s1 + $0x2f8] sm:$0xff]
      %v5107 = vld [vmem:[%s1 + $0x300] sm:$0xff]
      %v5108 = vld [vmem:[%s1 + $0x308] sm:$0xff]
      %v5109 = vld [vmem:[%s1 + $0x310] sm:$0xff]
      %v5110 = vld [vmem:[%s1 + $0x318] sm:$0xff]
      %v5111 = vld [vmem:[%s1 + $0x320] sm:$0xff]
      %v5112 = vld [vmem:[%s1 + $0x328] sm:$0xff]
      %v5113 = vld [vmem:[%s1 + $0x330] sm:$0xff]
      %v5114 = vld [vmem:[%s1 + $0x338] sm:$0xff]
      %v5115 = vld [vmem:[%s1 + $0x340] sm:$0xff]
      %v5116 = vld [vmem:[%s1 + $0x348] sm:$0xff]
      %v5117 = vld [vmem:[%s1 + $0x350] sm:$0xff]
      %v5118 = vld [vmem:[%s1 + $0x358] sm:$0xff]
      %v5119 = vld [vmem:[%s1 + $0x360] sm:$0xff]
      %v5120 = vld [vmem:[%s1 + $0x368] sm:$0xff]
      %v5121 = vld [vmem:[%s1 + $0x370] sm:$0xff]
      %v5122 = vld [vmem:[%s1 + $0x378] sm:$0xff]
      %v5123 = vld [vmem:[%s1 + $0x380] sm:$0xff]
      %v5124 = vld [vmem:[%s1 + $0x388] sm:$0xff]
      %v5125 = vld [vmem:[%s1 + $0x390] sm:$0xff]
      %v5126 = vld [vmem:[%s1 + $0x398] sm:$0xff]
      %v5127 = vld [vmem:[%s1 + $0x3a0] sm:$0xff]
      %v5128 = vld [vmem:[%s1 + $0x3a8] sm:$0xff]
      %v5129 = vld [vmem:[%s1 + $0x3b0] sm:$0xff]
      %v5130 = vld [vmem:[%s1 + $0x3b8] sm:$0xff]
      %v5131 = vld [vmem:[%s1 + $0x3c0] sm:$0xff]
      %v5132 = vld [vmem:[%s1 + $0x3c8] sm:$0xff]
      %v5133 = vld [vmem:[%s1 + $0x3d0] sm:$0xff]
      %v5134 = vld [vmem:[%s1 + $0x3d8] sm:$0xff]
      %v5135 = vld [vmem:[%s1 + $0x3e0] sm:$0xff]
      %v5136 = vld [vmem:[%s1 + $0x3e8] sm:$0xff]
      %v5137 = vld [vmem:[%s1 + $0x3f0] sm:$0xff]
      %v5138 = vld [vmem:[%s1 + $0x3f8] sm:$0xff]
      %v5139 = vld [vmem:[%s1 + $0x400] sm:$0xff]
      %v5140 = vld [vmem:[%s1 + $0x408] sm:$0xff]
      %v5141 = vld [vmem:[%s1 + $0x410] sm:$0xff]
      %v5142 = vld [vmem:[%s1 + $0x418] sm:$0xff]
      %v5143 = vld [vmem:[%s1 + $0x420] sm:$0xff]
      %v5144 = vld [vmem:[%s1 + $0x428] sm:$0xff]
      %v5145 = vld [vmem:[%s1 + $0x430] sm:$0xff]
      %v5146 = vld [vmem:[%s1 + $0x438] sm:$0xff]
      %v5147 = vld [vmem:[%s1 + $0x440] sm:$0xff]
      %v5148 = vld [vmem:[%s1 + $0x448] sm:$0xff]
      %v5149 = vld [vmem:[%s1 + $0x450] sm:$0xff]
      %v5150 = vld [vmem:[%s1 + $0x458] sm:$0xff]
      %v5151 = vld [vmem:[%s1 + $0x460] sm:$0xff]
      %v5152 = vld [vmem:[%s1 + $0x468] sm:$0xff]
      %v5153 = vld [vmem:[%s1 + $0x470] sm:$0xff]
      %v5154 = vld [vmem:[%s1 + $0x478] sm:$0xff]
      %v5155 = vld [vmem:[%s1 + $0x480] sm:$0xff]
      %v5156 = vld [vmem:[%s1 + $0x488] sm:$0xff]
      %v5157 = vld [vmem:[%s1 + $0x490] sm:$0xff]
      %v5158 = vld [vmem:[%s1 + $0x498] sm:$0xff]
      %v5159 = vld [vmem:[%s1 + $0x4a0] sm:$0xff]
      %v5160 = vld [vmem:[%s1 + $0x4a8] sm:$0xff]
      %v5161 = vld [vmem:[%s1 + $0x4b0] sm:$0xff]
      %v5162 = vld [vmem:[%s1 + $0x4b8] sm:$0xff]
      %v5163 = vld [vmem:[%s1 + $0x4c0] sm:$0xff]
      %v5164 = vld [vmem:[%s1 + $0x4c8] sm:$0xff]
      %v5165 = vld [vmem:[%s1 + $0x4d0] sm:$0xff]
      %v5166 = vld [vmem:[%s1 + $0x4d8] sm:$0xff]
      %v5167 = vld [vmem:[%s1 + $0x4e0] sm:$0xff]
      %v5168 = vld [vmem:[%s1 + $0x4e8] sm:$0xff]
      %v5169 = vld [vmem:[%s1 + $0x4f0] sm:$0xff]
      %v5170 = vld [vmem:[%s1 + $0x4f8] sm:$0xff]
      %v5171 = vld [vmem:[%s1 + $0x500] sm:$0xff]
      %v5172 = vld [vmem:[%s1 + $0x508] sm:$0xff]
      %v5173 = vld [vmem:[%s1 + $0x510] sm:$0xff]
      %v5174 = vld [vmem:[%s1 + $0x518] sm:$0xff]
      %v5175 = vld [vmem:[%s1 + $0x520] sm:$0xff]
      %v5176 = vld [vmem:[%s1 + $0x528] sm:$0xff]
      %v5177 = vld [vmem:[%s1 + $0x530] sm:$0xff]
      %v5178 = vld [vmem:[%s1 + $0x538] sm:$0xff]
      %v5179 = vld [vmem:[%s1 + $0x540] sm:$0xff]
      %v5180 = vld [vmem:[%s1 + $0x548] sm:$0xff]
      %v5181 = vld [vmem:[%s1 + $0x550] sm:$0xff]
      %v5182 = vld [vmem:[%s1 + $0x558] sm:$0xff]
      %v5183 = vld [vmem:[%s1 + $0x560] sm:$0xff]
      %v5184 = vld [vmem:[%s1 + $0x568] sm:$0xff]
      %v5185 = vld [vmem:[%s1 + $0x570] sm:$0xff]
      %v5186 = vld [vmem:[%s1 + $0x578] sm:$0xff]
      %v5187 = vld [vmem:[%s1 + $0x580] sm:$0xff]
      %v5188 = vld [vmem:[%s1 + $0x588] sm:$0xff]
      %v5189 = vld [vmem:[%s1 + $0x590] sm:$0xff]
      %v5190 = vld [vmem:[%s1 + $0x598] sm:$0xff]
      %v5191 = vld [vmem:[%s1 + $0x5a0] sm:$0xff]
      %v5192 = vld [vmem:[%s1 + $0x5a8] sm:$0xff]
      %v5193 = vld [vmem:[%s1 + $0x5b0] sm:$0xff]
      %v5194 = vld [vmem:[%s1 + $0x5b8] sm:$0xff]
      %v5195 = vld [vmem:[%s1 + $0x5c0] sm:$0xff]
      %v5196 = vld [vmem:[%s1 + $0x5c8] sm:$0xff]
      %v5197 = vld [vmem:[%s1 + $0x5d0] sm:$0xff]
      %v5198 = vld [vmem:[%s1 + $0x5d8] sm:$0xff]
      %v5199 = vld [vmem:[%s1 + $0x5e0] sm:$0xff]
      %v5200 = vld [vmem:[%s1 + $0x5e8] sm:$0xff]
      %v5201 = vld [vmem:[%s1 + $0x5f0] sm:$0xff]
      %v5202 = vld [vmem:[%s1 + $0x5f8] sm:$0xff]
      %v5203 = vld [vmem:[%s2] sm:$0x1]
      %v5205 = vlaneseq
      %v5206 = vshrl.u32 %v5205, 7
      %v5207 = vsub.s32 0, %v5206
      %v5208 = vrot.slane %v5203, %v5207
      %5210 = vmatprep.subr.mxu0 0.0
      %5211 = vmatpush1.msra.mxu0 %v5011
      %5212 = vmatprep.subr.mxu0 0.0
      %5213 = vmatpush1.msra.mxu0 %v5012
      %5214 = vmatprep.subr.mxu0 0.0
      %5215 = vmatpush1.msra.mxu0 %v5013
      %5216 = vmatprep.subr.mxu0 0.0
      %5217 = vmatpush1.msra.mxu0 %v5014
      %5218 = vmatprep.subr.mxu0 0.0
      %5219 = vmatpush1.msra.mxu0 %v5015
      %5220 = vmatprep.subr.mxu0 0.0
      %5221 = vmatpush1.msra.mxu0 %v5016
      %5222 = vmatprep.subr.mxu0 0.0
      %5223 = vmatpush1.msra.mxu0 %v5017
      %5224 = vmatprep.subr.mxu0 0.0
      %5225 = vmatpush1.msra.mxu0 %v5018
      %5226 = vmatprep.subr.mxu0 0.0
      %5227 = vmatpush1.msra.mxu0 %v5019
      %5228 = vmatprep.subr.mxu0 0.0
      %5229 = vmatpush1.msra.mxu0 %v5020
      %5230 = vmatprep.subr.mxu0 0.0
      %5231 = vmatpush1.msra.mxu0 %v5021
      %5232 = vmatprep.subr.mxu0 0.0
      %5233 = vmatpush1.msra.mxu0 %v5022
      %5234 = vmatprep.subr.mxu0 0.0
      %5235 = vmatpush1.msra.mxu0 %v5023
      %5236 = vmatprep.subr.mxu0 0.0
      %5237 = vmatpush1.msra.mxu0 %v5024
      %5238 = vmatprep.subr.mxu0 0.0
      %5239 = vmatpush1.msra.mxu0 %v5025
      %5240 = vmatprep.subr.mxu0 0.0
      %5241 = vmatpush1.msra.mxu0 %v5026
      %5242 = vmatprep.subr.mxu0 0.0
      %5243 = vmatpush1.msra.mxu0 %v5027
      %5244 = vmatprep.subr.mxu0 0.0
      %5245 = vmatpush1.msra.mxu0 %v5028
      %5246 = vmatprep.subr.mxu0 0.0
      %5247 = vmatpush1.msra.mxu0 %v5029
      %5248 = vmatprep.subr.mxu0 0.0
      %5249 = vmatpush1.msra.mxu0 %v5030
      %5250 = vmatprep.subr.mxu0 0.0
      %5251 = vmatpush1.msra.mxu0 %v5031
      %5252 = vmatprep.subr.mxu0 0.0
      %5253 = vmatpush1.msra.mxu0 %v5032
      %5254 = vmatprep.subr.mxu0 0.0
      %5255 = vmatpush1.msra.mxu0 %v5033
      %5256 = vmatprep.subr.mxu0 0.0
      %5257 = vmatpush1.msra.mxu0 %v5034
      %5258 = vmatprep.subr.mxu0 0.0
      %5259 = vmatpush1.msra.mxu0 %v5035
      %5260 = vmatprep.subr.mxu0 0.0
      %5261 = vmatpush1.msra.mxu0 %v5036
      %5262 = vmatprep.subr.mxu0 0.0
      %5263 = vmatpush1.msra.mxu0 %v5037
      %5264 = vmatprep.subr.mxu0 0.0
      %5265 = vmatpush1.msra.mxu0 %v5038
      %5266 = vmatprep.subr.mxu0 0.0
      %5267 = vmatpush1.msra.mxu0 %v5039
      %5268 = vmatprep.subr.mxu0 0.0
      %5269 = vmatpush1.msra.mxu0 %v5040
      %5270 = vmatprep.subr.mxu0 0.0
      %5271 = vmatpush1.msra.mxu0 %v5041
      %5272 = vmatprep.subr.mxu0 0.0
      %5273 = vmatpush1.msra.mxu0 %v5042
      %5274 = vmatprep.mubr.f32.mxu0 %v3848
      %5275 = vmatmul.mubr.f32.gmra.mrb[0].mxu0 %v3847
      %v5276 = vpop.f32.mrb[0].mxu0
      %v5277 = vadd.f32 %v5208, %v5276
      %v5278 = vpop.f32.mrb[0].mxu0
      %5279 = vdwg.mxu0
      %5280 = vmatprep.subr.mxu0 0.0
      %5281 = vmatpush1.msra.mxu0 %v5043
      %5282 = vmatprep.subr.mxu0 0.0
      %5283 = vmatpush1.msra.mxu0 %v5044
      %5284 = vmatprep.subr.mxu0 0.0
      %5285 = vmatpush1.msra.mxu0 %v5045
      %5286 = vmatprep.subr.mxu0 0.0
      %5287 = vmatpush1.msra.mxu0 %v5046
      %5288 = vmatprep.subr.mxu0 0.0
      %5289 = vmatpush1.msra.mxu0 %v5047
      %5290 = vmatprep.subr.mxu0 0.0
      %5291 = vmatpush1.msra.mxu0 %v5048
      %5292 = vmatprep.subr.mxu0 0.0
      %5293 = vmatpush1.msra.mxu0 %v5049
      %5294 = vmatprep.subr.mxu0 0.0
      %5295 = vmatpush1.msra.mxu0 %v5050
      %5296 = vmatprep.subr.mxu0 0.0
      %5297 = vmatpush1.msra.mxu0 %v5051
      %5298 = vmatprep.subr.mxu0 0.0
      %5299 = vmatpush1.msra.mxu0 %v5052
      %5300 = vmatprep.subr.mxu0 0.0
      %5301 = vmatpush1.msra.mxu0 %v5053
      %5302 = vmatprep.subr.mxu0 0.0
      %5303 = vmatpush1.msra.mxu0 %v5054
      %5304 = vmatprep.subr.mxu0 0.0
      %5305 = vmatpush1.msra.mxu0 %v5055
      %5306 = vmatprep.subr.mxu0 0.0
      %5307 = vmatpush1.msra.mxu0 %v5056
      %5308 = vmatprep.subr.mxu0 0.0
      %5309 = vmatpush1.msra.mxu0 %v5057
      %5310 = vmatprep.subr.mxu0 0.0
      %5311 = vmatpush1.msra.mxu0 %v5058
      %5312 = vmatprep.subr.mxu0 0.0
      %5313 = vmatpush1.msra.mxu0 %v5059
      %5314 = vmatprep.subr.mxu0 0.0
      %5315 = vmatpush1.msra.mxu0 %v5060
      %5316 = vmatprep.subr.mxu0 0.0
      %5317 = vmatpush1.msra.mxu0 %v5061
      %5318 = vmatprep.subr.mxu0 0.0
      %5319 = vmatpush1.msra.mxu0 %v5062
      %5320 = vmatprep.subr.mxu0 0.0
      %5321 = vmatpush1.msra.mxu0 %v5063
      %5322 = vmatprep.subr.mxu0 0.0
      %5323 = vmatpush1.msra.mxu0 %v5064
      %5324 = vmatprep.subr.mxu0 0.0
      %5325 = vmatpush1.msra.mxu0 %v5065
      %5326 = vmatprep.subr.mxu0 0.0
      %5327 = vmatpush1.msra.mxu0 %v5066
      %5328 = vmatprep.subr.mxu0 0.0
      %5329 = vmatpush1.msra.mxu0 %v5067
      %5330 = vmatprep.subr.mxu0 0.0
      %5331 = vmatpush1.msra.mxu0 %v5068
      %5332 = vmatprep.subr.mxu0 0.0
      %5333 = vmatpush1.msra.mxu0 %v5069
      %5334 = vmatprep.subr.mxu0 0.0
      %5335 = vmatpush1.msra.mxu0 %v5070
      %5336 = vmatprep.subr.mxu0 0.0
      %5337 = vmatpush1.msra.mxu0 %v5071
      %5338 = vmatprep.subr.mxu0 0.0
      %5339 = vmatpush1.msra.mxu0 %v5072
      %5340 = vmatprep.subr.mxu0 0.0
      %5341 = vmatpush1.msra.mxu0 %v5073
      %5342 = vmatprep.subr.mxu0 0.0
      %5343 = vmatpush1.msra.mxu0 %v5074
      %5344 = vmatprep.mubr.f32.mxu0 %v3850
      %5345 = vmatmul.mubr.f32.gmra.mrb[0].mxu0 %v3849
      %v5346 = vpop.f32.mrb[0].mxu0
      %v5347 = vadd.f32 %v5277, %v5346
      %v5348 = vpop.f32.mrb[0].mxu0
      %5349 = vdwg.mxu0
      %5350 = vmatprep.subr.mxu0 0.0
      %5351 = vmatpush1.msra.mxu0 %v5075
      %5352 = vmatprep.subr.mxu0 0.0
      %5353 = vmatpush1.msra.mxu0 %v5076
      %5354 = vmatprep.subr.mxu0 0.0
      %5355 = vmatpush1.msra.mxu0 %v5077
      %5356 = vmatprep.subr.mxu0 0.0
      %5357 = vmatpush1.msra.mxu0 %v5078
      %5358 = vmatprep.subr.mxu0 0.0
      %5359 = vmatpush1.msra.mxu0 %v5079
      %5360 = vmatprep.subr.mxu0 0.0
      %5361 = vmatpush1.msra.mxu0 %v5080
      %5362 = vmatprep.subr.mxu0 0.0
      %5363 = vmatpush1.msra.mxu0 %v5081
      %5364 = vmatprep.subr.mxu0 0.0
      %5365 = vmatpush1.msra.mxu0 %v5082
      %5366 = vmatprep.subr.mxu0 0.0
      %5367 = vmatpush1.msra.mxu0 %v5083
      %5368 = vmatprep.subr.mxu0 0.0
      %5369 = vmatpush1.msra.mxu0 %v5084
      %5370 = vmatprep.subr.mxu0 0.0
      %5371 = vmatpush1.msra.mxu0 %v5085
      %5372 = vmatprep.subr.mxu0 0.0
      %5373 = vmatpush1.msra.mxu0 %v5086
      %5374 = vmatprep.subr.mxu0 0.0
      %5375 = vmatpush1.msra.mxu0 %v5087
      %5376 = vmatprep.subr.mxu0 0.0
      %5377 = vmatpush1.msra.mxu0 %v5088
      %5378 = vmatprep.subr.mxu0 0.0
      %5379 = vmatpush1.msra.mxu0 %v5089
      %5380 = vmatprep.subr.mxu0 0.0
      %5381 = vmatpush1.msra.mxu0 %v5090
      %5382 = vmatprep.subr.mxu0 0.0
      %5383 = vmatpush1.msra.mxu0 %v5091
      %5384 = vmatprep.subr.mxu0 0.0
      %5385 = vmatpush1.msra.mxu0 %v5092
      %5386 = vmatprep.subr.mxu0 0.0
      %5387 = vmatpush1.msra.mxu0 %v5093
      %5388 = vmatprep.subr.mxu0 0.0
      %5389 = vmatpush1.msra.mxu0 %v5094
      %5390 = vmatprep.subr.mxu0 0.0
      %5391 = vmatpush1.msra.mxu0 %v5095
      %5392 = vmatprep.subr.mxu0 0.0
      %5393 = vmatpush1.msra.mxu0 %v5096
      %5394 = vmatprep.subr.mxu0 0.0
      %5395 = vmatpush1.msra.mxu0 %v5097
      %5396 = vmatprep.subr.mxu0 0.0
      %5397 = vmatpush1.msra.mxu0 %v5098
      %5398 = vmatprep.subr.mxu0 0.0
      %5399 = vmatpush1.msra.mxu0 %v5099
      %5400 = vmatprep.subr.mxu0 0.0
      %5401 = vmatpush1.msra.mxu0 %v5100
      %5402 = vmatprep.subr.mxu0 0.0
      %5403 = vmatpush1.msra.mxu0 %v5101
      %5404 = vmatprep.subr.mxu0 0.0
      %5405 = vmatpush1.msra.mxu0 %v5102
      %5406 = vmatprep.subr.mxu0 0.0
      %5407 = vmatpush1.msra.mxu0 %v5103
      %5408 = vmatprep.subr.mxu0 0.0
      %5409 = vmatpush1.msra.mxu0 %v5104
      %5410 = vmatprep.subr.mxu0 0.0
      %5411 = vmatpush1.msra.mxu0 %v5105
      %5412 = vmatprep.subr.mxu0 0.0
      %5413 = vmatpush1.msra.mxu0 %v5106
      %5414 = vmatprep.mubr.f32.mxu0 %v3852
      %5415 = vmatmul.mubr.f32.gmra.mrb[0].mxu0 %v3851
      %v5416 = vpop.f32.mrb[0].mxu0
      %v5417 = vadd.f32 %v5347, %v5416
      %v5418 = vpop.f32.mrb[0].mxu0
      %5419 = vdwg.mxu0
      %5420 = vmatprep.subr.mxu0 0.0
      %5421 = vmatpush1.msra.mxu0 %v5107
      %5422 = vmatprep.subr.mxu0 0.0
      %5423 = vmatpush1.msra.mxu0 %v5108
      %5424 = vmatprep.subr.mxu0 0.0
      %5425 = vmatpush1.msra.mxu0 %v5109
      %5426 = vmatprep.subr.mxu0 0.0
      %5427 = vmatpush1.msra.mxu0 %v5110
      %5428 = vmatprep.subr.mxu0 0.0
      %5429 = vmatpush1.msra.mxu0 %v5111
      %5430 = vmatprep.subr.mxu0 0.0
      %5431 = vmatpush1.msra.mxu0 %v5112
      %5432 = vmatprep.subr.mxu0 0.0
      %5433 = vmatpush1.msra.mxu0 %v5113
      %5434 = vmatprep.subr.mxu0 0.0
      %5435 = vmatpush1.msra.mxu0 %v5114
      %5436 = vmatprep.subr.mxu0 0.0
      %5437 = vmatpush1.msra.mxu0 %v5115
      %5438 = vmatprep.subr.mxu0 0.0
      %5439 = vmatpush1.msra.mxu0 %v5116
      %5440 = vmatprep.subr.mxu0 0.0
      %5441 = vmatpush1.msra.mxu0 %v5117
      %5442 = vmatprep.subr.mxu0 0.0
      %5443 = vmatpush1.msra.mxu0 %v5118
      %5444 = vmatprep.subr.mxu0 0.0
      %5445 = vmatpush1.msra.mxu0 %v5119
      %5446 = vmatprep.subr.mxu0 0.0
      %5447 = vmatpush1.msra.mxu0 %v5120
      %5448 = vmatprep.subr.mxu0 0.0
      %5449 = vmatpush1.msra.mxu0 %v5121
      %5450 = vmatprep.subr.mxu0 0.0
      %5451 = vmatpush1.msra.mxu0 %v5122
      %5452 = vmatprep.subr.mxu0 0.0
      %5453 = vmatpush1.msra.mxu0 %v5123
      %5454 = vmatprep.subr.mxu0 0.0
      %5455 = vmatpush1.msra.mxu0 %v5124
      %5456 = vmatprep.subr.mxu0 0.0
      %5457 = vmatpush1.msra.mxu0 %v5125
      %5458 = vmatprep.subr.mxu0 0.0
      %5459 = vmatpush1.msra.mxu0 %v5126
      %5460 = vmatprep.subr.mxu0 0.0
      %5461 = vmatpush1.msra.mxu0 %v5127
      %5462 = vmatprep.subr.mxu0 0.0
      %5463 = vmatpush1.msra.mxu0 %v5128
      %5464 = vmatprep.subr.mxu0 0.0
      %5465 = vmatpush1.msra.mxu0 %v5129
      %5466 = vmatprep.subr.mxu0 0.0
      %5467 = vmatpush1.msra.mxu0 %v5130
      %5468 = vmatprep.subr.mxu0 0.0
      %5469 = vmatpush1.msra.mxu0 %v5131
      %5470 = vmatprep.subr.mxu0 0.0
      %5471 = vmatpush1.msra.mxu0 %v5132
      %5472 = vmatprep.subr.mxu0 0.0
      %5473 = vmatpush1.msra.mxu0 %v5133
      %5474 = vmatprep.subr.mxu0 0.0
      %5475 = vmatpush1.msra.mxu0 %v5134
      %5476 = vmatprep.subr.mxu0 0.0
      %5477 = vmatpush1.msra.mxu0 %v5135
      %5478 = vmatprep.subr.mxu0 0.0
      %5479 = vmatpush1.msra.mxu0 %v5136
      %5480 = vmatprep.subr.mxu0 0.0
      %5481 = vmatpush1.msra.mxu0 %v5137
      %5482 = vmatprep.subr.mxu0 0.0
      %5483 = vmatpush1.msra.mxu0 %v5138
      %5484 = vmatprep.mubr.f32.mxu0 %v5000
      %5485 = vmatmul.mubr.f32.gmra.mrb[0].mxu0 %v4999
      %v5486 = vpop.f32.mrb[0].mxu0
      %v5487 = vadd.f32 %v5417, %v5486
      %v5488 = vpop.f32.mrb[0].mxu0
      %5489 = vdwg.mxu0
      %5490 = vmatprep.subr.mxu0 0.0
      %5491 = vmatpush1.msra.mxu0 %v5139
      %5492 = vmatprep.subr.mxu0 0.0
      %5493 = vmatpush1.msra.mxu0 %v5140
      %5494 = vmatprep.subr.mxu0 0.0
      %5495 = vmatpush1.msra.mxu0 %v5141
      %5496 = vmatprep.subr.mxu0 0.0
      %5497 = vmatpush1.msra.mxu0 %v5142
      %5498 = vmatprep.subr.mxu0 0.0
      %5499 = vmatpush1.msra.mxu0 %v5143
      %5500 = vmatprep.subr.mxu0 0.0
      %5501 = vmatpush1.msra.mxu0 %v5144
      %5502 = vmatprep.subr.mxu0 0.0
      %5503 = vmatpush1.msra.mxu0 %v5145
      %5504 = vmatprep.subr.mxu0 0.0
      %5505 = vmatpush1.msra.mxu0 %v5146
      %5506 = vmatprep.subr.mxu0 0.0
      %5507 = vmatpush1.msra.mxu0 %v5147
      %5508 = vmatprep.subr.mxu0 0.0
      %5509 = vmatpush1.msra.mxu0 %v5148
      %5510 = vmatprep.subr.mxu0 0.0
      %5511 = vmatpush1.msra.mxu0 %v5149
      %5512 = vmatprep.subr.mxu0 0.0
      %5513 = vmatpush1.msra.mxu0 %v5150
      %5514 = vmatprep.subr.mxu0 0.0
      %5515 = vmatpush1.msra.mxu0 %v5151
      %5516 = vmatprep.subr.mxu0 0.0
      %5517 = vmatpush1.msra.mxu0 %v5152
      %5518 = vmatprep.subr.mxu0 0.0
      %5519 = vmatpush1.msra.mxu0 %v5153
      %5520 = vmatprep.subr.mxu0 0.0
      %5521 = vmatpush1.msra.mxu0 %v5154
      %5522 = vmatprep.subr.mxu0 0.0
      %5523 = vmatpush1.msra.mxu0 %v5155
      %5524 = vmatprep.subr.mxu0 0.0
      %5525 = vmatpush1.msra.mxu0 %v5156
      %5526 = vmatprep.subr.mxu0 0.0
      %5527 = vmatpush1.msra.mxu0 %v5157
      %5528 = vmatprep.subr.mxu0 0.0
      %5529 = vmatpush1.msra.mxu0 %v5158
      %5530 = vmatprep.subr.mxu0 0.0
      %5531 = vmatpush1.msra.mxu0 %v5159
      %5532 = vmatprep.subr.mxu0 0.0
      %5533 = vmatpush1.msra.mxu0 %v5160
      %5534 = vmatprep.subr.mxu0 0.0
      %5535 = vmatpush1.msra.mxu0 %v5161
      %5536 = vmatprep.subr.mxu0 0.0
      %5537 = vmatpush1.msra.mxu0 %v5162
      %5538 = vmatprep.subr.mxu0 0.0
      %5539 = vmatpush1.msra.mxu0 %v5163
      %5540 = vmatprep.subr.mxu0 0.0
      %5541 = vmatpush1.msra.mxu0 %v5164
      %5542 = vmatprep.subr.mxu0 0.0
      %5543 = vmatpush1.msra.mxu0 %v5165
      %5544 = vmatprep.subr.mxu0 0.0
      %5545 = vmatpush1.msra.mxu0 %v5166
      %5546 = vmatprep.subr.mxu0 0.0
      %5547 = vmatpush1.msra.mxu0 %v5167
      %5548 = vmatprep.subr.mxu0 0.0
      %5549 = vmatpush1.msra.mxu0 %v5168
      %5550 = vmatprep.subr.mxu0 0.0
      %5551 = vmatpush1.msra.mxu0 %v5169
      %5552 = vmatprep.subr.mxu0 0.0
      %5553 = vmatpush1.msra.mxu0 %v5170
      %5554 = vmatprep.mubr.f32.mxu0 %v5002
      %5555 = vmatmul.mubr.f32.gmra.mrb[0].mxu0 %v5001
      %v5556 = vpop.f32.mrb[0].mxu0
      %v5557 = vadd.f32 %v5487, %v5556
      %v5558 = vpop.f32.mrb[0].mxu0
      %5559 = vdwg.mxu0
      %5560 = vmatprep.subr.mxu0 0.0
      %5561 = vmatpush1.msra.mxu0 %v5171
      %5562 = vmatprep.subr.mxu0 0.0
      %5563 = vmatpush1.msra.mxu0 %v5172
      %5564 = vmatprep.subr.mxu0 0.0
      %5565 = vmatpush1.msra.mxu0 %v5173
      %5566 = vmatprep.subr.mxu0 0.0
      %5567 = vmatpush1.msra.mxu0 %v5174
      %5568 = vmatprep.subr.mxu0 0.0
      %5569 = vmatpush1.msra.mxu0 %v5175
      %5570 = vmatprep.subr.mxu0 0.0
      %5571 = vmatpush1.msra.mxu0 %v5176
      %5572 = vmatprep.subr.mxu0 0.0
      %5573 = vmatpush1.msra.mxu0 %v5177
      %5574 = vmatprep.subr.mxu0 0.0
      %5575 = vmatpush1.msra.mxu0 %v5178
      %5576 = vmatprep.subr.mxu0 0.0
      %5577 = vmatpush1.msra.mxu0 %v5179
      %5578 = vmatprep.subr.mxu0 0.0
      %5579 = vmatpush1.msra.mxu0 %v5180
      %5580 = vmatprep.subr.mxu0 0.0
      %5581 = vmatpush1.msra.mxu0 %v5181
      %5582 = vmatprep.subr.mxu0 0.0
      %5583 = vmatpush1.msra.mxu0 %v5182
      %5584 = vmatprep.subr.mxu0 0.0
      %5585 = vmatpush1.msra.mxu0 %v5183
      %5586 = vmatprep.subr.mxu0 0.0
      %5587 = vmatpush1.msra.mxu0 %v5184
      %5588 = vmatprep.subr.mxu0 0.0
      %5589 = vmatpush1.msra.mxu0 %v5185
      %5590 = vmatprep.subr.mxu0 0.0
      %5591 = vmatpush1.msra.mxu0 %v5186
      %5592 = vmatprep.subr.mxu0 0.0
      %5593 = vmatpush1.msra.mxu0 %v5187
      %5594 = vmatprep.subr.mxu0 0.0
      %5595 = vmatpush1.msra.mxu0 %v5188
      %5596 = vmatprep.subr.mxu0 0.0
      %5597 = vmatpush1.msra.mxu0 %v5189
      %5598 = vmatprep.subr.mxu0 0.0
      %5599 = vmatpush1.msra.mxu0 %v5190
      %5600 = vmatprep.subr.mxu0 0.0
      %5601 = vmatpush1.msra.mxu0 %v5191
      %5602 = vmatprep.subr.mxu0 0.0
      %5603 = vmatpush1.msra.mxu0 %v5192
      %5604 = vmatprep.subr.mxu0 0.0
      %5605 = vmatpush1.msra.mxu0 %v5193
      %5606 = vmatprep.subr.mxu0 0.0
      %5607 = vmatpush1.msra.mxu0 %v5194
      %5608 = vmatprep.subr.mxu0 0.0
      %5609 = vmatpush1.msra.mxu0 %v5195
      %5610 = vmatprep.subr.mxu0 0.0
      %5611 = vmatpush1.msra.mxu0 %v5196
      %5612 = vmatprep.subr.mxu0 0.0
      %5613 = vmatpush1.msra.mxu0 %v5197
      %5614 = vmatprep.subr.mxu0 0.0
      %5615 = vmatpush1.msra.mxu0 %v5198
      %5616 = vmatprep.subr.mxu0 0.0
      %5617 = vmatpush1.msra.mxu0 %v5199
      %5618 = vmatprep.subr.mxu0 0.0
      %5619 = vmatpush1.msra.mxu0 %v5200
      %5620 = vmatprep.subr.mxu0 0.0
      %5621 = vmatpush1.msra.mxu0 %v5201
      %5622 = vmatprep.subr.mxu0 0.0
      %5623 = vmatpush1.msra.mxu0 %v5202
      %5624 = vmatprep.mubr.f32.mxu0 %v5004
      %5625 = vmatmul.mubr.f32.gmra.mrb[0].mxu0 %v5003
      %v5626 = vpop.f32.mrb[0].mxu0
      %v5627 = vadd.f32 %v5557, %v5626
      %v5628 = vpop.f32.mrb[0].mxu0
      %5629 = vdwg.mxu0
      %v5632 = vunpack.c.l.s4 1966171168
      %v5633 = vunpack.c.0.s8 %v5632
      %v5634 = vlaneseq
      %v5635 = vshrl.u32 %v5634, 7
      %v5636 = vsub.s32 %v5633, %v5635
      %v5637 = vrot.slane %v5627, %v5636
      %v5638 = vcombine.high %v5637, %v5637
      %v5640 = vunpack.c.l.s4 1966171168
      %v5641 = vunpack.c.0.s8 %v5640
      %v5642 = vlaneseq
      %v5643 = vshrl.u32 %v5642, 7
      %v5644 = vsub.s32 %v5641, %v5643
      %v5645 = vrot.slane %v5637, %v5644
      %v5647 = vunpack.c.l.s4 1966171168
      %v5648 = vunpack.c.0.s8 %v5647
      %v5649 = vlaneseq
      %v5650 = vshrl.u32 %v5649, 7
      %v5651 = vsub.s32 %v5648, %v5650
      %v5652 = vrot.slane %v5638, %v5651
      %5655 = vst [vmem:[%s173] sm:$0x1] %v5645
      %5656 = vst [vmem:[%s173 + $0x1] sm:$0x1] %v5652
      %s5657 = smul.u32 2, %s14
      %p5658 = scmp.lt.s32.totalorder %s5657, 3
      %s5659 = scalar_select %p5658, %s5657, 3
      %s5660 = scalar_lea.vmem %s3, %s5659
      // Predicated region
      $region33: #{ssl_head_forward.1} parent=31 // pred_check
        %p5661 = pneg %p100
      $region34: #{ssl_head_forward.1} parent=31 // pred_check_branch
        %5663 = sbr.rel (%p5661) target = $region36
      $region35: #{ssl_head_forward.1} parent=31 // pred_region
        %s5664 = smul.u32 2, %s14
      $region36: #{ssl_head_forward.1} parent=31 // pred_fallthru
        _
    $region32: #{ssl_head_forward.1} parent=5 // pred_fallthru
      _
    %p5665 = scmp.le.s32.totalorder 2, %s9
    // Predicated region
    $region37: #{ssl_head_forward.1} parent=5 // pred_check
      %p5666 = pneg %p5665
    $region38: #{ssl_head_forward.1} parent=5 // pred_check_branch
      %5668 = sbr.rel (%p5666) target = $region40
    $region39: #{ssl_head_forward.1} parent=5 // pred_region
      %s5669 = ssub.s32 %s9, 2
      // Predicated region
      $region41: #{ssl_head_forward.1} parent=39 // pred_check
        %p5670 = pneg %p106
      $region42: #{ssl_head_forward.1} parent=39 // pred_check_branch
        %5672 = sbr.rel (%p5670) target = $region44
      $region43: #{ssl_head_forward.1} parent=39 // pred_region
        %s5673 = smul.u32 2, %s15
        %p5674 = scmp.lt.s32.totalorder %s5673, 3
        %s5675 = scalar_select %p5674, %s5673, 3
        %s5676 = scalar_lea.vmem %s3, %s5675
      $region44: #{ssl_head_forward.1} parent=39 // pred_fallthru
        _
    $region40: #{ssl_head_forward.1} parent=5 // pred_fallthru
      _
  $region6: #{ssl_head_forward.1} parent=0 // loop_footer
    %s13 = sadd.s32 1, %s9
  $region7: #{ssl_head_forward.1} parent=0 // loop_footer_branch
    %8 = sbr.rel target = $region3
  $region8: #{ssl_head_forward.1} parent=0 // loop_exit
    _

</llo_original>
